<compile_context>
chip_gen: v6e
topology: v6e:2x2x1
jax: 0.10.0
libtpu: 0.0.40
codegen_flags: <defaults>
</compile_context>

<pallas_src>
import functools
import math

import jax
import jax.numpy as jnp
from jax.experimental import pallas as pl
from jax.experimental.pallas import tpu as pltpu


def _round_up(x, m):
    return ((x + m - 1) // m) * m


# ----------------------------------------------------------------------------
# Per-generation tiling policy
# ----------------------------------------------------------------------------
def _device_profile():
    """Scoped-VMEM budget + whether to keep a 'parallel' grid-axis product >= 2."""
    try:
        kind = jax.devices()[0].device_kind.lower()
    except Exception:
        kind = ""
    if "v7" in kind or "7x" in kind:
        # 2 TensorCores/chip; 32 MiB scoped-VMEM default (64 MiB physical) -> keep headroom.
        return {"vmem_budget": 24 << 20, "prefer_parallel": True}
    if "v6" in kind:
        # 1 TensorCore; 32 MiB scoped-VMEM default.
        return {"vmem_budget": 26 << 20, "prefer_parallel": False}
    # v5e (16 MiB scoped-VMEM default) and anything unknown: be conservative.
    return {"vmem_budget": 12 << 20, "prefer_parallel": True}


def _tile_footprint_bytes(tm, tn, tk):
    # double-buffered bf16 patches + double-buffered bf16 weight
    # + f32 accumulator scratch + double-buffered bf16 output + bias row.
    # (Weight stays depth-2 buffered; depth-3 would add tk*tn*2 B, tight vs v5e's
    #  16 MiB scoped default once tiles are enlarged.)
    return (2 * tm * tk * 2
            + 2 * tk * tn * 2
            + tm * tn * 4
            + 2 * tm * tn * 2
            + 2 * tn * 4)


def _select_tiles(M, Kp, Np, *, vmem_budget, prefer_parallel):
    """Pick (Mp, tm, tn, tk): fewest grid steps within the VMEM budget,
    tie-breaking toward larger contiguous weight blocks (tk, then tn, then tm)."""
    m8 = _round_up(M, 8)
    tm_cands = sorted({min(m8, c) for c in (1024, 512, 256, 128)}, reverse=True)
    tn_cands = [c for c in (2048, 1024, 512, 256, 128) if Np % c == 0]
    tk_cands = [c for c in (16384, 8192, 4096, 2048, 1024, 512, 256, 128) if Kp % c == 0]

    feasible = []
    for tm in tm_cands:
        Mp = _round_up(M, tm)
        for tn in tn_cands:
            for tk in tk_cands:
                if _tile_footprint_bytes(tm, tn, tk) > vmem_budget:
                    continue
                gi, gj, gk = Mp // tm, Np // tn, Kp // tk
                feasible.append(
                    (gi * gj * gk, -tk, -tn, -tm, (Mp, tm, tn, tk, gi * gj))
                )
    if not feasible:  # smallest legal tiles always fit in practice
        tm = min(tm_cands)
        return _round_up(M, tm), tm, tn_cands[-1], tk_cands[-1]

    if prefer_parallel:
        par = [f for f in feasible if f[4][4] >= 2]
        if par:
            feasible = par
    feasible.sort()
    Mp, tm, tn, tk, _ = feasible[0][4]
    return Mp, tm, tn, tk


# ----------------------------------------------------------------------------
# Pallas kernel: tiled bf16 GEMM (f32 acc) + fused per-channel bias + LeakyReLU
# ----------------------------------------------------------------------------
def _gemm_bn_act_kernel(p_ref, w_ref, b_ref, o_ref, acc_ref, *, slope):
    k = pl.program_id(2)
    prod = jnp.dot(p_ref[...], w_ref[...], preferred_element_type=jnp.float32)

    @pl.when(k == 0)
    def _():
        acc_ref[...] = prod          # first K step writes directly: no zero-fill pass

    @pl.when(k > 0)
    def _():
        acc_ref[...] += prod

    @pl.when(k == pl.num_programs(2) - 1)
    def _():
        y = acc_ref[...] + b_ref[...]                 # BN scale pre-folded into W
        o_ref[...] = jnp.where(y >= 0.0, y, slope * y).astype(o_ref.dtype)


def conv_gemm_bn_lrelu(patches, wp, bp, *, n_out, slope, profile):
    """leaky_relu(patches @ wp + bp, slope) -> [M, n_out] (bf16).

    `wp` is a pre-padded bf16 weight [Kp, Np] with BN scale folded in,
    `bp` is a pre-padded f32 bias row [1, Np].
    """
    M, K = patches.shape
    Kp, Np = wp.shape
    # K alignment is baked into prepare_params (Cin pad) + im2col -> no patch K pad.
    assert K == Kp, (K, Kp)
    assert n_out <= Np

    Mp, tm, tn, tk = _select_tiles(M, Kp, Np, **profile)

    pp = patches
    if pp.dtype != jnp.bfloat16:
        pp = pp.astype(jnp.bfloat16)
    if Mp != M:                                   # only pad when actually needed
        pp = jnp.pad(pp, ((0, Mp - M), (0, 0)))

    grid = (Mp // tm, Np // tn, Kp // tk)

    out = pl.pallas_call(
        functools.partial(_gemm_bn_act_kernel, slope=slope),
        out_shape=jax.ShapeDtypeStruct((Mp, Np), jnp.bfloat16),
        grid_spec=pltpu.PrefetchScalarGridSpec(
            num_scalar_prefetch=0,
            grid=grid,
            in_specs=[
                pl.BlockSpec((tm, tk), lambda i, j, k: (i, k)),
                pl.BlockSpec((tk, tn), lambda i, j, k: (k, j)),
                pl.BlockSpec((1, tn), lambda i, j, k: (0, j)),
            ],
            out_specs=pl.BlockSpec((tm, tn), lambda i, j, k: (i, j)),
            scratch_shapes=[pltpu.VMEM((tm, tn), jnp.float32)],
        ),
        compiler_params=pltpu.CompilerParams(
            dimension_semantics=("parallel", "parallel", "arbitrary")
        ),
    )(pp, wp, bp)

    if Mp != M or Np != n_out:
        out = out[:M, :n_out]
    return out


# ----------------------------------------------------------------------------
# Pallas kernel: final 2048 -> 1 conv, single grid step (<1 MiB of real data)
# ----------------------------------------------------------------------------
def _final_dot_kernel(p_ref, w_ref, o_ref):
    # Whole problem lives in VMEM; one reduction over K, no pipeline-step overhead.
    o_ref[...] = jnp.sum(
        p_ref[...].astype(jnp.float32) * w_ref[...].astype(jnp.float32),
        axis=1,
        keepdims=True,
    )


def final_conv(patches, w_vec):
    """out[M, 1] = patches[M, K] @ w_vec[1, K].T  (single output channel)."""
    M, K = patches.shape
    assert w_vec.shape == (1, K) and K % 128 == 0

    Mp = _round_up(M, 8)
    pp = patches
    if pp.dtype != jnp.bfloat16:
        pp = pp.astype(jnp.bfloat16)
    if Mp != M:
        pp = jnp.pad(pp, ((0, Mp - M), (0, 0)))

    out = pl.pallas_call(
        _final_dot_kernel,
        out_shape=jax.ShapeDtypeStruct((Mp, 1), jnp.float32),
        grid_spec=pltpu.PrefetchScalarGridSpec(
            num_scalar_prefetch=0,
            grid=(1,),
            in_specs=[
                pl.BlockSpec((Mp, K), lambda k: (0, 0)),
                pl.BlockSpec((1, K), lambda k: (0, 0)),
            ],
            out_specs=pl.BlockSpec((Mp, 1), lambda k: (0, 0)),
        ),
        compiler_params=pltpu.CompilerParams(dimension_semantics=("arbitrary",)),
    )(pp, w_vec)

    return out[:M, :]


# ----------------------------------------------------------------------------
# Glue: NHWC im2col (lane-contiguous concat, no big transposes)
# ----------------------------------------------------------------------------
def im2col_nhwc(x, ksize, stride, pad):
    """x: [N, H, W, C] -> patches [N*Ho*Wo, ksize*ksize*C], K order (kh, kw, C)."""
    N, H, W, C = x.shape
    if pad:
        x = jnp.pad(x, ((0, 0), (pad, pad), (pad, pad), (0, 0)))
    Ho = (H + 2 * pad - ksize) // stride + 1
    Wo = (W + 2 * pad - ksize) // stride + 1
    cols = []
    for ki in range(ksize):
        for kj in range(ksize):
            patch = jax.lax.slice(
                x,
                (0, ki, kj, 0),
                (N, ki + stride * (Ho - 1) + 1, kj + stride * (Wo - 1) + 1, C),
                (1, stride, stride, 1),
            )  # [N, Ho, Wo, C]
            cols.append(patch)
    p = jnp.concatenate(cols, axis=-1)  # channel-last concat -> (kh, kw, C) order
    return p.reshape(N * Ho * Wo, ksize * ksize * C), Ho, Wo


# ----------------------------------------------------------------------------
# Parameters: PyTorch-layout init + one-time preparation (fold/reorder/pad)
# ----------------------------------------------------------------------------
def init_params(key, in_channels=3):
    chans = [in_channels, 256, 512, 1024, 2048]
    blocks = []
    for li in range(4):
        cin, cout = chans[li], chans[li + 1]
        key, kw, kb, kg, kbeta, krm, krv = jax.random.split(key, 7)
        w = 0.05 * jax.random.normal(kw, (cout, cin, 4, 4), jnp.float32)
        b = 0.05 * jax.random.normal(kb, (cout,), jnp.float32)
        gamma = 1.0 + 0.1 * jax.random.normal(kg, (cout,), jnp.float32)
        beta = 0.1 * jax.random.normal(kbeta, (cout,), jnp.float32)
        run_mean = 0.1 * jax.random.normal(krm, (cout,), jnp.float32)
        run_var = jax.random.uniform(krv, (cout,), jnp.float32, 0.5, 1.5)
        blocks.append((w, b, gamma, beta, run_mean, run_var))
    key, kw, kb = jax.random.split(key, 3)
    w_out = 0.05 * jax.random.normal(kw, (1, 2048, 4, 4), jnp.float32)
    b_out = 0.05 * jax.random.normal(kb, (1,), jnp.float32)
    return {"blocks": blocks, "out": (w_out, b_out)}


def prepare_params(params, bn_eps=1e-5):
    """One-time: pad Cin for lane alignment, reorder to (kh,kw,cin)->cout,
    fold BN scale into W and (conv bias + BN shift) into a bias row, pad, bf16."""
    prepared_blocks = []
    for (w, b, gamma, beta, rmean, rvar) in params["blocks"]:
        cout, cin, kh, kw = w.shape
        s = gamma / jnp.sqrt(rvar + bn_eps)                    # [cout]
        # Pad Cin so kh*kw*cin_p is a multiple of 128; the matching (one-time,
        # tiny) channel pad of the activation happens in the wrapper, so the
        # big im2col patch tensor never needs an XLA-side K pad.
        step = 128 // math.gcd(kh * kw, 128)
        cin_p = _round_up(cin, step)
        wpad = jnp.pad(w, ((0, 0), (0, cin_p - cin), (0, 0), (0, 0)))
        # K order (kh, kw, cin_p) to match the NHWC im2col patch layout.
        wmat = jnp.transpose(wpad, (2, 3, 1, 0)).reshape(kh * kw * cin_p, cout)
        wmat = wmat * s[None, :]                               # fold BN scale
        bias = (b - rmean) * s + beta                          # fold conv bias + BN shift

        K, N = wmat.shape
        Kp = _round_up(K, 128)
        Np = _round_up(N, 128)
        wp = jnp.pad(wmat, ((0, Kp - K), (0, Np - N))).astype(jnp.bfloat16)
        bp = jnp.pad(bias.reshape(1, -1), ((0, 0), (0, Np - N))).astype(jnp.float32)
        prepared_blocks.append((wp, bp, N, cin_p))

    w_out, b_out = params["out"]                               # [1, 2048, 4, 4], [1]
    w_vec = jnp.transpose(w_out[0], (1, 2, 0)).reshape(1, -1).astype(jnp.bfloat16)
    return {"blocks": prepared_blocks, "out": (w_vec, b_out.astype(jnp.float32))}


# ----------------------------------------------------------------------------
# Forward pass
# ----------------------------------------------------------------------------
def discriminator_forward(x, prepared, lr_rate=0.2, profile=None):
    """x: [N, 3, H, W] (NCHW, f32) -> [N, 1, Ho, Wo] (f32)."""
    if profile is None:
        profile = _device_profile()
    n = x.shape[0]
    # Single tiny NCHW -> NHWC transpose at the input; bf16 activations throughout.
    h = jnp.transpose(x, (0, 2, 3, 1)).astype(jnp.bfloat16)

    # main_module: 4 x (Conv2d k4 s2 p1 -> BatchNorm2d (eval) -> LeakyReLU)
    for (wp, bp, n_out, cin_p) in prepared["blocks"]:
        if h.shape[-1] != cin_p:                               # layer 1 only: C 3 -> 8
            h = jnp.pad(h, ((0, 0), (0, 0), (0, 0), (0, cin_p - h.shape[-1])))
        patches, Ho, Wo = im2col_nhwc(h, ksize=4, stride=2, pad=1)
        y = conv_gemm_bn_lrelu(patches, wp, bp, n_out=n_out, slope=lr_rate,
                               profile=profile)
        h = y.reshape(n, Ho, Wo, n_out)                        # already NHWC

    # output: Conv2d k4 s1 p0, 2048 -> 1, no BN, no activation.
    w_vec, b_out = prepared["out"]
    patches, Ho, Wo = im2col_nhwc(h, ksize=4, stride=1, pad=0)
    y = final_conv(patches, w_vec) + b_out[0]                  # [M, 1] f32
    return y.reshape(n, Ho, Wo, 1).transpose(0, 3, 1, 2)       # NCHW output


if __name__ == "__main__":
    key = jax.random.PRNGKey(0)
    key, kx = jax.random.split(key)
    # Smallest spatial size consistent with the module: 64x64 -> 32 -> 16 -> 8 -> 4 -> 1
    x = jax.random.normal(kx, (2, 3, 64, 64), jnp.float32)
    params = init_params(key, in_channels=3)
    prepared = prepare_params(params)

    out = discriminator_forward(x, prepared)
    out = jax.block_until_ready(out)
    assert out.shape == (2, 1, 1, 1), out.shape
    print("KERNEL_OK")
</pallas_src>

<mosaic_0001>
module attributes {stable_mosaic.version = 11 : i64} {
  func.func @_gemm_bn_act_kernel(%arg0: i32, %arg1: i32, %arg2: i32, %arg3: memref<1024x128xbf16, #tpu.memory_space<vmem>>, %arg4: memref<128x256xbf16, #tpu.memory_space<vmem>>, %arg5: memref<1x256xf32, #tpu.memory_space<vmem>>, %arg6: memref<1024x256xbf16, #tpu.memory_space<vmem>>, %arg7: memref<1024x256xf32, #tpu.memory_space<vmem>>) attributes {dimension_semantics = [#tpu.dimension_semantics<parallel>, #tpu.dimension_semantics<parallel>, #tpu.dimension_semantics<arbitrary>], iteration_bounds = array<i64: 2, 1, 1>, scalar_prefetch = 0 : i64, scratch_operands = 1 : i64, tpu.core_type = #tpu.core_type<tc>, window_params = [{transform_indices = @transform_0, window_bounds = array<i64: 1024, 128>}, {transform_indices = @transform_1, window_bounds = array<i64: 128, 256>}, {transform_indices = @transform_2, window_bounds = array<i64: 1, 256>}, {transform_indices = @transform_3, window_bounds = array<i64: 1024, 256>}]} {
    %c0 = arith.constant 0 : index
    %c0_0 = arith.constant 0 : index
    %0 = vector.load %arg3[%c0, %c0_0] : memref<1024x128xbf16, #tpu.memory_space<vmem>>, vector<1024x128xbf16>
    %c0_1 = arith.constant 0 : index
    %c0_2 = arith.constant 0 : index
    %1 = vector.load %arg4[%c0_1, %c0_2] : memref<128x256xbf16, #tpu.memory_space<vmem>>, vector<128x256xbf16>
    %cst = arith.constant dense<0.000000e+00> : vector<1024x256xf32>
    %2 = tpu.matmul %0, %1, %cst {dimension_numbers = #tpu.dot_dimension_numbers<[1], [0], [0], [1], [0, 0, 1, 1], [], []>} : vector<1024x128xbf16>, vector<128x256xbf16>, vector<1024x256xf32> -> vector<1024x256xf32>
    %c0_i32 = arith.constant 0 : i32
    %3 = arith.cmpi eq, %arg2, %c0_i32 : i32
    %4 = arith.extui %3 : i1 to i32
    %c0_i32_3 = arith.constant 0 : i32
    %5 = arith.cmpi ne, %4, %c0_i32_3 : i32
    scf.if %5 {
      %c0_8 = arith.constant 0 : index
      %c0_9 = arith.constant 0 : index
      %12 = vector.load %arg7[%c0_8, %c0_9] : memref<1024x256xf32, #tpu.memory_space<vmem>>, vector<1024x256xf32>
      tpu.vector_store %arg7[%c0_8, %c0_9], %2 {strides = array<i32>} : memref<1024x256xf32, #tpu.memory_space<vmem>>, vector<1024x256xf32>,
    } else {
    }
    %c0_i32_4 = arith.constant 0 : i32
    %6 = arith.cmpi sgt, %arg2, %c0_i32_4 : i32
    %7 = arith.extui %6 : i1 to i32
    %c0_i32_5 = arith.constant 0 : i32
    %8 = arith.cmpi ne, %7, %c0_i32_5 : i32
    scf.if %8 {
      %c0_8 = arith.constant 0 : index
      %c0_9 = arith.constant 0 : index
      %12 = vector.load %arg7[%c0_8, %c0_9] : memref<1024x256xf32, #tpu.memory_space<vmem>>, vector<1024x256xf32>
      %13 = arith.addf %12, %2 : vector<1024x256xf32>
      %c0_10 = arith.constant 0 : index
      %c0_11 = arith.constant 0 : index
      %14 = vector.load %arg7[%c0_10, %c0_11] : memref<1024x256xf32, #tpu.memory_space<vmem>>, vector<1024x256xf32>
      tpu.vector_store %arg7[%c0_10, %c0_11], %13 {strides = array<i32>} : memref<1024x256xf32, #tpu.memory_space<vmem>>, vector<1024x256xf32>,
    } else {
    }
    %c0_i32_6 = arith.constant 0 : i32
    %9 = arith.cmpi eq, %arg2, %c0_i32_6 : i32
    %10 = arith.extui %9 : i1 to i32
    %c0_i32_7 = arith.constant 0 : i32
    %11 = arith.cmpi ne, %10, %c0_i32_7 : i32
    scf.if %11 {
      %c0_8 = arith.constant 0 : index
      %c0_9 = arith.constant 0 : index
      %12 = vector.load %arg7[%c0_8, %c0_9] : memref<1024x256xf32, #tpu.memory_space<vmem>>, vector<1024x256xf32>
      %c0_10 = arith.constant 0 : index
      %c0_11 = arith.constant 0 : index
      %13 = vector.load %arg5[%c0_10, %c0_11] : memref<1x256xf32, #tpu.memory_space<vmem>>, vector<1x256xf32>
      %14 = vector.broadcast %13 : vector<1x256xf32> to vector<1024x256xf32>
      %15 = arith.addf %12, %14 : vector<1024x256xf32>
      %cst_12 = arith.constant 0.000000e+00 : f32
      %16 = vector.broadcast %cst_12 : f32 to vector<1024x256xf32>
      %17 = arith.cmpf oge, %15, %16 : vector<1024x256xf32>
      %cst_13 = arith.constant 2.000000e-01 : f32
      %18 = vector.broadcast %cst_13 : f32 to vector<1024x256xf32>
      %19 = arith.mulf %18, %15 : vector<1024x256xf32>
      %20 = arith.select %17, %15, %19 : vector<1024x256xi1>, vector<1024x256xf32>
      %21 = arith.truncf %20 : vector<1024x256xf32> to vector<1024x256xbf16>
      %c0_14 = arith.constant 0 : index
      %c0_15 = arith.constant 0 : index
      %22 = vector.load %arg6[%c0_14, %c0_15] : memref<1024x256xbf16, #tpu.memory_space<vmem>>, vector<1024x256xbf16>
      tpu.vector_store %arg6[%c0_14, %c0_15], %21 {strides = array<i32>} : memref<1024x256xbf16, #tpu.memory_space<vmem>>, vector<1024x256xbf16>,
    } else {
    }
    return
  }
  func.func @transform_0(%arg0: i32, %arg1: i32, %arg2: i32) -> (i32, i32) {
    %c0_i32 = arith.constant 0 : i32
    return %arg0, %arg2 : i32, i32
  }
  func.func @transform_1(%arg0: i32, %arg1: i32, %arg2: i32) -> (i32, i32) {
    %c0_i32 = arith.constant 0 : i32
    return %arg2, %arg1 : i32, i32
  }
  func.func @transform_2(%arg0: i32, %arg1: i32, %arg2: i32) -> (i32, i32) {
    %c0_i32 = arith.constant 0 : i32
    %c0_i32_0 = arith.constant 0 : i32
    return %c0_i32, %arg1 : i32, i32
  }
  func.func @transform_3(%arg0: i32, %arg1: i32, %arg2: i32) -> (i32, i32) {
    %c0_i32 = arith.constant 0 : i32
    return %arg0, %arg1 : i32, i32
  }
}

</mosaic_0001>

<llo_original>
// kernel: tpu_custom_call.1
$region0: #{tpu_custom_call.1}
  #allocation0 [shape = 'u32[]', space=smem, size = 0x4, offset = 0x4, fixed_abs, tag = 'smem constant byte address 0x4 - core index']
  #allocation1 [shape = 'u32[144,128]{1,0:T(1,128)}', space=vmem, size = 0x12000, scoped, tag = 'internal scratch']
  #allocation2 [shape = 'f32[1024,256]{1,0:T(8,128)}', space=vmem, size = 0x100000, scoped, tag = 'scratch operand']
  %s0 = inlined_call_operand.hbm [shape: bf16[2048,128], index: 0, kind: input, shape index: {}]
  %s1 = inlined_call_operand.hbm [shape: bf16[128,256], index: 1, kind: input, shape index: {}]
  %s2 = inlined_call_operand.vmem [shape: f32[1,256], index: 2, kind: input, shape index: {}]
  %s3 = inlined_call_operand.hbm [shape: bf16[2048,256], index: 3, kind: output, shape index: {}]
  %s4 = sld [smem:[#allocation0]]
  $region65: #{tpu_custom_call.1} parent=0
    _
  %s6 = ssub.s32 1, %s4
  %s7 = scalar_select 0, %s6, %s4
  $region1: #{tpu_custom_call.1} parent=0
    #allocation3 [shape = 'u8[524288]{0}', space=vmem, size = 0x80000, scoped, tag = 'input window, operand 0']
    #allocation4 [shape = 's32[2]{0}', space=sflag, size = 0x8, scoped, tag = 'scoped memory for tpu_custom_call.1']
    #allocation5 [shape = 's32[2]{0}', space=sflag, size = 0x8, scoped, tag = 'scoped memory for tpu_custom_call.1']
    #allocation6 [shape = 'u8[65536]{0}', space=vmem, size = 0x10000, scoped, tag = 'input window, operand 1, single buffered']
    #allocation7 [shape = 's32[1]{0}', space=sflag, size = 0x4, scoped, tag = 'scoped memory for tpu_custom_call.1']
    #allocation8 [shape = 'u8[1048576]{0}', space=vmem, size = 0x100000, scoped, tag = 'output window, operand 0']
    %8 = vsyncpa [#allocation4], 0
    %s9 = scalar_lea.sflag [#allocation4], 1
    %10 = vsyncpa %s9, 0
    %11 = vsyncpa [#allocation7], 0
    %12 = vsyncpa [#allocation5], 0
    %s13 = scalar_lea.sflag [#allocation5], 1
    %14 = vsyncpa %s13, 0
    loop: start=0, step=1, limit=4
    $region2: #{tpu_custom_call.1} parent=1 // loop_pre_header
      _
    $region3: #{tpu_custom_call.1} parent=1 // loop_header
      %s16 = sphi 0, %s20
      %p17 = scmp.ge.s32.totalorder %s16, 4
      %s23 = sphi 0, %s42
      %s24 = sphi 0, %s38
      %s25 = sphi 0, %s34
      %s26 = sphi 0, %s23
      %s27 = sphi 0, %s24
      %s28 = sphi 0, %s25
      %s29 = sphi 0, %s26
      %s30 = sphi 0, %s27
      %s31 = sphi 0, %s28
      %s47 = sphi 0, %s49
      %s50 = sphi 0, %s47
      %s51 = sphi 0, %s50
      %s67 = sphi 0, %s51
      %s75 = sphi 0, %s77
      %s78 = sphi 0, %s75
      %s79 = sphi 0, %s78
      %s95 = sphi 0, %s79
      %s101 = sphi 0, %s103
      %s104 = sphi 0, %s101
      %s105 = sphi 0, %s104
      %s121 = sphi 0, %s105
      %s129 = sphi 0, %s131
      %s132 = sphi 0, %s129
      %s133 = sphi 0, %s132
      %s149 = sphi 0, %s133
    $region4: #{tpu_custom_call.1} parent=1 // loop_header_branch
      %19 = sbr.rel (%p17) target = $region8
    $region5: #{tpu_custom_call.1} parent=1 // loop_body
      %s21 = ssub.s32 %s16, 1
      %s22 = ssub.s32 %s16, 2
      %s32 = sadd.s32 1, %s25
      %p33 = scmp.ge.s32.totalorder %s32, 1
      %s34 = scalar_select %p33, 0, %s32
      %s35 = sadd.s32 1, %s24
      %s36 = scalar_select %p33, %s35, %s24
      %p37 = scmp.ge.s32.totalorder %s36, 1
      %s38 = scalar_select %p37, 0, %s36
      %s39 = sadd.s32 1, %s23
      %s40 = scalar_select %p37, %s39, %s23
      %p41 = scmp.ge.s32.totalorder %s40, 2
      %s42 = scalar_select %p41, 0, %s40
      %s43 = ssub.s32 %s23, %s42
      %s44 = ssub.s32 %s25, %s34
      %s45 = sor.u32 %s43, %s44
      %p46 = scmp.eq.s32.totalorder %s45, 0
      %s48 = sadd.s32 %s47, 1
      %s49 = scalar_select %p46, %s47, %s48
      %p52 = pneg %p46
      %p53 = scmp.eq.s32.totalorder %s16, 1
      %p54 = por %p52, %p53
      %p55 = scmp.ne.s32.totalorder %s47, %s50
      %p56 = scmp.eq.s32.totalorder %s16, 0
      %p57 = por %p55, %p56
      %p58 = scmp.ne.s32.totalorder %s47, %s50
      %p59 = scmp.eq.s32.totalorder %s21, 1
      %p60 = por %p58, %p59
      %p61 = scmp.ne.s32.totalorder %s50, %s51
      %p62 = scmp.eq.s32.totalorder %s21, 0
      %p63 = por %p61, %p62
      %p64 = scmp.ne.s32.totalorder %s50, %s51
      %p65 = scmp.eq.s32.totalorder %s22, 1
      %p66 = por %p64, %p65
      %p68 = scmp.ne.s32.totalorder %s51, %s67
      %p69 = scmp.eq.s32.totalorder %s22, 0
      %p70 = por %p68, %p69
      %s71 = ssub.s32 %s25, %s34
      %s72 = ssub.s32 %s24, %s38
      %s73 = sor.u32 %s71, %s72
      %p74 = scmp.eq.s32.totalorder %s73, 0
      %s76 = sadd.s32 %s75, 1
      %s77 = scalar_select %p74, %s75, %s76
      %p80 = pneg %p74
      %p81 = scmp.eq.s32.totalorder %s16, 1
      %p82 = por %p80, %p81
      %p83 = scmp.ne.s32.totalorder %s75, %s78
      %p84 = scmp.eq.s32.totalorder %s16, 0
      %p85 = por %p83, %p84
      %p86 = scmp.ne.s32.totalorder %s75, %s78
      %p87 = scmp.eq.s32.totalorder %s21, 1
      %p88 = por %p86, %p87
      %p89 = scmp.ne.s32.totalorder %s78, %s79
      %p90 = scmp.eq.s32.totalorder %s21, 0
      %p91 = por %p89, %p90
      %p92 = scmp.ne.s32.totalorder %s78, %s79
      %p93 = scmp.eq.s32.totalorder %s22, 1
      %p94 = por %p92, %p93
      %p96 = scmp.ne.s32.totalorder %s79, %s95
      %p97 = scmp.eq.s32.totalorder %s22, 0
      %p98 = por %p96, %p97
      %s99 = ssub.s32 %s24, %s38
      %p100 = scmp.eq.s32.totalorder %s99, 0
      %s102 = sadd.s32 %s101, 1
      %s103 = scalar_select %p100, %s101, %s102
      %p106 = pneg %p100
      %p107 = scmp.eq.s32.totalorder %s16, 1
      %p108 = por %p106, %p107
      %p109 = scmp.ne.s32.totalorder %s101, %s104
      %p110 = scmp.eq.s32.totalorder %s16, 0
      %p111 = por %p109, %p110
      %p112 = scmp.ne.s32.totalorder %s101, %s104
      %p113 = scmp.eq.s32.totalorder %s21, 1
      %p114 = por %p112, %p113
      %p115 = scmp.ne.s32.totalorder %s104, %s105
      %p116 = scmp.eq.s32.totalorder %s21, 0
      %p117 = por %p115, %p116
      %p118 = scmp.ne.s32.totalorder %s104, %s105
      %p119 = scmp.eq.s32.totalorder %s22, 1
      %p120 = por %p118, %p119
      %p122 = scmp.ne.s32.totalorder %s105, %s121
      %p123 = scmp.eq.s32.totalorder %s22, 0
      %p124 = por %p122, %p123
      %s125 = ssub.s32 %s23, %s42
      %s126 = ssub.s32 %s24, %s38
      %s127 = sor.u32 %s125, %s126
      %p128 = scmp.eq.s32.totalorder %s127, 0
      %s130 = sadd.s32 %s129, 1
      %s131 = scalar_select %p128, %s129, %s130
      %p134 = pneg %p128
      %p135 = scmp.eq.s32.totalorder %s16, 1
      %p136 = por %p134, %p135
      %p137 = scmp.ne.s32.totalorder %s129, %s132
      %p138 = scmp.eq.s32.totalorder %s16, 0
      %p139 = por %p137, %p138
      %p140 = scmp.ne.s32.totalorder %s129, %s132
      %p141 = scmp.eq.s32.totalorder %s21, 1
      %p142 = por %p140, %p141
      %p143 = scmp.ne.s32.totalorder %s132, %s133
      %p144 = scmp.eq.s32.totalorder %s21, 0
      %p145 = por %p143, %p144
      %p146 = scmp.ne.s32.totalorder %s132, %s133
      %p147 = scmp.eq.s32.totalorder %s22, 1
      %p148 = por %p146, %p147
      %p150 = scmp.ne.s32.totalorder %s133, %s149
      %p151 = scmp.eq.s32.totalorder %s22, 0
      %p152 = por %p150, %p151
      %p153 = scmp.le.s32.totalorder 1, %s16
      %p154 = scmp.lt.s32.totalorder %s16, 3
      %p155 = pnand %p153, %p154
      %p156 = pneg %p155
      // Predicated region
      $region9: #{tpu_custom_call.1} parent=5 // pred_check
        _
      $region10: #{tpu_custom_call.1} parent=5 // pred_check_branch
        %158 = sbr.rel (%p155) target = $region12
      $region11: #{tpu_custom_call.1} parent=5 // pred_region
        %s159 = ssub.s32 %s16, 1
        // Predicated region
        $region13: #{tpu_custom_call.1} parent=11 // pred_check
          %p160 = pneg %p91
        $region14: #{tpu_custom_call.1} parent=11 // pred_check_branch
          %162 = sbr.rel (%p160) target = $region16
        $region15: #{tpu_custom_call.1} parent=11 // pred_region
          %s163 = smul.u32 16, %s28
          %s164 = smul.u32 2, %s27
          %s166 = ssub.s32 2048, 2048
          %167 = vsyncadd [#allocation7], %s166
          %s168 = smul.addr %s163, 2
          %s169 = sadd.s32 %s164, %s168
          %s170 = smul.addr %s169, 64
          %s171 = scalar_lea.hbm %s1, %s170
          %s172 = sshll.u32 [#allocation6], 4
          %s173 = int_to_ptr.vmem [resolvable:$true] %s172
          %178 = dma.hbm_to_vmem [thread:$0]  %s171, 2048, %s173, [#allocation7], 128, 128, 8
        $region16: #{tpu_custom_call.1} parent=11 // pred_fallthru
          _
        // Predicated region
        $region17: #{tpu_custom_call.1} parent=11 // pred_check
          %p179 = pneg %p117
        $region18: #{tpu_custom_call.1} parent=11 // pred_check_branch
          %181 = sbr.rel (%p179) target = $region20
        $region19: #{tpu_custom_call.1} parent=11 // pred_region
          %s182 = smul.u32 2, %s27
          %p183 = scmp.lt.s32.totalorder %s182, 1
          %s184 = scalar_select %p183, %s182, 1
          %s185 = scalar_lea.vmem %s2, %s184
          %s186 = smul.u32 2, %s27
        $region20: #{tpu_custom_call.1} parent=11 // pred_fallthru
          _
      $region12: #{tpu_custom_call.1} parent=5 // pred_fallthru
        _
      %p187 = scmp.lt.s32.totalorder %s16, 2
      // Predicated region
      $region21: #{tpu_custom_call.1} parent=5 // pred_check
        %p188 = pneg %p187
      $region22: #{tpu_custom_call.1} parent=5 // pred_check_branch
        %190 = sbr.rel (%p188) target = $region24
      $region23: #{tpu_custom_call.1} parent=5 // pred_region
        // Predicated region
        $region25: #{tpu_custom_call.1} parent=23 // pred_check
          %p191 = pneg %p57
        $region26: #{tpu_custom_call.1} parent=23 // pred_check_branch
          %193 = sbr.rel (%p191) target = $region28
        $region27: #{tpu_custom_call.1} parent=23 // pred_region
          %s194 = sand.u32 %s47, 1
          %s195 = scalar_lea.sflag [#allocation4], %s194
          %s196 = sand.u32 %s47, 1
          %s197 = smul.addr %s196, 512
          %s198 = scalar_lea.vmem [#allocation3], %s197
          %s199 = smul.u32 128, %s23
          %s201 = ssub.s32 8192, 8192
          %202 = vsyncadd %s195, %s201
          %s203 = sadd.s32 %s25, %s199
          %s204 = smul.addr %s203, 64
          %s205 = scalar_lea.hbm %s0, %s204
          %s206 = sshll.u32 %s198, 4
          %s207 = int_to_ptr.vmem [resolvable:$true] %s206
          %212 = dma.hbm_to_vmem [thread:$0]  %s205, 8192, %s207, %s195, 64, 64, 4
        $region28: #{tpu_custom_call.1} parent=23 // pred_fallthru
          _
      $region24: #{tpu_custom_call.1} parent=5 // pred_fallthru
        _
      %p213 = scmp.le.s32.totalorder 1, %s16
      %p214 = scmp.lt.s32.totalorder %s16, 3
      %p215 = pnand %p213, %p214
      %p216 = pneg %p215
      // Predicated region
      $region29: #{tpu_custom_call.1} parent=5 // pred_check
        _
      $region30: #{tpu_custom_call.1} parent=5 // pred_check_branch
        %218 = sbr.rel (%p215) target = $region32
      $region31: #{tpu_custom_call.1} parent=5 // pred_region
        %s219 = ssub.s32 %s16, 1
        %s220 = sand.u32 %s50, 1
        %s221 = scalar_lea.sflag [#allocation4], %s220
        %s222 = sand.u32 %s50, 1
        %s223 = smul.addr %s222, 512
        %s224 = scalar_lea.vmem [#allocation3], %s223
        // Predicated region
        $region33: #{tpu_custom_call.1} parent=31 // pred_check
          %p225 = pneg %p63
        $region34: #{tpu_custom_call.1} parent=31 // pred_check_branch
          %227 = sbr.rel (%p225) target = $region36
        $region35: #{tpu_custom_call.1} parent=31 // pred_region
          %228 = dma.done %s221, 8192
        $region36: #{tpu_custom_call.1} parent=31 // pred_fallthru
          _
        // Predicated region
        $region37: #{tpu_custom_call.1} parent=31 // pred_check
          %p229 = pneg %p91
        $region38: #{tpu_custom_call.1} parent=31 // pred_check_branch
          %231 = sbr.rel (%p229) target = $region40
        $region39: #{tpu_custom_call.1} parent=31 // pred_region
          %232 = dma.done [#allocation7], 2048
        $region40: #{tpu_custom_call.1} parent=31 // pred_fallthru
          _
        %s233 = sand.u32 %s50, 1
        %s234 = scalar_lea.sflag [#allocation4], %s233
        %s235 = sand.u32 %s50, 1
        %s236 = smul.addr %s235, 512
        %s237 = scalar_lea.vmem [#allocation3], %s236
        %p238 = pneg %p63
        %p239 = pneg %p60
        %p240 = pneg %p91
        %p241 = pneg %p88
        %s242 = smul.u32 2, %s27
        %p243 = scmp.lt.s32.totalorder %s242, 1
        %s244 = scalar_select %p243, %s242, 1
        %s245 = scalar_lea.vmem %s2, %s244
        %p246 = pneg %p117
        %p247 = pneg %p114
        %p248 = pneg %p145
        %p249 = pneg %p142
        %s250 = sand.u32 %s132, 1
        %s251 = scalar_lea.sflag [#allocation5], %s250
        %s252 = sand.u32 %s132, 1
        %s253 = smul.addr %s252, 1024
        %s254 = scalar_lea.vmem [#allocation8], %s253
        %s255 = smul.u32 128, %s26
        %s256 = smul.u32 16, %s28
        %s257 = smul.u32 2, %s27
        %s258 = smul.u32 2, %s27
        %p259 = scmp.lt.s32.totalorder %s258, 1
        %s260 = scalar_select %p259, %s258, 1
        %s261 = scalar_lea.vmem %s2, %s260
        %s262 = smul.u32 2, %s27
        %s263 = smul.u32 128, %s26
        %s264 = smul.u32 2, %s27
        %v266 = vld [vmem:[%s224] sm:$0xf]
        %v267 = vld [vmem:[%s224 + $0x4] sm:$0xf]
        %v268 = vld [vmem:[%s224 + $0x8] sm:$0xf]
        %v269 = vld [vmem:[%s224 + $0xc] sm:$0xf]
        %v270 = vld [vmem:[%s224 + $0x10] sm:$0xf]
        %v271 = vld [vmem:[%s224 + $0x14] sm:$0xf]
        %v272 = vld [vmem:[%s224 + $0x18] sm:$0xf]
        %v273 = vld [vmem:[%s224 + $0x1c] sm:$0xf]
        %v274 = vld [vmem:[%s224 + $0x20] sm:$0xf]
        %v275 = vld [vmem:[%s224 + $0x24] sm:$0xf]
        %v276 = vld [vmem:[%s224 + $0x28] sm:$0xf]
        %v277 = vld [vmem:[%s224 + $0x2c] sm:$0xf]
        %v278 = vld [vmem:[%s224 + $0x30] sm:$0xf]
        %v279 = vld [vmem:[%s224 + $0x34] sm:$0xf]
        %v280 = vld [vmem:[%s224 + $0x38] sm:$0xf]
        %v281 = vld [vmem:[%s224 + $0x3c] sm:$0xf]
        %v282 = vld [vmem:[%s224 + $0x40] sm:$0xf]
        %v283 = vld [vmem:[%s224 + $0x44] sm:$0xf]
        %v284 = vld [vmem:[%s224 + $0x48] sm:$0xf]
        %v285 = vld [vmem:[%s224 + $0x4c] sm:$0xf]
        %v286 = vld [vmem:[%s224 + $0x50] sm:$0xf]
        %v287 = vld [vmem:[%s224 + $0x54] sm:$0xf]
        %v288 = vld [vmem:[%s224 + $0x58] sm:$0xf]
        %v289 = vld [vmem:[%s224 + $0x5c] sm:$0xf]
        %v290 = vld [vmem:[%s224 + $0x60] sm:$0xf]
        %v291 = vld [vmem:[%s224 + $0x64] sm:$0xf]
        %v292 = vld [vmem:[%s224 + $0x68] sm:$0xf]
        %v293 = vld [vmem:[%s224 + $0x6c] sm:$0xf]
        %v294 = vld [vmem:[%s224 + $0x70] sm:$0xf]
        %v295 = vld [vmem:[%s224 + $0x74] sm:$0xf]
        %v296 = vld [vmem:[%s224 + $0x78] sm:$0xf]
        %v297 = vld [vmem:[%s224 + $0x7c] sm:$0xf]
        %v298 = vld [vmem:[%s224 + $0x80] sm:$0xf]
        %v299 = vld [vmem:[%s224 + $0x84] sm:$0xf]
        %v300 = vld [vmem:[%s224 + $0x88] sm:$0xf]
        %v301 = vld [vmem:[%s224 + $0x8c] sm:$0xf]
        %v302 = vld [vmem:[%s224 + $0x90] sm:$0xf]
        %v303 = vld [vmem:[%s224 + $0x94] sm:$0xf]
        %v304 = vld [vmem:[%s224 + $0x98] sm:$0xf]
        %v305 = vld [vmem:[%s224 + $0x9c] sm:$0xf]
        %v306 = vld [vmem:[%s224 + $0xa0] sm:$0xf]
        %v307 = vld [vmem:[%s224 + $0xa4] sm:$0xf]
        %v308 = vld [vmem:[%s224 + $0xa8] sm:$0xf]
        %v309 = vld [vmem:[%s224 + $0xac] sm:$0xf]
        %v310 = vld [vmem:[%s224 + $0xb0] sm:$0xf]
        %v311 = vld [vmem:[%s224 + $0xb4] sm:$0xf]
        %v312 = vld [vmem:[%s224 + $0xb8] sm:$0xf]
        %v313 = vld [vmem:[%s224 + $0xbc] sm:$0xf]
        %v314 = vld [vmem:[%s224 + $0xc0] sm:$0xf]
        %v315 = vld [vmem:[%s224 + $0xc4] sm:$0xf]
        %v316 = vld [vmem:[%s224 + $0xc8] sm:$0xf]
        %v317 = vld [vmem:[%s224 + $0xcc] sm:$0xf]
        %v318 = vld [vmem:[%s224 + $0xd0] sm:$0xf]
        %v319 = vld [vmem:[%s224 + $0xd4] sm:$0xf]
        %v320 = vld [vmem:[%s224 + $0xd8] sm:$0xf]
        %v321 = vld [vmem:[%s224 + $0xdc] sm:$0xf]
        %v322 = vld [vmem:[%s224 + $0xe0] sm:$0xf]
        %v323 = vld [vmem:[%s224 + $0xe4] sm:$0xf]
        %v324 = vld [vmem:[%s224 + $0xe8] sm:$0xf]
        %v325 = vld [vmem:[%s224 + $0xec] sm:$0xf]
        %v326 = vld [vmem:[%s224 + $0xf0] sm:$0xf]
        %v327 = vld [vmem:[%s224 + $0xf4] sm:$0xf]
        %v328 = vld [vmem:[%s224 + $0xf8] sm:$0xf]
        %v329 = vld [vmem:[%s224 + $0xfc] sm:$0xf]
        %v330 = vld [vmem:[%s224 + $0x100] sm:$0xf]
        %v331 = vld [vmem:[%s224 + $0x104] sm:$0xf]
        %v332 = vld [vmem:[%s224 + $0x108] sm:$0xf]
        %v333 = vld [vmem:[%s224 + $0x10c] sm:$0xf]
        %v334 = vld [vmem:[%s224 + $0x110] sm:$0xf]
        %v335 = vld [vmem:[%s224 + $0x114] sm:$0xf]
        %v336 = vld [vmem:[%s224 + $0x118] sm:$0xf]
        %v337 = vld [vmem:[%s224 + $0x11c] sm:$0xf]
        %v338 = vld [vmem:[%s224 + $0x120] sm:$0xf]
        %v339 = vld [vmem:[%s224 + $0x124] sm:$0xf]
        %v340 = vld [vmem:[%s224 + $0x128] sm:$0xf]
        %v341 = vld [vmem:[%s224 + $0x12c] sm:$0xf]
        %v342 = vld [vmem:[%s224 + $0x130] sm:$0xf]
        %v343 = vld [vmem:[%s224 + $0x134] sm:$0xf]
        %v344 = vld [vmem:[%s224 + $0x138] sm:$0xf]
        %v345 = vld [vmem:[%s224 + $0x13c] sm:$0xf]
        %v346 = vld [vmem:[%s224 + $0x140] sm:$0xf]
        %v347 = vld [vmem:[%s224 + $0x144] sm:$0xf]
        %v348 = vld [vmem:[%s224 + $0x148] sm:$0xf]
        %v349 = vld [vmem:[%s224 + $0x14c] sm:$0xf]
        %v350 = vld [vmem:[%s224 + $0x150] sm:$0xf]
        %v351 = vld [vmem:[%s224 + $0x154] sm:$0xf]
        %v352 = vld [vmem:[%s224 + $0x158] sm:$0xf]
        %v353 = vld [vmem:[%s224 + $0x15c] sm:$0xf]
        %v354 = vld [vmem:[%s224 + $0x160] sm:$0xf]
        %v355 = vld [vmem:[%s224 + $0x164] sm:$0xf]
        %v356 = vld [vmem:[%s224 + $0x168] sm:$0xf]
        %v357 = vld [vmem:[%s224 + $0x16c] sm:$0xf]
        %v358 = vld [vmem:[%s224 + $0x170] sm:$0xf]
        %v359 = vld [vmem:[%s224 + $0x174] sm:$0xf]
        %v360 = vld [vmem:[%s224 + $0x178] sm:$0xf]
        %v361 = vld [vmem:[%s224 + $0x17c] sm:$0xf]
        %v362 = vld [vmem:[%s224 + $0x180] sm:$0xf]
        %v363 = vld [vmem:[%s224 + $0x184] sm:$0xf]
        %v364 = vld [vmem:[%s224 + $0x188] sm:$0xf]
        %v365 = vld [vmem:[%s224 + $0x18c] sm:$0xf]
        %v366 = vld [vmem:[%s224 + $0x190] sm:$0xf]
        %v367 = vld [vmem:[%s224 + $0x194] sm:$0xf]
        %v368 = vld [vmem:[%s224 + $0x198] sm:$0xf]
        %v369 = vld [vmem:[%s224 + $0x19c] sm:$0xf]
        %v370 = vld [vmem:[%s224 + $0x1a0] sm:$0xf]
        %v371 = vld [vmem:[%s224 + $0x1a4] sm:$0xf]
        %v372 = vld [vmem:[%s224 + $0x1a8] sm:$0xf]
        %v373 = vld [vmem:[%s224 + $0x1ac] sm:$0xf]
        %v374 = vld [vmem:[%s224 + $0x1b0] sm:$0xf]
        %v375 = vld [vmem:[%s224 + $0x1b4] sm:$0xf]
        %v376 = vld [vmem:[%s224 + $0x1b8] sm:$0xf]
        %v377 = vld [vmem:[%s224 + $0x1bc] sm:$0xf]
        %v378 = vld [vmem:[%s224 + $0x1c0] sm:$0xf]
        %v379 = vld [vmem:[%s224 + $0x1c4] sm:$0xf]
        %v380 = vld [vmem:[%s224 + $0x1c8] sm:$0xf]
        %v381 = vld [vmem:[%s224 + $0x1cc] sm:$0xf]
        %v382 = vld [vmem:[%s224 + $0x1d0] sm:$0xf]
        %v383 = vld [vmem:[%s224 + $0x1d4] sm:$0xf]
        %v384 = vld [vmem:[%s224 + $0x1d8] sm:$0xf]
        %v385 = vld [vmem:[%s224 + $0x1dc] sm:$0xf]
        %v386 = vld [vmem:[%s224 + $0x1e0] sm:$0xf]
        %v387 = vld [vmem:[%s224 + $0x1e4] sm:$0xf]
        %v388 = vld [vmem:[%s224 + $0x1e8] sm:$0xf]
        %v389 = vld [vmem:[%s224 + $0x1ec] sm:$0xf]
        %v390 = vld [vmem:[%s224 + $0x1f0] sm:$0xf]
        %v391 = vld [vmem:[%s224 + $0x1f4] sm:$0xf]
        %v392 = vld [vmem:[%s224 + $0x1f8] sm:$0xf]
        %v393 = vld [vmem:[%s224 + $0x1fc] sm:$0xf]
        %v394 = vld [vmem:[#allocation6] sm:$0xff]
        %v395 = vld [vmem:[#allocation6 + $0x8] sm:$0xff]
        %v396 = vld [vmem:[#allocation6 + $0x10] sm:$0xff]
        %v397 = vld [vmem:[#allocation6 + $0x18] sm:$0xff]
        %v398 = vld [vmem:[#allocation6 + $0x20] sm:$0xff]
        %v399 = vld [vmem:[#allocation6 + $0x28] sm:$0xff]
        %v400 = vld [vmem:[#allocation6 + $0x30] sm:$0xff]
        %v401 = vld [vmem:[#allocation6 + $0x38] sm:$0xff]
        %v402 = vld [vmem:[#allocation6 + $0x40] sm:$0xff]
        %v403 = vld [vmem:[#allocation6 + $0x48] sm:$0xff]
        %v404 = vld [vmem:[#allocation6 + $0x50] sm:$0xff]
        %v405 = vld [vmem:[#allocation6 + $0x58] sm:$0xff]
        %v406 = vld [vmem:[#allocation6 + $0x60] sm:$0xff]
        %v407 = vld [vmem:[#allocation6 + $0x68] sm:$0xff]
        %v408 = vld [vmem:[#allocation6 + $0x70] sm:$0xff]
        %v409 = vld [vmem:[#allocation6 + $0x78] sm:$0xff]
        %v538 = vunpack.c.l.b16 %v266
        %v539 = vunpack.c.l.b16 %v267
        %v540 = vunpack.c.l.b16 %v268
        %v541 = vunpack.c.l.b16 %v269
        %v542 = vunpack.c.l.b16 %v270
        %v543 = vunpack.c.l.b16 %v271
        %v544 = vunpack.c.l.b16 %v272
        %v545 = vunpack.c.l.b16 %v273
        %v546 = vunpack.c.l.b16 %v274
        %v547 = vunpack.c.l.b16 %v275
        %v548 = vunpack.c.l.b16 %v276
        %v549 = vunpack.c.l.b16 %v277
        %v550 = vunpack.c.l.b16 %v278
        %v551 = vunpack.c.l.b16 %v279
        %v552 = vunpack.c.l.b16 %v280
        %v553 = vunpack.c.l.b16 %v281
        %v554 = vunpack.c.l.b16 %v282
        %v555 = vunpack.c.l.b16 %v283
        %v556 = vunpack.c.l.b16 %v284
        %v557 = vunpack.c.l.b16 %v285
        %v558 = vunpack.c.l.b16 %v286
        %v559 = vunpack.c.l.b16 %v287
        %v560 = vunpack.c.l.b16 %v288
        %v561 = vunpack.c.l.b16 %v289
        %v562 = vunpack.c.l.b16 %v290
        %v563 = vunpack.c.l.b16 %v291
        %v564 = vunpack.c.l.b16 %v292
        %v565 = vunpack.c.l.b16 %v293
        %v566 = vunpack.c.l.b16 %v294
        %v567 = vunpack.c.l.b16 %v295
        %v568 = vunpack.c.l.b16 %v296
        %v569 = vunpack.c.l.b16 %v297
        %v570 = vunpack.c.l.b16 %v298
        %v571 = vunpack.c.l.b16 %v299
        %v572 = vunpack.c.l.b16 %v300
        %v573 = vunpack.c.l.b16 %v301
        %v574 = vunpack.c.l.b16 %v302
        %v575 = vunpack.c.l.b16 %v303
        %v576 = vunpack.c.l.b16 %v304
        %v577 = vunpack.c.l.b16 %v305
        %v578 = vunpack.c.l.b16 %v306
        %v579 = vunpack.c.l.b16 %v307
        %v580 = vunpack.c.l.b16 %v308
        %v581 = vunpack.c.l.b16 %v309
        %v582 = vunpack.c.l.b16 %v310
        %v583 = vunpack.c.l.b16 %v311
        %v584 = vunpack.c.l.b16 %v312
        %v585 = vunpack.c.l.b16 %v313
        %v586 = vunpack.c.l.b16 %v314
        %v587 = vunpack.c.l.b16 %v315
        %v588 = vunpack.c.l.b16 %v316
        %v589 = vunpack.c.l.b16 %v317
        %v590 = vunpack.c.l.b16 %v318
        %v591 = vunpack.c.l.b16 %v319
        %v592 = vunpack.c.l.b16 %v320
        %v593 = vunpack.c.l.b16 %v321
        %v594 = vunpack.c.l.b16 %v322
        %v595 = vunpack.c.l.b16 %v323
        %v596 = vunpack.c.l.b16 %v324
        %v597 = vunpack.c.l.b16 %v325
        %v598 = vunpack.c.l.b16 %v326
        %v599 = vunpack.c.l.b16 %v327
        %v600 = vunpack.c.l.b16 %v328
        %v601 = vunpack.c.l.b16 %v329
        %v602 = vunpack.c.l.b16 %v330
        %v603 = vunpack.c.l.b16 %v331
        %v604 = vunpack.c.l.b16 %v332
        %v605 = vunpack.c.l.b16 %v333
        %v606 = vunpack.c.l.b16 %v334
        %v607 = vunpack.c.l.b16 %v335
        %v608 = vunpack.c.l.b16 %v336
        %v609 = vunpack.c.l.b16 %v337
        %v610 = vunpack.c.l.b16 %v338
        %v611 = vunpack.c.l.b16 %v339
        %v612 = vunpack.c.l.b16 %v340
        %v613 = vunpack.c.l.b16 %v341
        %v614 = vunpack.c.l.b16 %v342
        %v615 = vunpack.c.l.b16 %v343
        %v616 = vunpack.c.l.b16 %v344
        %v617 = vunpack.c.l.b16 %v345
        %v618 = vunpack.c.l.b16 %v346
        %v619 = vunpack.c.l.b16 %v347
        %v620 = vunpack.c.l.b16 %v348
        %v621 = vunpack.c.l.b16 %v349
        %v622 = vunpack.c.l.b16 %v350
        %v623 = vunpack.c.l.b16 %v351
        %v624 = vunpack.c.l.b16 %v352
        %v625 = vunpack.c.l.b16 %v353
        %v626 = vunpack.c.l.b16 %v354
        %v627 = vunpack.c.l.b16 %v355
        %v628 = vunpack.c.l.b16 %v356
        %v629 = vunpack.c.l.b16 %v357
        %v630 = vunpack.c.l.b16 %v358
        %v631 = vunpack.c.l.b16 %v359
        %v632 = vunpack.c.l.b16 %v360
        %v633 = vunpack.c.l.b16 %v361
        %v634 = vunpack.c.l.b16 %v362
        %v635 = vunpack.c.l.b16 %v363
        %v636 = vunpack.c.l.b16 %v364
        %v637 = vunpack.c.l.b16 %v365
        %v638 = vunpack.c.l.b16 %v366
        %v639 = vunpack.c.l.b16 %v367
        %v640 = vunpack.c.l.b16 %v368
        %v641 = vunpack.c.l.b16 %v369
        %v642 = vunpack.c.l.b16 %v370
        %v643 = vunpack.c.l.b16 %v371
        %v644 = vunpack.c.l.b16 %v372
        %v645 = vunpack.c.l.b16 %v373
        %v646 = vunpack.c.l.b16 %v374
        %v647 = vunpack.c.l.b16 %v375
        %v648 = vunpack.c.l.b16 %v376
        %v649 = vunpack.c.l.b16 %v377
        %v650 = vunpack.c.l.b16 %v378
        %v651 = vunpack.c.l.b16 %v379
        %v652 = vunpack.c.l.b16 %v380
        %v653 = vunpack.c.l.b16 %v381
        %v654 = vunpack.c.l.b16 %v382
        %v655 = vunpack.c.l.b16 %v383
        %v656 = vunpack.c.l.b16 %v384
        %v657 = vunpack.c.l.b16 %v385
        %v658 = vunpack.c.l.b16 %v386
        %v659 = vunpack.c.l.b16 %v387
        %v660 = vunpack.c.l.b16 %v388
        %v661 = vunpack.c.l.b16 %v389
        %v662 = vunpack.c.l.b16 %v390
        %v663 = vunpack.c.l.b16 %v391
        %v664 = vunpack.c.l.b16 %v392
        %v665 = vunpack.c.l.b16 %v393
        %v666 = vpack.c.b16 %v539, %v538
        %v667 = vpack.c.b16 %v541, %v540
        %v668 = vpack.c.b16 %v543, %v542
        %v669 = vpack.c.b16 %v545, %v544
        %v670 = vpack.c.b16 %v547, %v546
        %v671 = vpack.c.b16 %v549, %v548
        %v672 = vpack.c.b16 %v551, %v550
        %v673 = vpack.c.b16 %v553, %v552
        %v674 = vpack.c.b16 %v555, %v554
        %v675 = vpack.c.b16 %v557, %v556
        %v676 = vpack.c.b16 %v559, %v558
        %v677 = vpack.c.b16 %v561, %v560
        %v678 = vpack.c.b16 %v563, %v562
        %v679 = vpack.c.b16 %v565, %v564
        %v680 = vpack.c.b16 %v567, %v566
        %v681 = vpack.c.b16 %v569, %v568
        %v682 = vpack.c.b16 %v571, %v570
        %v683 = vpack.c.b16 %v573, %v572
        %v684 = vpack.c.b16 %v575, %v574
        %v685 = vpack.c.b16 %v577, %v576
        %v686 = vpack.c.b16 %v579, %v578
        %v687 = vpack.c.b16 %v581, %v580
        %v688 = vpack.c.b16 %v583, %v582
        %v689 = vpack.c.b16 %v585, %v584
        %v690 = vpack.c.b16 %v587, %v586
        %v691 = vpack.c.b16 %v589, %v588
        %v692 = vpack.c.b16 %v591, %v590
        %v693 = vpack.c.b16 %v593, %v592
        %v694 = vpack.c.b16 %v595, %v594
        %v695 = vpack.c.b16 %v597, %v596
        %v696 = vpack.c.b16 %v599, %v598
        %v697 = vpack.c.b16 %v601, %v600
        %v698 = vpack.c.b16 %v603, %v602
        %v699 = vpack.c.b16 %v605, %v604
        %v700 = vpack.c.b16 %v607, %v606
        %v701 = vpack.c.b16 %v609, %v608
        %v702 = vpack.c.b16 %v611, %v610
        %v703 = vpack.c.b16 %v613, %v612
        %v704 = vpack.c.b16 %v615, %v614
        %v705 = vpack.c.b16 %v617, %v616
        %v706 = vpack.c.b16 %v619, %v618
        %v707 = vpack.c.b16 %v621, %v620
        %v708 = vpack.c.b16 %v623, %v622
        %v709 = vpack.c.b16 %v625, %v624
        %v710 = vpack.c.b16 %v627, %v626
        %v711 = vpack.c.b16 %v629, %v628
        %v712 = vpack.c.b16 %v631, %v630
        %v713 = vpack.c.b16 %v633, %v632
        %v714 = vpack.c.b16 %v635, %v634
        %v715 = vpack.c.b16 %v637, %v636
        %v716 = vpack.c.b16 %v639, %v638
        %v717 = vpack.c.b16 %v641, %v640
        %v718 = vpack.c.b16 %v643, %v642
        %v719 = vpack.c.b16 %v645, %v644
        %v720 = vpack.c.b16 %v647, %v646
        %v721 = vpack.c.b16 %v649, %v648
        %v722 = vpack.c.b16 %v651, %v650
        %v723 = vpack.c.b16 %v653, %v652
        %v724 = vpack.c.b16 %v655, %v654
        %v725 = vpack.c.b16 %v657, %v656
        %v726 = vpack.c.b16 %v659, %v658
        %v727 = vpack.c.b16 %v661, %v660
        %v728 = vpack.c.b16 %v663, %v662
        %v729 = vpack.c.b16 %v665, %v664
        %v810 = vunpack.c.l.b16 %v394
        %v811 = vunpack.c.h.b16 %v394
        %v812 = vunpack.c.l.b16 %v395
        %v813 = vunpack.c.h.b16 %v395
        %v814 = vunpack.c.l.b16 %v396
        %v815 = vunpack.c.h.b16 %v396
        %v816 = vunpack.c.l.b16 %v397
        %v817 = vunpack.c.h.b16 %v397
        %v818 = vunpack.c.l.b16 %v398
        %v819 = vunpack.c.h.b16 %v398
        %v820 = vunpack.c.l.b16 %v399
        %v821 = vunpack.c.h.b16 %v399
        %v822 = vunpack.c.l.b16 %v400
        %v823 = vunpack.c.h.b16 %v400
        %v824 = vunpack.c.l.b16 %v401
        %v825 = vunpack.c.h.b16 %v401
        %v826 = vunpack.c.l.b16 %v402
        %v827 = vunpack.c.h.b16 %v402
        %v828 = vunpack.c.l.b16 %v403
        %v829 = vunpack.c.h.b16 %v403
        %v830 = vunpack.c.l.b16 %v404
        %v831 = vunpack.c.h.b16 %v404
        %v832 = vunpack.c.l.b16 %v405
        %v833 = vunpack.c.h.b16 %v405
        %v834 = vunpack.c.l.b16 %v406
        %v835 = vunpack.c.h.b16 %v406
        %v836 = vunpack.c.l.b16 %v407
        %v837 = vunpack.c.h.b16 %v407
        %v838 = vunpack.c.l.b16 %v408
        %v839 = vunpack.c.h.b16 %v408
        %v840 = vunpack.c.l.b16 %v409
        %v841 = vunpack.c.h.b16 %v409
        %v842 = vpack.c.b16 %v812, %v810
        %v843 = vpack.c.b16 %v813, %v811
        %v844 = vpack.c.b16 %v816, %v814
        %v845 = vpack.c.b16 %v817, %v815
        %v846 = vpack.c.b16 %v820, %v818
        %v847 = vpack.c.b16 %v821, %v819
        %v848 = vpack.c.b16 %v824, %v822
        %v849 = vpack.c.b16 %v825, %v823
        %v850 = vpack.c.b16 %v828, %v826
        %v851 = vpack.c.b16 %v829, %v827
        %v852 = vpack.c.b16 %v832, %v830
        %v853 = vpack.c.b16 %v833, %v831
        %v854 = vpack.c.b16 %v836, %v834
        %v855 = vpack.c.b16 %v837, %v835
        %v856 = vpack.c.b16 %v840, %v838
        %v857 = vpack.c.b16 %v841, %v839
        %874 = vmatprep.subr.bf16.mxu0 %v857
        %875 = vmatpush1.bf16.msra.mxu0 %v856
        %876 = vmatprep.subr.bf16.mxu0 %v855
        %877 = vmatpush1.bf16.msra.mxu0 %v854
        %878 = vmatprep.subr.bf16.mxu0 %v853
        %879 = vmatpush1.bf16.msra.mxu0 %v852
        %880 = vmatprep.subr.bf16.mxu0 %v851
        %881 = vmatpush1.bf16.msra.mxu0 %v850
        %882 = vmatprep.subr.bf16.mxu0 %v849
        %883 = vmatpush1.bf16.msra.mxu0 %v848
        %884 = vmatprep.subr.bf16.mxu0 %v847
        %885 = vmatpush1.bf16.msra.mxu0 %v846
        %886 = vmatprep.subr.bf16.mxu0 %v845
        %887 = vmatpush1.bf16.msra.mxu0 %v844
        %888 = vmatprep.subr.bf16.mxu0 %v843
        %889 = vmatpush1.bf16.msra.mxu0 %v842
        %890 = vmatprep.subr.bf16.mxu0 0
        %891 = vmatpush2.bf16.msra.mxu0 0
        %892 = vmatprep.subr.bf16.mxu0 0
        %893 = vmatpush2.bf16.msra.mxu0 0
        %894 = vmatprep.subr.bf16.mxu0 0
        %895 = vmatpush2.bf16.msra.mxu0 0
        %896 = vmatprep.subr.bf16.mxu0 0
        %897 = vmatpush2.bf16.msra.mxu0 0
        %898 = vmatprep.subr.bf16.mxu0 0
        %899 = vmatpush2.bf16.msra.mxu0 0
        %900 = vmatprep.subr.bf16.mxu0 0
        %901 = vmatpush2.bf16.msra.mxu0 0
        %902 = vmatprep.subr.bf16.mxu0 0
        %903 = vmatpush2.bf16.msra.mxu0 0
        %904 = vmatprep.subr.bf16.mxu0 0
        %905 = vmatpush2.bf16.msra.mxu0 0
        %906 = vmatprep.mubr.bf16.mxu0 0
        %907 = vmatmul.mubr.bf16.gmra.mxu0 %v666
        %v908 = vpop.f32.mrf.mxu0
        %v909 = vadd.f32 0.0, %v908
        %v910 = vpop.f32.mrf.mxu0
        %v911 = vadd.f32 0.0, %v910
        %v912 = vpop.f32.mrf.mxu0
        %v913 = vadd.f32 0.0, %v912
        %v914 = vpop.f32.mrf.mxu0
        %v915 = vadd.f32 0.0, %v914
        %916 = vmatprep.mubr.bf16.mxu0 0
        %917 = vmatmul.mubr.bf16.gmra.mxu0 %v667
        %v918 = vpop.f32.mrf.mxu0
        %v919 = vadd.f32 0.0, %v918
        %v920 = vpop.f32.mrf.mxu0
        %v921 = vadd.f32 0.0, %v920
        %v922 = vpop.f32.mrf.mxu0
        %v923 = vadd.f32 0.0, %v922
        %v924 = vpop.f32.mrf.mxu0
        %v925 = vadd.f32 0.0, %v924
        %926 = vmatprep.mubr.bf16.mxu0 0
        %927 = vmatmul.mubr.bf16.gmra.mxu0 %v668
        %v928 = vpop.f32.mrf.mxu0
        %v929 = vadd.f32 0.0, %v928
        %v930 = vpop.f32.mrf.mxu0
        %v931 = vadd.f32 0.0, %v930
        %v932 = vpop.f32.mrf.mxu0
        %v933 = vadd.f32 0.0, %v932
        %v934 = vpop.f32.mrf.mxu0
        %v935 = vadd.f32 0.0, %v934
        %936 = vmatprep.mubr.bf16.mxu0 0
        %937 = vmatmul.mubr.bf16.gmra.mxu0 %v669
        %v938 = vpop.f32.mrf.mxu0
        %v939 = vadd.f32 0.0, %v938
        %v940 = vpop.f32.mrf.mxu0
        %v941 = vadd.f32 0.0, %v940
        %v942 = vpop.f32.mrf.mxu0
        %v943 = vadd.f32 0.0, %v942
        %v944 = vpop.f32.mrf.mxu0
        %v945 = vadd.f32 0.0, %v944
        %946 = vmatprep.mubr.bf16.mxu0 0
        %947 = vmatmul.mubr.bf16.gmra.mxu0 %v670
        %v948 = vpop.f32.mrf.mxu0
        %v949 = vadd.f32 0.0, %v948
        %v950 = vpop.f32.mrf.mxu0
        %v951 = vadd.f32 0.0, %v950
        %v952 = vpop.f32.mrf.mxu0
        %v953 = vadd.f32 0.0, %v952
        %v954 = vpop.f32.mrf.mxu0
        %v955 = vadd.f32 0.0, %v954
        %956 = vmatprep.mubr.bf16.mxu0 0
        %957 = vmatmul.mubr.bf16.gmra.mxu0 %v671
        %v958 = vpop.f32.mrf.mxu0
        %v959 = vadd.f32 0.0, %v958
        %v960 = vpop.f32.mrf.mxu0
        %v961 = vadd.f32 0.0, %v960
        %v962 = vpop.f32.mrf.mxu0
        %v963 = vadd.f32 0.0, %v962
        %v964 = vpop.f32.mrf.mxu0
        %v965 = vadd.f32 0.0, %v964
        %966 = vmatprep.mubr.bf16.mxu0 0
        %967 = vmatmul.mubr.bf16.gmra.mxu0 %v672
        %v968 = vpop.f32.mrf.mxu0
        %v969 = vadd.f32 0.0, %v968
        %v970 = vpop.f32.mrf.mxu0
        %v971 = vadd.f32 0.0, %v970
        %v972 = vpop.f32.mrf.mxu0
        %v973 = vadd.f32 0.0, %v972
        %v974 = vpop.f32.mrf.mxu0
        %v975 = vadd.f32 0.0, %v974
        %976 = vmatprep.mubr.bf16.mxu0 0
        %977 = vmatmul.mubr.bf16.gmra.mxu0 %v673
        %v978 = vpop.f32.mrf.mxu0
        %v979 = vadd.f32 0.0, %v978
        %v980 = vpop.f32.mrf.mxu0
        %v981 = vadd.f32 0.0, %v980
        %v982 = vpop.f32.mrf.mxu0
        %v983 = vadd.f32 0.0, %v982
        %v984 = vpop.f32.mrf.mxu0
        %v985 = vadd.f32 0.0, %v984
        %986 = vmatprep.mubr.bf16.mxu0 0
        %987 = vmatmul.mubr.bf16.gmra.mxu0 %v674
        %v988 = vpop.f32.mrf.mxu0
        %v989 = vadd.f32 0.0, %v988
        %v990 = vpop.f32.mrf.mxu0
        %v991 = vadd.f32 0.0, %v990
        %v992 = vpop.f32.mrf.mxu0
        %v993 = vadd.f32 0.0, %v992
        %v994 = vpop.f32.mrf.mxu0
        %v995 = vadd.f32 0.0, %v994
        %996 = vmatprep.mubr.bf16.mxu0 0
        %997 = vmatmul.mubr.bf16.gmra.mxu0 %v675
        %v998 = vpop.f32.mrf.mxu0
        %v999 = vadd.f32 0.0, %v998
        %v1000 = vpop.f32.mrf.mxu0
        %v1001 = vadd.f32 0.0, %v1000
        %v1002 = vpop.f32.mrf.mxu0
        %v1003 = vadd.f32 0.0, %v1002
        %v1004 = vpop.f32.mrf.mxu0
        %v1005 = vadd.f32 0.0, %v1004
        %1006 = vmatprep.mubr.bf16.mxu0 0
        %1007 = vmatmul.mubr.bf16.gmra.mxu0 %v676
        %v1008 = vpop.f32.mrf.mxu0
        %v1009 = vadd.f32 0.0, %v1008
        %v1010 = vpop.f32.mrf.mxu0
        %v1011 = vadd.f32 0.0, %v1010
        %v1012 = vpop.f32.mrf.mxu0
        %v1013 = vadd.f32 0.0, %v1012
        %v1014 = vpop.f32.mrf.mxu0
        %v1015 = vadd.f32 0.0, %v1014
        %1016 = vmatprep.mubr.bf16.mxu0 0
        %1017 = vmatmul.mubr.bf16.gmra.mxu0 %v677
        %v1018 = vpop.f32.mrf.mxu0
        %v1019 = vadd.f32 0.0, %v1018
        %v1020 = vpop.f32.mrf.mxu0
        %v1021 = vadd.f32 0.0, %v1020
        %v1022 = vpop.f32.mrf.mxu0
        %v1023 = vadd.f32 0.0, %v1022
        %v1024 = vpop.f32.mrf.mxu0
        %v1025 = vadd.f32 0.0, %v1024
        %1026 = vmatprep.mubr.bf16.mxu0 0
        %1027 = vmatmul.mubr.bf16.gmra.mxu0 %v678
        %v1028 = vpop.f32.mrf.mxu0
        %v1029 = vadd.f32 0.0, %v1028
        %v1030 = vpop.f32.mrf.mxu0
        %v1031 = vadd.f32 0.0, %v1030
        %v1032 = vpop.f32.mrf.mxu0
        %v1033 = vadd.f32 0.0, %v1032
        %v1034 = vpop.f32.mrf.mxu0
        %v1035 = vadd.f32 0.0, %v1034
        %1036 = vmatprep.mubr.bf16.mxu0 0
        %1037 = vmatmul.mubr.bf16.gmra.mxu0 %v679
        %v1038 = vpop.f32.mrf.mxu0
        %v1039 = vadd.f32 0.0, %v1038
        %v1040 = vpop.f32.mrf.mxu0
        %v1041 = vadd.f32 0.0, %v1040
        %v1042 = vpop.f32.mrf.mxu0
        %v1043 = vadd.f32 0.0, %v1042
        %v1044 = vpop.f32.mrf.mxu0
        %v1045 = vadd.f32 0.0, %v1044
        %1046 = vmatprep.mubr.bf16.mxu0 0
        %1047 = vmatmul.mubr.bf16.gmra.mxu0 %v680
        %v1048 = vpop.f32.mrf.mxu0
        %v1049 = vadd.f32 0.0, %v1048
        %v1050 = vpop.f32.mrf.mxu0
        %v1051 = vadd.f32 0.0, %v1050
        %v1052 = vpop.f32.mrf.mxu0
        %v1053 = vadd.f32 0.0, %v1052
        %v1054 = vpop.f32.mrf.mxu0
        %v1055 = vadd.f32 0.0, %v1054
        %1056 = vmatprep.mubr.bf16.mxu0 0
        %1057 = vmatmul.mubr.bf16.gmra.mxu0 %v681
        %v1058 = vpop.f32.mrf.mxu0
        %v1059 = vadd.f32 0.0, %v1058
        %v1060 = vpop.f32.mrf.mxu0
        %v1061 = vadd.f32 0.0, %v1060
        %v1062 = vpop.f32.mrf.mxu0
        %v1063 = vadd.f32 0.0, %v1062
        %v1064 = vpop.f32.mrf.mxu0
        %v1065 = vadd.f32 0.0, %v1064
        %1066 = vmatprep.mubr.bf16.mxu0 0
        %1067 = vmatmul.mubr.bf16.gmra.mxu0 %v682
        %v1068 = vpop.f32.mrf.mxu0
        %v1069 = vadd.f32 0.0, %v1068
        %v1070 = vpop.f32.mrf.mxu0
        %v1071 = vadd.f32 0.0, %v1070
        %v1072 = vpop.f32.mrf.mxu0
        %v1073 = vadd.f32 0.0, %v1072
        %v1074 = vpop.f32.mrf.mxu0
        %v1075 = vadd.f32 0.0, %v1074
        %1076 = vmatprep.mubr.bf16.mxu0 0
        %1077 = vmatmul.mubr.bf16.gmra.mxu0 %v683
        %v1078 = vpop.f32.mrf.mxu0
        %v1079 = vadd.f32 0.0, %v1078
        %v1080 = vpop.f32.mrf.mxu0
        %v1081 = vadd.f32 0.0, %v1080
        %v1082 = vpop.f32.mrf.mxu0
        %v1083 = vadd.f32 0.0, %v1082
        %v1084 = vpop.f32.mrf.mxu0
        %v1085 = vadd.f32 0.0, %v1084
        %1086 = vmatprep.mubr.bf16.mxu0 0
        %1087 = vmatmul.mubr.bf16.gmra.mxu0 %v684
        %v1088 = vpop.f32.mrf.mxu0
        %v1089 = vadd.f32 0.0, %v1088
        %v1090 = vpop.f32.mrf.mxu0
        %v1091 = vadd.f32 0.0, %v1090
        %v1092 = vpop.f32.mrf.mxu0
        %v1093 = vadd.f32 0.0, %v1092
        %v1094 = vpop.f32.mrf.mxu0
        %v1095 = vadd.f32 0.0, %v1094
        %1096 = vmatprep.mubr.bf16.mxu0 0
        %1097 = vmatmul.mubr.bf16.gmra.mxu0 %v685
        %v1098 = vpop.f32.mrf.mxu0
        %v1099 = vadd.f32 0.0, %v1098
        %v1100 = vpop.f32.mrf.mxu0
        %v1101 = vadd.f32 0.0, %v1100
        %v1102 = vpop.f32.mrf.mxu0
        %v1103 = vadd.f32 0.0, %v1102
        %v1104 = vpop.f32.mrf.mxu0
        %v1105 = vadd.f32 0.0, %v1104
        %1106 = vmatprep.mubr.bf16.mxu0 0
        %1107 = vmatmul.mubr.bf16.gmra.mxu0 %v686
        %v1108 = vpop.f32.mrf.mxu0
        %v1109 = vadd.f32 0.0, %v1108
        %v1110 = vpop.f32.mrf.mxu0
        %v1111 = vadd.f32 0.0, %v1110
        %v1112 = vpop.f32.mrf.mxu0
        %v1113 = vadd.f32 0.0, %v1112
        %v1114 = vpop.f32.mrf.mxu0
        %v1115 = vadd.f32 0.0, %v1114
        %1116 = vmatprep.mubr.bf16.mxu0 0
        %1117 = vmatmul.mubr.bf16.gmra.mxu0 %v687
        %v1118 = vpop.f32.mrf.mxu0
        %v1119 = vadd.f32 0.0, %v1118
        %v1120 = vpop.f32.mrf.mxu0
        %v1121 = vadd.f32 0.0, %v1120
        %v1122 = vpop.f32.mrf.mxu0
        %v1123 = vadd.f32 0.0, %v1122
        %v1124 = vpop.f32.mrf.mxu0
        %v1125 = vadd.f32 0.0, %v1124
        %1126 = vmatprep.mubr.bf16.mxu0 0
        %1127 = vmatmul.mubr.bf16.gmra.mxu0 %v688
        %v1128 = vpop.f32.mrf.mxu0
        %v1129 = vadd.f32 0.0, %v1128
        %v1130 = vpop.f32.mrf.mxu0
        %v1131 = vadd.f32 0.0, %v1130
        %v1132 = vpop.f32.mrf.mxu0
        %v1133 = vadd.f32 0.0, %v1132
        %v1134 = vpop.f32.mrf.mxu0
        %v1135 = vadd.f32 0.0, %v1134
        %1136 = vmatprep.mubr.bf16.mxu0 0
        %1137 = vmatmul.mubr.bf16.gmra.mxu0 %v689
        %v1138 = vpop.f32.mrf.mxu0
        %v1139 = vadd.f32 0.0, %v1138
        %v1140 = vpop.f32.mrf.mxu0
        %v1141 = vadd.f32 0.0, %v1140
        %v1142 = vpop.f32.mrf.mxu0
        %v1143 = vadd.f32 0.0, %v1142
        %v1144 = vpop.f32.mrf.mxu0
        %v1145 = vadd.f32 0.0, %v1144
        %1146 = vmatprep.mubr.bf16.mxu0 0
        %1147 = vmatmul.mubr.bf16.gmra.mxu0 %v690
        %v1148 = vpop.f32.mrf.mxu0
        %v1149 = vadd.f32 0.0, %v1148
        %v1150 = vpop.f32.mrf.mxu0
        %v1151 = vadd.f32 0.0, %v1150
        %v1152 = vpop.f32.mrf.mxu0
        %v1153 = vadd.f32 0.0, %v1152
        %v1154 = vpop.f32.mrf.mxu0
        %v1155 = vadd.f32 0.0, %v1154
        %1156 = vmatprep.mubr.bf16.mxu0 0
        %1157 = vmatmul.mubr.bf16.gmra.mxu0 %v691
        %v1158 = vpop.f32.mrf.mxu0
        %v1159 = vadd.f32 0.0, %v1158
        %v1160 = vpop.f32.mrf.mxu0
        %v1161 = vadd.f32 0.0, %v1160
        %v1162 = vpop.f32.mrf.mxu0
        %v1163 = vadd.f32 0.0, %v1162
        %v1164 = vpop.f32.mrf.mxu0
        %v1165 = vadd.f32 0.0, %v1164
        %1166 = vmatprep.mubr.bf16.mxu0 0
        %1167 = vmatmul.mubr.bf16.gmra.mxu0 %v692
        %v1168 = vpop.f32.mrf.mxu0
        %v1169 = vadd.f32 0.0, %v1168
        %v1170 = vpop.f32.mrf.mxu0
        %v1171 = vadd.f32 0.0, %v1170
        %v1172 = vpop.f32.mrf.mxu0
        %v1173 = vadd.f32 0.0, %v1172
        %v1174 = vpop.f32.mrf.mxu0
        %v1175 = vadd.f32 0.0, %v1174
        %1176 = vmatprep.mubr.bf16.mxu0 0
        %1177 = vmatmul.mubr.bf16.gmra.mxu0 %v693
        %v1178 = vpop.f32.mrf.mxu0
        %v1179 = vadd.f32 0.0, %v1178
        %v1180 = vpop.f32.mrf.mxu0
        %v1181 = vadd.f32 0.0, %v1180
        %v1182 = vpop.f32.mrf.mxu0
        %v1183 = vadd.f32 0.0, %v1182
        %v1184 = vpop.f32.mrf.mxu0
        %v1185 = vadd.f32 0.0, %v1184
        %1186 = vmatprep.mubr.bf16.mxu0 0
        %1187 = vmatmul.mubr.bf16.gmra.mxu0 %v694
        %v1188 = vpop.f32.mrf.mxu0
        %v1189 = vadd.f32 0.0, %v1188
        %v1190 = vpop.f32.mrf.mxu0
        %v1191 = vadd.f32 0.0, %v1190
        %v1192 = vpop.f32.mrf.mxu0
        %v1193 = vadd.f32 0.0, %v1192
        %v1194 = vpop.f32.mrf.mxu0
        %v1195 = vadd.f32 0.0, %v1194
        %1196 = vmatprep.mubr.bf16.mxu0 0
        %1197 = vmatmul.mubr.bf16.gmra.mxu0 %v695
        %v1198 = vpop.f32.mrf.mxu0
        %v1199 = vadd.f32 0.0, %v1198
        %v1200 = vpop.f32.mrf.mxu0
        %v1201 = vadd.f32 0.0, %v1200
        %v1202 = vpop.f32.mrf.mxu0
        %v1203 = vadd.f32 0.0, %v1202
        %v1204 = vpop.f32.mrf.mxu0
        %v1205 = vadd.f32 0.0, %v1204
        %1206 = vmatprep.mubr.bf16.mxu0 0
        %1207 = vmatmul.mubr.bf16.gmra.mxu0 %v696
        %v1208 = vpop.f32.mrf.mxu0
        %v1209 = vadd.f32 0.0, %v1208
        %v1210 = vpop.f32.mrf.mxu0
        %v1211 = vadd.f32 0.0, %v1210
        %v1212 = vpop.f32.mrf.mxu0
        %v1213 = vadd.f32 0.0, %v1212
        %v1214 = vpop.f32.mrf.mxu0
        %v1215 = vadd.f32 0.0, %v1214
        %1216 = vmatprep.mubr.bf16.mxu0 0
        %1217 = vmatmul.mubr.bf16.gmra.mxu0 %v697
        %v1218 = vpop.f32.mrf.mxu0
        %v1219 = vadd.f32 0.0, %v1218
        %v1220 = vpop.f32.mrf.mxu0
        %v1221 = vadd.f32 0.0, %v1220
        %v1222 = vpop.f32.mrf.mxu0
        %v1223 = vadd.f32 0.0, %v1222
        %v1224 = vpop.f32.mrf.mxu0
        %v1225 = vadd.f32 0.0, %v1224
        %1226 = vmatprep.mubr.bf16.mxu0 0
        %1227 = vmatmul.mubr.bf16.gmra.mxu0 %v698
        %v1228 = vpop.f32.mrf.mxu0
        %v1229 = vadd.f32 0.0, %v1228
        %v1230 = vpop.f32.mrf.mxu0
        %v1231 = vadd.f32 0.0, %v1230
        %v1232 = vpop.f32.mrf.mxu0
        %v1233 = vadd.f32 0.0, %v1232
        %v1234 = vpop.f32.mrf.mxu0
        %v1235 = vadd.f32 0.0, %v1234
        %1236 = vmatprep.mubr.bf16.mxu0 0
        %1237 = vmatmul.mubr.bf16.gmra.mxu0 %v699
        %v1238 = vpop.f32.mrf.mxu0
        %v1239 = vadd.f32 0.0, %v1238
        %v1240 = vpop.f32.mrf.mxu0
        %v1241 = vadd.f32 0.0, %v1240
        %v1242 = vpop.f32.mrf.mxu0
        %v1243 = vadd.f32 0.0, %v1242
        %v1244 = vpop.f32.mrf.mxu0
        %v1245 = vadd.f32 0.0, %v1244
        %1246 = vmatprep.mubr.bf16.mxu0 0
        %1247 = vmatmul.mubr.bf16.gmra.mxu0 %v700
        %v1248 = vpop.f32.mrf.mxu0
        %v1249 = vadd.f32 0.0, %v1248
        %v1250 = vpop.f32.mrf.mxu0
        %v1251 = vadd.f32 0.0, %v1250
        %v1252 = vpop.f32.mrf.mxu0
        %v1253 = vadd.f32 0.0, %v1252
        %v1254 = vpop.f32.mrf.mxu0
        %v1255 = vadd.f32 0.0, %v1254
        %1256 = vmatprep.mubr.bf16.mxu0 0
        %1257 = vmatmul.mubr.bf16.gmra.mxu0 %v701
        %v1258 = vpop.f32.mrf.mxu0
        %v1259 = vadd.f32 0.0, %v1258
        %v1260 = vpop.f32.mrf.mxu0
        %v1261 = vadd.f32 0.0, %v1260
        %v1262 = vpop.f32.mrf.mxu0
        %v1263 = vadd.f32 0.0, %v1262
        %v1264 = vpop.f32.mrf.mxu0
        %v1265 = vadd.f32 0.0, %v1264
        %1266 = vmatprep.mubr.bf16.mxu0 0
        %1267 = vmatmul.mubr.bf16.gmra.mxu0 %v702
        %v1268 = vpop.f32.mrf.mxu0
        %v1269 = vadd.f32 0.0, %v1268
        %v1270 = vpop.f32.mrf.mxu0
        %v1271 = vadd.f32 0.0, %v1270
        %v1272 = vpop.f32.mrf.mxu0
        %v1273 = vadd.f32 0.0, %v1272
        %v1274 = vpop.f32.mrf.mxu0
        %v1275 = vadd.f32 0.0, %v1274
        %1276 = vmatprep.mubr.bf16.mxu0 0
        %1277 = vmatmul.mubr.bf16.gmra.mxu0 %v703
        %v1278 = vpop.f32.mrf.mxu0
        %v1279 = vadd.f32 0.0, %v1278
        %v1280 = vpop.f32.mrf.mxu0
        %v1281 = vadd.f32 0.0, %v1280
        %v1282 = vpop.f32.mrf.mxu0
        %v1283 = vadd.f32 0.0, %v1282
        %v1284 = vpop.f32.mrf.mxu0
        %v1285 = vadd.f32 0.0, %v1284
        %1286 = vmatprep.mubr.bf16.mxu0 0
        %1287 = vmatmul.mubr.bf16.gmra.mxu0 %v704
        %v1288 = vpop.f32.mrf.mxu0
        %v1289 = vadd.f32 0.0, %v1288
        %v1290 = vpop.f32.mrf.mxu0
        %v1291 = vadd.f32 0.0, %v1290
        %v1292 = vpop.f32.mrf.mxu0
        %v1293 = vadd.f32 0.0, %v1292
        %v1294 = vpop.f32.mrf.mxu0
        %v1295 = vadd.f32 0.0, %v1294
        %1296 = vmatprep.mubr.bf16.mxu0 0
        %1297 = vmatmul.mubr.bf16.gmra.mxu0 %v705
        %v1298 = vpop.f32.mrf.mxu0
        %v1299 = vadd.f32 0.0, %v1298
        %v1300 = vpop.f32.mrf.mxu0
        %v1301 = vadd.f32 0.0, %v1300
        %v1302 = vpop.f32.mrf.mxu0
        %v1303 = vadd.f32 0.0, %v1302
        %v1304 = vpop.f32.mrf.mxu0
        %v1305 = vadd.f32 0.0, %v1304
        %1306 = vmatprep.mubr.bf16.mxu0 0
        %1307 = vmatmul.mubr.bf16.gmra.mxu0 %v706
        %v1308 = vpop.f32.mrf.mxu0
        %v1309 = vadd.f32 0.0, %v1308
        %v1310 = vpop.f32.mrf.mxu0
        %v1311 = vadd.f32 0.0, %v1310
        %v1312 = vpop.f32.mrf.mxu0
        %v1313 = vadd.f32 0.0, %v1312
        %v1314 = vpop.f32.mrf.mxu0
        %v1315 = vadd.f32 0.0, %v1314
        %1316 = vmatprep.mubr.bf16.mxu0 0
        %1317 = vmatmul.mubr.bf16.gmra.mxu0 %v707
        %v1318 = vpop.f32.mrf.mxu0
        %v1319 = vadd.f32 0.0, %v1318
        %v1320 = vpop.f32.mrf.mxu0
        %v1321 = vadd.f32 0.0, %v1320
        %v1322 = vpop.f32.mrf.mxu0
        %v1323 = vadd.f32 0.0, %v1322
        %v1324 = vpop.f32.mrf.mxu0
        %v1325 = vadd.f32 0.0, %v1324
        %1326 = vmatprep.mubr.bf16.mxu0 0
        %1327 = vmatmul.mubr.bf16.gmra.mxu0 %v708
        %v1328 = vpop.f32.mrf.mxu0
        %v1329 = vadd.f32 0.0, %v1328
        %v1330 = vpop.f32.mrf.mxu0
        %v1331 = vadd.f32 0.0, %v1330
        %v1332 = vpop.f32.mrf.mxu0
        %v1333 = vadd.f32 0.0, %v1332
        %v1334 = vpop.f32.mrf.mxu0
        %v1335 = vadd.f32 0.0, %v1334
        %1336 = vmatprep.mubr.bf16.mxu0 0
        %1337 = vmatmul.mubr.bf16.gmra.mxu0 %v709
        %v1338 = vpop.f32.mrf.mxu0
        %v1339 = vadd.f32 0.0, %v1338
        %v1340 = vpop.f32.mrf.mxu0
        %v1341 = vadd.f32 0.0, %v1340
        %v1342 = vpop.f32.mrf.mxu0
        %v1343 = vadd.f32 0.0, %v1342
        %v1344 = vpop.f32.mrf.mxu0
        %v1345 = vadd.f32 0.0, %v1344
        %1346 = vmatprep.mubr.bf16.mxu0 0
        %1347 = vmatmul.mubr.bf16.gmra.mxu0 %v710
        %v1348 = vpop.f32.mrf.mxu0
        %v1349 = vadd.f32 0.0, %v1348
        %v1350 = vpop.f32.mrf.mxu0
        %v1351 = vadd.f32 0.0, %v1350
        %v1352 = vpop.f32.mrf.mxu0
        %v1353 = vadd.f32 0.0, %v1352
        %v1354 = vpop.f32.mrf.mxu0
        %v1355 = vadd.f32 0.0, %v1354
        %1356 = vmatprep.mubr.bf16.mxu0 0
        %1357 = vmatmul.mubr.bf16.gmra.mxu0 %v711
        %v1358 = vpop.f32.mrf.mxu0
        %v1359 = vadd.f32 0.0, %v1358
        %v1360 = vpop.f32.mrf.mxu0
        %v1361 = vadd.f32 0.0, %v1360
        %v1362 = vpop.f32.mrf.mxu0
        %v1363 = vadd.f32 0.0, %v1362
        %v1364 = vpop.f32.mrf.mxu0
        %v1365 = vadd.f32 0.0, %v1364
        %1366 = vmatprep.mubr.bf16.mxu0 0
        %1367 = vmatmul.mubr.bf16.gmra.mxu0 %v712
        %v1368 = vpop.f32.mrf.mxu0
        %v1369 = vadd.f32 0.0, %v1368
        %v1370 = vpop.f32.mrf.mxu0
        %v1371 = vadd.f32 0.0, %v1370
        %v1372 = vpop.f32.mrf.mxu0
        %v1373 = vadd.f32 0.0, %v1372
        %v1374 = vpop.f32.mrf.mxu0
        %v1375 = vadd.f32 0.0, %v1374
        %1376 = vmatprep.mubr.bf16.mxu0 0
        %1377 = vmatmul.mubr.bf16.gmra.mxu0 %v713
        %v1378 = vpop.f32.mrf.mxu0
        %v1379 = vadd.f32 0.0, %v1378
        %v1380 = vpop.f32.mrf.mxu0
        %v1381 = vadd.f32 0.0, %v1380
        %v1382 = vpop.f32.mrf.mxu0
        %v1383 = vadd.f32 0.0, %v1382
        %v1384 = vpop.f32.mrf.mxu0
        %v1385 = vadd.f32 0.0, %v1384
        %1386 = vmatprep.mubr.bf16.mxu0 0
        %1387 = vmatmul.mubr.bf16.gmra.mxu0 %v714
        %v1388 = vpop.f32.mrf.mxu0
        %v1389 = vadd.f32 0.0, %v1388
        %v1390 = vpop.f32.mrf.mxu0
        %v1391 = vadd.f32 0.0, %v1390
        %v1392 = vpop.f32.mrf.mxu0
        %v1393 = vadd.f32 0.0, %v1392
        %v1394 = vpop.f32.mrf.mxu0
        %v1395 = vadd.f32 0.0, %v1394
        %1396 = vmatprep.mubr.bf16.mxu0 0
        %1397 = vmatmul.mubr.bf16.gmra.mxu0 %v715
        %v1398 = vpop.f32.mrf.mxu0
        %v1399 = vadd.f32 0.0, %v1398
        %v1400 = vpop.f32.mrf.mxu0
        %v1401 = vadd.f32 0.0, %v1400
        %v1402 = vpop.f32.mrf.mxu0
        %v1403 = vadd.f32 0.0, %v1402
        %v1404 = vpop.f32.mrf.mxu0
        %v1405 = vadd.f32 0.0, %v1404
        %1406 = vmatprep.mubr.bf16.mxu0 0
        %1407 = vmatmul.mubr.bf16.gmra.mxu0 %v716
        %v1408 = vpop.f32.mrf.mxu0
        %v1409 = vadd.f32 0.0, %v1408
        %v1410 = vpop.f32.mrf.mxu0
        %v1411 = vadd.f32 0.0, %v1410
        %v1412 = vpop.f32.mrf.mxu0
        %v1413 = vadd.f32 0.0, %v1412
        %v1414 = vpop.f32.mrf.mxu0
        %v1415 = vadd.f32 0.0, %v1414
        %1416 = vmatprep.mubr.bf16.mxu0 0
        %1417 = vmatmul.mubr.bf16.gmra.mxu0 %v717
        %v1418 = vpop.f32.mrf.mxu0
        %v1419 = vadd.f32 0.0, %v1418
        %v1420 = vpop.f32.mrf.mxu0
        %v1421 = vadd.f32 0.0, %v1420
        %v1422 = vpop.f32.mrf.mxu0
        %v1423 = vadd.f32 0.0, %v1422
        %v1424 = vpop.f32.mrf.mxu0
        %v1425 = vadd.f32 0.0, %v1424
        %1426 = vmatprep.mubr.bf16.mxu0 0
        %1427 = vmatmul.mubr.bf16.gmra.mxu0 %v718
        %v1428 = vpop.f32.mrf.mxu0
        %v1429 = vadd.f32 0.0, %v1428
        %v1430 = vpop.f32.mrf.mxu0
        %v1431 = vadd.f32 0.0, %v1430
        %v1432 = vpop.f32.mrf.mxu0
        %v1433 = vadd.f32 0.0, %v1432
        %v1434 = vpop.f32.mrf.mxu0
        %v1435 = vadd.f32 0.0, %v1434
        %1436 = vmatprep.mubr.bf16.mxu0 0
        %1437 = vmatmul.mubr.bf16.gmra.mxu0 %v719
        %v1438 = vpop.f32.mrf.mxu0
        %v1439 = vadd.f32 0.0, %v1438
        %v1440 = vpop.f32.mrf.mxu0
        %v1441 = vadd.f32 0.0, %v1440
        %v1442 = vpop.f32.mrf.mxu0
        %v1443 = vadd.f32 0.0, %v1442
        %v1444 = vpop.f32.mrf.mxu0
        %v1445 = vadd.f32 0.0, %v1444
        %1446 = vmatprep.mubr.bf16.mxu0 0
        %1447 = vmatmul.mubr.bf16.gmra.mxu0 %v720
        %v1448 = vpop.f32.mrf.mxu0
        %v1449 = vadd.f32 0.0, %v1448
        %v1450 = vpop.f32.mrf.mxu0
        %v1451 = vadd.f32 0.0, %v1450
        %v1452 = vpop.f32.mrf.mxu0
        %v1453 = vadd.f32 0.0, %v1452
        %v1454 = vpop.f32.mrf.mxu0
        %v1455 = vadd.f32 0.0, %v1454
        %1456 = vmatprep.mubr.bf16.mxu0 0
        %1457 = vmatmul.mubr.bf16.gmra.mxu0 %v721
        %v1458 = vpop.f32.mrf.mxu0
        %v1459 = vadd.f32 0.0, %v1458
        %v1460 = vpop.f32.mrf.mxu0
        %v1461 = vadd.f32 0.0, %v1460
        %v1462 = vpop.f32.mrf.mxu0
        %v1463 = vadd.f32 0.0, %v1462
        %v1464 = vpop.f32.mrf.mxu0
        %v1465 = vadd.f32 0.0, %v1464
        %1466 = vmatprep.mubr.bf16.mxu0 0
        %1467 = vmatmul.mubr.bf16.gmra.mxu0 %v722
        %v1468 = vpop.f32.mrf.mxu0
        %v1469 = vadd.f32 0.0, %v1468
        %v1470 = vpop.f32.mrf.mxu0
        %v1471 = vadd.f32 0.0, %v1470
        %v1472 = vpop.f32.mrf.mxu0
        %v1473 = vadd.f32 0.0, %v1472
        %v1474 = vpop.f32.mrf.mxu0
        %v1475 = vadd.f32 0.0, %v1474
        %1476 = vmatprep.mubr.bf16.mxu0 0
        %1477 = vmatmul.mubr.bf16.gmra.mxu0 %v723
        %v1478 = vpop.f32.mrf.mxu0
        %v1479 = vadd.f32 0.0, %v1478
        %v1480 = vpop.f32.mrf.mxu0
        %v1481 = vadd.f32 0.0, %v1480
        %v1482 = vpop.f32.mrf.mxu0
        %v1483 = vadd.f32 0.0, %v1482
        %v1484 = vpop.f32.mrf.mxu0
        %v1485 = vadd.f32 0.0, %v1484
        %1486 = vmatprep.mubr.bf16.mxu0 0
        %1487 = vmatmul.mubr.bf16.gmra.mxu0 %v724
        %v1488 = vpop.f32.mrf.mxu0
        %v1489 = vadd.f32 0.0, %v1488
        %v1490 = vpop.f32.mrf.mxu0
        %v1491 = vadd.f32 0.0, %v1490
        %v1492 = vpop.f32.mrf.mxu0
        %v1493 = vadd.f32 0.0, %v1492
        %v1494 = vpop.f32.mrf.mxu0
        %v1495 = vadd.f32 0.0, %v1494
        %1496 = vmatprep.mubr.bf16.mxu0 0
        %1497 = vmatmul.mubr.bf16.gmra.mxu0 %v725
        %v1498 = vpop.f32.mrf.mxu0
        %v1499 = vadd.f32 0.0, %v1498
        %v1500 = vpop.f32.mrf.mxu0
        %v1501 = vadd.f32 0.0, %v1500
        %v1502 = vpop.f32.mrf.mxu0
        %v1503 = vadd.f32 0.0, %v1502
        %v1504 = vpop.f32.mrf.mxu0
        %v1505 = vadd.f32 0.0, %v1504
        %1506 = vmatprep.mubr.bf16.mxu0 0
        %1507 = vmatmul.mubr.bf16.gmra.mxu0 %v726
        %v1508 = vpop.f32.mrf.mxu0
        %v1509 = vadd.f32 0.0, %v1508
        %v1510 = vpop.f32.mrf.mxu0
        %v1511 = vadd.f32 0.0, %v1510
        %v1512 = vpop.f32.mrf.mxu0
        %v1513 = vadd.f32 0.0, %v1512
        %v1514 = vpop.f32.mrf.mxu0
        %v1515 = vadd.f32 0.0, %v1514
        %1516 = vmatprep.mubr.bf16.mxu0 0
        %1517 = vmatmul.mubr.bf16.gmra.mxu0 %v727
        %v1518 = vpop.f32.mrf.mxu0
        %v1519 = vadd.f32 0.0, %v1518
        %v1520 = vpop.f32.mrf.mxu0
        %v1521 = vadd.f32 0.0, %v1520
        %v1522 = vpop.f32.mrf.mxu0
        %v1523 = vadd.f32 0.0, %v1522
        %v1524 = vpop.f32.mrf.mxu0
        %v1525 = vadd.f32 0.0, %v1524
        %1526 = vmatprep.mubr.bf16.mxu0 0
        %1527 = vmatmul.mubr.bf16.gmra.mxu0 %v728
        %v1528 = vpop.f32.mrf.mxu0
        %v1529 = vadd.f32 0.0, %v1528
        %v1530 = vpop.f32.mrf.mxu0
        %v1531 = vadd.f32 0.0, %v1530
        %v1532 = vpop.f32.mrf.mxu0
        %v1533 = vadd.f32 0.0, %v1532
        %v1534 = vpop.f32.mrf.mxu0
        %v1535 = vadd.f32 0.0, %v1534
        %1536 = vmatprep.mubr.bf16.mxu0 0
        %1537 = vmatmul.mubr.bf16.gmra.mxu0 %v729
        %v1538 = vpop.f32.mrf.mxu0
        %v1539 = vadd.f32 0.0, %v1538
        %v1540 = vpop.f32.mrf.mxu0
        %v1541 = vadd.f32 0.0, %v1540
        %v1542 = vpop.f32.mrf.mxu0
        %v1543 = vadd.f32 0.0, %v1542
        %v1544 = vpop.f32.mrf.mxu0
        %v1545 = vadd.f32 0.0, %v1544
        %1546 = vdwg.mxu0
        %p1547 = scmp.eq.s32.totalorder %s28, 0
        // Predicated region
        $region41: #{tpu_custom_call.1} parent=31 // pred_check
          %p1548 = pneg %p1547
        $region42: #{tpu_custom_call.1} parent=31 // pred_check_branch
          %1550 = sbr.rel (%p1548) target = $region44
        $region43: #{tpu_custom_call.1} parent=31 // pred_region
          %1551 = vst [vmem:[#allocation2] sm:$0xff] %v909
          %1552 = vst [vmem:[#allocation2 + $0x8] sm:$0xff] %v911
          %1553 = vst [vmem:[#allocation2 + $0x10] sm:$0xff] %v913
          %1554 = vst [vmem:[#allocation2 + $0x18] sm:$0xff] %v915
          %1555 = vst [vmem:[#allocation2 + $0x20] sm:$0xff] %v919
          %1556 = vst [vmem:[#allocation2 + $0x28] sm:$0xff] %v921
          %1557 = vst [vmem:[#allocation2 + $0x30] sm:$0xff] %v923
          %1558 = vst [vmem:[#allocation2 + $0x38] sm:$0xff] %v925
          %1559 = vst [vmem:[#allocation2 + $0x40] sm:$0xff] %v929
          %1560 = vst [vmem:[#allocation2 + $0x48] sm:$0xff] %v931
          %1561 = vst [vmem:[#allocation2 + $0x50] sm:$0xff] %v933
          %1562 = vst [vmem:[#allocation2 + $0x58] sm:$0xff] %v935
          %1563 = vst [vmem:[#allocation2 + $0x60] sm:$0xff] %v939
          %1564 = vst [vmem:[#allocation2 + $0x68] sm:$0xff] %v941
          %1565 = vst [vmem:[#allocation2 + $0x70] sm:$0xff] %v943
          %1566 = vst [vmem:[#allocation2 + $0x78] sm:$0xff] %v945
          %1567 = vst [vmem:[#allocation2 + $0x80] sm:$0xff] %v949
          %1568 = vst [vmem:[#allocation2 + $0x88] sm:$0xff] %v951
          %1569 = vst [vmem:[#allocation2 + $0x90] sm:$0xff] %v953
          %1570 = vst [vmem:[#allocation2 + $0x98] sm:$0xff] %v955
          %1571 = vst [vmem:[#allocation2 + $0xa0] sm:$0xff] %v959
          %1572 = vst [vmem:[#allocation2 + $0xa8] sm:$0xff] %v961
          %1573 = vst [vmem:[#allocation2 + $0xb0] sm:$0xff] %v963
          %1574 = vst [vmem:[#allocation2 + $0xb8] sm:$0xff] %v965
          %1575 = vst [vmem:[#allocation2 + $0xc0] sm:$0xff] %v969
          %1576 = vst [vmem:[#allocation2 + $0xc8] sm:$0xff] %v971
          %1577 = vst [vmem:[#allocation2 + $0xd0] sm:$0xff] %v973
          %1578 = vst [vmem:[#allocation2 + $0xd8] sm:$0xff] %v975
          %1579 = vst [vmem:[#allocation2 + $0xe0] sm:$0xff] %v979
          %1580 = vst [vmem:[#allocation2 + $0xe8] sm:$0xff] %v981
          %1581 = vst [vmem:[#allocation2 + $0xf0] sm:$0xff] %v983
          %1582 = vst [vmem:[#allocation2 + $0xf8] sm:$0xff] %v985
          %1583 = vst [vmem:[#allocation2 + $0x100] sm:$0xff] %v989
          %1584 = vst [vmem:[#allocation2 + $0x108] sm:$0xff] %v991
          %1585 = vst [vmem:[#allocation2 + $0x110] sm:$0xff] %v993
          %1586 = vst [vmem:[#allocation2 + $0x118] sm:$0xff] %v995
          %1587 = vst [vmem:[#allocation2 + $0x120] sm:$0xff] %v999
          %1588 = vst [vmem:[#allocation2 + $0x128] sm:$0xff] %v1001
          %1589 = vst [vmem:[#allocation2 + $0x130] sm:$0xff] %v1003
          %1590 = vst [vmem:[#allocation2 + $0x138] sm:$0xff] %v1005
          %1591 = vst [vmem:[#allocation2 + $0x140] sm:$0xff] %v1009
          %1592 = vst [vmem:[#allocation2 + $0x148] sm:$0xff] %v1011
          %1593 = vst [vmem:[#allocation2 + $0x150] sm:$0xff] %v1013
          %1594 = vst [vmem:[#allocation2 + $0x158] sm:$0xff] %v1015
          %1595 = vst [vmem:[#allocation2 + $0x160] sm:$0xff] %v1019
          %1596 = vst [vmem:[#allocation2 + $0x168] sm:$0xff] %v1021
          %1597 = vst [vmem:[#allocation2 + $0x170] sm:$0xff] %v1023
          %1598 = vst [vmem:[#allocation2 + $0x178] sm:$0xff] %v1025
          %1599 = vst [vmem:[#allocation2 + $0x180] sm:$0xff] %v1029
          %1600 = vst [vmem:[#allocation2 + $0x188] sm:$0xff] %v1031
          %1601 = vst [vmem:[#allocation2 + $0x190] sm:$0xff] %v1033
          %1602 = vst [vmem:[#allocation2 + $0x198] sm:$0xff] %v1035
          %1603 = vst [vmem:[#allocation2 + $0x1a0] sm:$0xff] %v1039
          %1604 = vst [vmem:[#allocation2 + $0x1a8] sm:$0xff] %v1041
          %1605 = vst [vmem:[#allocation2 + $0x1b0] sm:$0xff] %v1043
          %1606 = vst [vmem:[#allocation2 + $0x1b8] sm:$0xff] %v1045
          %1607 = vst [vmem:[#allocation2 + $0x1c0] sm:$0xff] %v1049
          %1608 = vst [vmem:[#allocation2 + $0x1c8] sm:$0xff] %v1051
          %1609 = vst [vmem:[#allocation2 + $0x1d0] sm:$0xff] %v1053
          %1610 = vst [vmem:[#allocation2 + $0x1d8] sm:$0xff] %v1055
          %1611 = vst [vmem:[#allocation2 + $0x1e0] sm:$0xff] %v1059
          %1612 = vst [vmem:[#allocation2 + $0x1e8] sm:$0xff] %v1061
          %1613 = vst [vmem:[#allocation2 + $0x1f0] sm:$0xff] %v1063
          %1614 = vst [vmem:[#allocation2 + $0x1f8] sm:$0xff] %v1065
          %1615 = vst [vmem:[#allocation2 + $0x200] sm:$0xff] %v1069
          %1616 = vst [vmem:[#allocation2 + $0x208] sm:$0xff] %v1071
          %1617 = vst [vmem:[#allocation2 + $0x210] sm:$0xff] %v1073
          %1618 = vst [vmem:[#allocation2 + $0x218] sm:$0xff] %v1075
          %1619 = vst [vmem:[#allocation2 + $0x220] sm:$0xff] %v1079
          %1620 = vst [vmem:[#allocation2 + $0x228] sm:$0xff] %v1081
          %1621 = vst [vmem:[#allocation2 + $0x230] sm:$0xff] %v1083
          %1622 = vst [vmem:[#allocation2 + $0x238] sm:$0xff] %v1085
          %1623 = vst [vmem:[#allocation2 + $0x240] sm:$0xff] %v1089
          %1624 = vst [vmem:[#allocation2 + $0x248] sm:$0xff] %v1091
          %1625 = vst [vmem:[#allocation2 + $0x250] sm:$0xff] %v1093
          %1626 = vst [vmem:[#allocation2 + $0x258] sm:$0xff] %v1095
          %1627 = vst [vmem:[#allocation2 + $0x260] sm:$0xff] %v1099
          %1628 = vst [vmem:[#allocation2 + $0x268] sm:$0xff] %v1101
          %1629 = vst [vmem:[#allocation2 + $0x270] sm:$0xff] %v1103
          %1630 = vst [vmem:[#allocation2 + $0x278] sm:$0xff] %v1105
          %1631 = vst [vmem:[#allocation2 + $0x280] sm:$0xff] %v1109
          %1632 = vst [vmem:[#allocation2 + $0x288] sm:$0xff] %v1111
          %1633 = vst [vmem:[#allocation2 + $0x290] sm:$0xff] %v1113
          %1634 = vst [vmem:[#allocation2 + $0x298] sm:$0xff] %v1115
          %1635 = vst [vmem:[#allocation2 + $0x2a0] sm:$0xff] %v1119
          %1636 = vst [vmem:[#allocation2 + $0x2a8] sm:$0xff] %v1121
          %1637 = vst [vmem:[#allocation2 + $0x2b0] sm:$0xff] %v1123
          %1638 = vst [vmem:[#allocation2 + $0x2b8] sm:$0xff] %v1125
          %1639 = vst [vmem:[#allocation2 + $0x2c0] sm:$0xff] %v1129
          %1640 = vst [vmem:[#allocation2 + $0x2c8] sm:$0xff] %v1131
          %1641 = vst [vmem:[#allocation2 + $0x2d0] sm:$0xff] %v1133
          %1642 = vst [vmem:[#allocation2 + $0x2d8] sm:$0xff] %v1135
          %1643 = vst [vmem:[#allocation2 + $0x2e0] sm:$0xff] %v1139
          %1644 = vst [vmem:[#allocation2 + $0x2e8] sm:$0xff] %v1141
          %1645 = vst [vmem:[#allocation2 + $0x2f0] sm:$0xff] %v1143
          %1646 = vst [vmem:[#allocation2 + $0x2f8] sm:$0xff] %v1145
          %1647 = vst [vmem:[#allocation2 + $0x300] sm:$0xff] %v1149
          %1648 = vst [vmem:[#allocation2 + $0x308] sm:$0xff] %v1151
          %1649 = vst [vmem:[#allocation2 + $0x310] sm:$0xff] %v1153
          %1650 = vst [vmem:[#allocation2 + $0x318] sm:$0xff] %v1155
          %1651 = vst [vmem:[#allocation2 + $0x320] sm:$0xff] %v1159
          %1652 = vst [vmem:[#allocation2 + $0x328] sm:$0xff] %v1161
          %1653 = vst [vmem:[#allocation2 + $0x330] sm:$0xff] %v1163
          %1654 = vst [vmem:[#allocation2 + $0x338] sm:$0xff] %v1165
          %1655 = vst [vmem:[#allocation2 + $0x340] sm:$0xff] %v1169
          %1656 = vst [vmem:[#allocation2 + $0x348] sm:$0xff] %v1171
          %1657 = vst [vmem:[#allocation2 + $0x350] sm:$0xff] %v1173
          %1658 = vst [vmem:[#allocation2 + $0x358] sm:$0xff] %v1175
          %1659 = vst [vmem:[#allocation2 + $0x360] sm:$0xff] %v1179
          %1660 = vst [vmem:[#allocation2 + $0x368] sm:$0xff] %v1181
          %1661 = vst [vmem:[#allocation2 + $0x370] sm:$0xff] %v1183
          %1662 = vst [vmem:[#allocation2 + $0x378] sm:$0xff] %v1185
          %1663 = vst [vmem:[#allocation2 + $0x380] sm:$0xff] %v1189
          %1664 = vst [vmem:[#allocation2 + $0x388] sm:$0xff] %v1191
          %1665 = vst [vmem:[#allocation2 + $0x390] sm:$0xff] %v1193
          %1666 = vst [vmem:[#allocation2 + $0x398] sm:$0xff] %v1195
          %1667 = vst [vmem:[#allocation2 + $0x3a0] sm:$0xff] %v1199
          %1668 = vst [vmem:[#allocation2 + $0x3a8] sm:$0xff] %v1201
          %1669 = vst [vmem:[#allocation2 + $0x3b0] sm:$0xff] %v1203
          %1670 = vst [vmem:[#allocation2 + $0x3b8] sm:$0xff] %v1205
          %1671 = vst [vmem:[#allocation2 + $0x3c0] sm:$0xff] %v1209
          %1672 = vst [vmem:[#allocation2 + $0x3c8] sm:$0xff] %v1211
          %1673 = vst [vmem:[#allocation2 + $0x3d0] sm:$0xff] %v1213
          %1674 = vst [vmem:[#allocation2 + $0x3d8] sm:$0xff] %v1215
          %1675 = vst [vmem:[#allocation2 + $0x3e0] sm:$0xff] %v1219
          %1676 = vst [vmem:[#allocation2 + $0x3e8] sm:$0xff] %v1221
          %1677 = vst [vmem:[#allocation2 + $0x3f0] sm:$0xff] %v1223
          %1678 = vst [vmem:[#allocation2 + $0x3f8] sm:$0xff] %v1225
          %1679 = vst [vmem:[#allocation2 + $0x400] sm:$0xff] %v1229
          %1680 = vst [vmem:[#allocation2 + $0x408] sm:$0xff] %v1231
          %1681 = vst [vmem:[#allocation2 + $0x410] sm:$0xff] %v1233
          %1682 = vst [vmem:[#allocation2 + $0x418] sm:$0xff] %v1235
          %1683 = vst [vmem:[#allocation2 + $0x420] sm:$0xff] %v1239
          %1684 = vst [vmem:[#allocation2 + $0x428] sm:$0xff] %v1241
          %1685 = vst [vmem:[#allocation2 + $0x430] sm:$0xff] %v1243
          %1686 = vst [vmem:[#allocation2 + $0x438] sm:$0xff] %v1245
          %1687 = vst [vmem:[#allocation2 + $0x440] sm:$0xff] %v1249
          %1688 = vst [vmem:[#allocation2 + $0x448] sm:$0xff] %v1251
          %1689 = vst [vmem:[#allocation2 + $0x450] sm:$0xff] %v1253
          %1690 = vst [vmem:[#allocation2 + $0x458] sm:$0xff] %v1255
          %1691 = vst [vmem:[#allocation2 + $0x460] sm:$0xff] %v1259
          %1692 = vst [vmem:[#allocation2 + $0x468] sm:$0xff] %v1261
          %1693 = vst [vmem:[#allocation2 + $0x470] sm:$0xff] %v1263
          %1694 = vst [vmem:[#allocation2 + $0x478] sm:$0xff] %v1265
          %1695 = vst [vmem:[#allocation2 + $0x480] sm:$0xff] %v1269
          %1696 = vst [vmem:[#allocation2 + $0x488] sm:$0xff] %v1271
          %1697 = vst [vmem:[#allocation2 + $0x490] sm:$0xff] %v1273
          %1698 = vst [vmem:[#allocation2 + $0x498] sm:$0xff] %v1275
          %1699 = vst [vmem:[#allocation2 + $0x4a0] sm:$0xff] %v1279
          %1700 = vst [vmem:[#allocation2 + $0x4a8] sm:$0xff] %v1281
          %1701 = vst [vmem:[#allocation2 + $0x4b0] sm:$0xff] %v1283
          %1702 = vst [vmem:[#allocation2 + $0x4b8] sm:$0xff] %v1285
          %1703 = vst [vmem:[#allocation2 + $0x4c0] sm:$0xff] %v1289
          %1704 = vst [vmem:[#allocation2 + $0x4c8] sm:$0xff] %v1291
          %1705 = vst [vmem:[#allocation2 + $0x4d0] sm:$0xff] %v1293
          %1706 = vst [vmem:[#allocation2 + $0x4d8] sm:$0xff] %v1295
          %1707 = vst [vmem:[#allocation2 + $0x4e0] sm:$0xff] %v1299
          %1708 = vst [vmem:[#allocation2 + $0x4e8] sm:$0xff] %v1301
          %1709 = vst [vmem:[#allocation2 + $0x4f0] sm:$0xff] %v1303
          %1710 = vst [vmem:[#allocation2 + $0x4f8] sm:$0xff] %v1305
          %1711 = vst [vmem:[#allocation2 + $0x500] sm:$0xff] %v1309
          %1712 = vst [vmem:[#allocation2 + $0x508] sm:$0xff] %v1311
          %1713 = vst [vmem:[#allocation2 + $0x510] sm:$0xff] %v1313
          %1714 = vst [vmem:[#allocation2 + $0x518] sm:$0xff] %v1315
          %1715 = vst [vmem:[#allocation2 + $0x520] sm:$0xff] %v1319
          %1716 = vst [vmem:[#allocation2 + $0x528] sm:$0xff] %v1321
          %1717 = vst [vmem:[#allocation2 + $0x530] sm:$0xff] %v1323
          %1718 = vst [vmem:[#allocation2 + $0x538] sm:$0xff] %v1325
          %1719 = vst [vmem:[#allocation2 + $0x540] sm:$0xff] %v1329
          %1720 = vst [vmem:[#allocation2 + $0x548] sm:$0xff] %v1331
          %1721 = vst [vmem:[#allocation2 + $0x550] sm:$0xff] %v1333
          %1722 = vst [vmem:[#allocation2 + $0x558] sm:$0xff] %v1335
          %1723 = vst [vmem:[#allocation2 + $0x560] sm:$0xff] %v1339
          %1724 = vst [vmem:[#allocation2 + $0x568] sm:$0xff] %v1341
          %1725 = vst [vmem:[#allocation2 + $0x570] sm:$0xff] %v1343
          %1726 = vst [vmem:[#allocation2 + $0x578] sm:$0xff] %v1345
          %1727 = vst [vmem:[#allocation2 + $0x580] sm:$0xff] %v1349
          %1728 = vst [vmem:[#allocation2 + $0x588] sm:$0xff] %v1351
          %1729 = vst [vmem:[#allocation2 + $0x590] sm:$0xff] %v1353
          %1730 = vst [vmem:[#allocation2 + $0x598] sm:$0xff] %v1355
          %1731 = vst [vmem:[#allocation2 + $0x5a0] sm:$0xff] %v1359
          %1732 = vst [vmem:[#allocation2 + $0x5a8] sm:$0xff] %v1361
          %1733 = vst [vmem:[#allocation2 + $0x5b0] sm:$0xff] %v1363
          %1734 = vst [vmem:[#allocation2 + $0x5b8] sm:$0xff] %v1365
          %1735 = vst [vmem:[#allocation2 + $0x5c0] sm:$0xff] %v1369
          %1736 = vst [vmem:[#allocation2 + $0x5c8] sm:$0xff] %v1371
          %1737 = vst [vmem:[#allocation2 + $0x5d0] sm:$0xff] %v1373
          %1738 = vst [vmem:[#allocation2 + $0x5d8] sm:$0xff] %v1375
          %1739 = vst [vmem:[#allocation2 + $0x5e0] sm:$0xff] %v1379
          %1740 = vst [vmem:[#allocation2 + $0x5e8] sm:$0xff] %v1381
          %1741 = vst [vmem:[#allocation2 + $0x5f0] sm:$0xff] %v1383
          %1742 = vst [vmem:[#allocation2 + $0x5f8] sm:$0xff] %v1385
          %1743 = vst [vmem:[#allocation2 + $0x600] sm:$0xff] %v1389
          %1744 = vst [vmem:[#allocation2 + $0x608] sm:$0xff] %v1391
          %1745 = vst [vmem:[#allocation2 + $0x610] sm:$0xff] %v1393
          %1746 = vst [vmem:[#allocation2 + $0x618] sm:$0xff] %v1395
          %1747 = vst [vmem:[#allocation2 + $0x620] sm:$0xff] %v1399
          %1748 = vst [vmem:[#allocation2 + $0x628] sm:$0xff] %v1401
          %1749 = vst [vmem:[#allocation2 + $0x630] sm:$0xff] %v1403
          %1750 = vst [vmem:[#allocation2 + $0x638] sm:$0xff] %v1405
          %1751 = vst [vmem:[#allocation2 + $0x640] sm:$0xff] %v1409
          %1752 = vst [vmem:[#allocation2 + $0x648] sm:$0xff] %v1411
          %1753 = vst [vmem:[#allocation2 + $0x650] sm:$0xff] %v1413
          %1754 = vst [vmem:[#allocation2 + $0x658] sm:$0xff] %v1415
          %1755 = vst [vmem:[#allocation2 + $0x660] sm:$0xff] %v1419
          %1756 = vst [vmem:[#allocation2 + $0x668] sm:$0xff] %v1421
          %1757 = vst [vmem:[#allocation2 + $0x670] sm:$0xff] %v1423
          %1758 = vst [vmem:[#allocation2 + $0x678] sm:$0xff] %v1425
          %1759 = vst [vmem:[#allocation2 + $0x680] sm:$0xff] %v1429
          %1760 = vst [vmem:[#allocation2 + $0x688] sm:$0xff] %v1431
          %1761 = vst [vmem:[#allocation2 + $0x690] sm:$0xff] %v1433
          %1762 = vst [vmem:[#allocation2 + $0x698] sm:$0xff] %v1435
          %1763 = vst [vmem:[#allocation2 + $0x6a0] sm:$0xff] %v1439
          %1764 = vst [vmem:[#allocation2 + $0x6a8] sm:$0xff] %v1441
          %1765 = vst [vmem:[#allocation2 + $0x6b0] sm:$0xff] %v1443
          %1766 = vst [vmem:[#allocation2 + $0x6b8] sm:$0xff] %v1445
          %1767 = vst [vmem:[#allocation2 + $0x6c0] sm:$0xff] %v1449
          %1768 = vst [vmem:[#allocation2 + $0x6c8] sm:$0xff] %v1451
          %1769 = vst [vmem:[#allocation2 + $0x6d0] sm:$0xff] %v1453
          %1770 = vst [vmem:[#allocation2 + $0x6d8] sm:$0xff] %v1455
          %1771 = vst [vmem:[#allocation2 + $0x6e0] sm:$0xff] %v1459
          %1772 = vst [vmem:[#allocation2 + $0x6e8] sm:$0xff] %v1461
          %1773 = vst [vmem:[#allocation2 + $0x6f0] sm:$0xff] %v1463
          %1774 = vst [vmem:[#allocation2 + $0x6f8] sm:$0xff] %v1465
          %1775 = vst [vmem:[#allocation2 + $0x700] sm:$0xff] %v1469
          %1776 = vst [vmem:[#allocation2 + $0x708] sm:$0xff] %v1471
          %1777 = vst [vmem:[#allocation2 + $0x710] sm:$0xff] %v1473
          %1778 = vst [vmem:[#allocation2 + $0x718] sm:$0xff] %v1475
          %1779 = vst [vmem:[#allocation2 + $0x720] sm:$0xff] %v1479
          %1780 = vst [vmem:[#allocation2 + $0x728] sm:$0xff] %v1481
          %1781 = vst [vmem:[#allocation2 + $0x730] sm:$0xff] %v1483
          %1782 = vst [vmem:[#allocation2 + $0x738] sm:$0xff] %v1485
          %1783 = vst [vmem:[#allocation2 + $0x740] sm:$0xff] %v1489
          %1784 = vst [vmem:[#allocation2 + $0x748] sm:$0xff] %v1491
          %1785 = vst [vmem:[#allocation2 + $0x750] sm:$0xff] %v1493
          %1786 = vst [vmem:[#allocation2 + $0x758] sm:$0xff] %v1495
          %1787 = vst [vmem:[#allocation2 + $0x760] sm:$0xff] %v1499
          %1788 = vst [vmem:[#allocation2 + $0x768] sm:$0xff] %v1501
          %1789 = vst [vmem:[#allocation2 + $0x770] sm:$0xff] %v1503
          %1790 = vst [vmem:[#allocation2 + $0x778] sm:$0xff] %v1505
          %1791 = vst [vmem:[#allocation2 + $0x780] sm:$0xff] %v1509
          %1792 = vst [vmem:[#allocation2 + $0x788] sm:$0xff] %v1511
          %1793 = vst [vmem:[#allocation2 + $0x790] sm:$0xff] %v1513
          %1794 = vst [vmem:[#allocation2 + $0x798] sm:$0xff] %v1515
          %1795 = vst [vmem:[#allocation2 + $0x7a0] sm:$0xff] %v1519
          %1796 = vst [vmem:[#allocation2 + $0x7a8] sm:$0xff] %v1521
          %1797 = vst [vmem:[#allocation2 + $0x7b0] sm:$0xff] %v1523
          %1798 = vst [vmem:[#allocation2 + $0x7b8] sm:$0xff] %v1525
          %1799 = vst [vmem:[#allocation2 + $0x7c0] sm:$0xff] %v1529
          %1800 = vst [vmem:[#allocation2 + $0x7c8] sm:$0xff] %v1531
          %1801 = vst [vmem:[#allocation2 + $0x7d0] sm:$0xff] %v1533
          %1802 = vst [vmem:[#allocation2 + $0x7d8] sm:$0xff] %v1535
          %1803 = vst [vmem:[#allocation2 + $0x7e0] sm:$0xff] %v1539
          %1804 = vst [vmem:[#allocation2 + $0x7e8] sm:$0xff] %v1541
          %1805 = vst [vmem:[#allocation2 + $0x7f0] sm:$0xff] %v1543
          %1806 = vst [vmem:[#allocation2 + $0x7f8] sm:$0xff] %v1545
        $region44: #{tpu_custom_call.1} parent=31 // pred_fallthru
          _
        %p1807 = scmp.gt.s32.totalorder %s28, 0
        // Predicated region
        $region45: #{tpu_custom_call.1} parent=31 // pred_check
          %p1808 = pneg %p1807
        $region46: #{tpu_custom_call.1} parent=31 // pred_check_branch
          %1810 = sbr.rel (%p1808) target = $region48
        $region47: #{tpu_custom_call.1} parent=31 // pred_region
          %v1811 = vld [vmem:[#allocation2] sm:$0xff]
          %v1812 = vld [vmem:[#allocation2 + $0x8] sm:$0xff]
          %v1813 = vld [vmem:[#allocation2 + $0x10] sm:$0xff]
          %v1814 = vld [vmem:[#allocation2 + $0x18] sm:$0xff]
          %v1815 = vld [vmem:[#allocation2 + $0x20] sm:$0xff]
          %v1816 = vld [vmem:[#allocation2 + $0x28] sm:$0xff]
          %v1817 = vld [vmem:[#allocation2 + $0x30] sm:$0xff]
          %v1818 = vld [vmem:[#allocation2 + $0x38] sm:$0xff]
          %v1819 = vld [vmem:[#allocation2 + $0x40] sm:$0xff]
          %v1820 = vld [vmem:[#allocation2 + $0x48] sm:$0xff]
          %v1821 = vld [vmem:[#allocation2 + $0x50] sm:$0xff]
          %v1822 = vld [vmem:[#allocation2 + $0x58] sm:$0xff]
          %v1823 = vld [vmem:[#allocation2 + $0x60] sm:$0xff]
          %v1824 = vld [vmem:[#allocation2 + $0x68] sm:$0xff]
          %v1825 = vld [vmem:[#allocation2 + $0x70] sm:$0xff]
          %v1826 = vld [vmem:[#allocation2 + $0x78] sm:$0xff]
          %v1827 = vld [vmem:[#allocation2 + $0x80] sm:$0xff]
          %v1828 = vld [vmem:[#allocation2 + $0x88] sm:$0xff]
          %v1829 = vld [vmem:[#allocation2 + $0x90] sm:$0xff]
          %v1830 = vld [vmem:[#allocation2 + $0x98] sm:$0xff]
          %v1831 = vld [vmem:[#allocation2 + $0xa0] sm:$0xff]
          %v1832 = vld [vmem:[#allocation2 + $0xa8] sm:$0xff]
          %v1833 = vld [vmem:[#allocation2 + $0xb0] sm:$0xff]
          %v1834 = vld [vmem:[#allocation2 + $0xb8] sm:$0xff]
          %v1835 = vld [vmem:[#allocation2 + $0xc0] sm:$0xff]
          %v1836 = vld [vmem:[#allocation2 + $0xc8] sm:$0xff]
          %v1837 = vld [vmem:[#allocation2 + $0xd0] sm:$0xff]
          %v1838 = vld [vmem:[#allocation2 + $0xd8] sm:$0xff]
          %v1839 = vld [vmem:[#allocation2 + $0xe0] sm:$0xff]
          %v1840 = vld [vmem:[#allocation2 + $0xe8] sm:$0xff]
          %v1841 = vld [vmem:[#allocation2 + $0xf0] sm:$0xff]
          %v1842 = vld [vmem:[#allocation2 + $0xf8] sm:$0xff]
          %v1843 = vld [vmem:[#allocation2 + $0x100] sm:$0xff]
          %v1844 = vld [vmem:[#allocation2 + $0x108] sm:$0xff]
          %v1845 = vld [vmem:[#allocation2 + $0x110] sm:$0xff]
          %v1846 = vld [vmem:[#allocation2 + $0x118] sm:$0xff]
          %v1847 = vld [vmem:[#allocation2 + $0x120] sm:$0xff]
          %v1848 = vld [vmem:[#allocation2 + $0x128] sm:$0xff]
          %v1849 = vld [vmem:[#allocation2 + $0x130] sm:$0xff]
          %v1850 = vld [vmem:[#allocation2 + $0x138] sm:$0xff]
          %v1851 = vld [vmem:[#allocation2 + $0x140] sm:$0xff]
          %v1852 = vld [vmem:[#allocation2 + $0x148] sm:$0xff]
          %v1853 = vld [vmem:[#allocation2 + $0x150] sm:$0xff]
          %v1854 = vld [vmem:[#allocation2 + $0x158] sm:$0xff]
          %v1855 = vld [vmem:[#allocation2 + $0x160] sm:$0xff]
          %v1856 = vld [vmem:[#allocation2 + $0x168] sm:$0xff]
          %v1857 = vld [vmem:[#allocation2 + $0x170] sm:$0xff]
          %v1858 = vld [vmem:[#allocation2 + $0x178] sm:$0xff]
          %v1859 = vld [vmem:[#allocation2 + $0x180] sm:$0xff]
          %v1860 = vld [vmem:[#allocation2 + $0x188] sm:$0xff]
          %v1861 = vld [vmem:[#allocation2 + $0x190] sm:$0xff]
          %v1862 = vld [vmem:[#allocation2 + $0x198] sm:$0xff]
          %v1863 = vld [vmem:[#allocation2 + $0x1a0] sm:$0xff]
          %v1864 = vld [vmem:[#allocation2 + $0x1a8] sm:$0xff]
          %v1865 = vld [vmem:[#allocation2 + $0x1b0] sm:$0xff]
          %v1866 = vld [vmem:[#allocation2 + $0x1b8] sm:$0xff]
          %v1867 = vld [vmem:[#allocation2 + $0x1c0] sm:$0xff]
          %v1868 = vld [vmem:[#allocation2 + $0x1c8] sm:$0xff]
          %v1869 = vld [vmem:[#allocation2 + $0x1d0] sm:$0xff]
          %v1870 = vld [vmem:[#allocation2 + $0x1d8] sm:$0xff]
          %v1871 = vld [vmem:[#allocation2 + $0x1e0] sm:$0xff]
          %v1872 = vld [vmem:[#allocation2 + $0x1e8] sm:$0xff]
          %v1873 = vld [vmem:[#allocation2 + $0x1f0] sm:$0xff]
          %v1874 = vld [vmem:[#allocation2 + $0x1f8] sm:$0xff]
          %v1875 = vld [vmem:[#allocation2 + $0x200] sm:$0xff]
          %v1876 = vld [vmem:[#allocation2 + $0x208] sm:$0xff]
          %v1877 = vld [vmem:[#allocation2 + $0x210] sm:$0xff]
          %v1878 = vld [vmem:[#allocation2 + $0x218] sm:$0xff]
          %v1879 = vld [vmem:[#allocation2 + $0x220] sm:$0xff]
          %v1880 = vld [vmem:[#allocation2 + $0x228] sm:$0xff]
          %v1881 = vld [vmem:[#allocation2 + $0x230] sm:$0xff]
          %v1882 = vld [vmem:[#allocation2 + $0x238] sm:$0xff]
          %v1883 = vld [vmem:[#allocation2 + $0x240] sm:$0xff]
          %v1884 = vld [vmem:[#allocation2 + $0x248] sm:$0xff]
          %v1885 = vld [vmem:[#allocation2 + $0x250] sm:$0xff]
          %v1886 = vld [vmem:[#allocation2 + $0x258] sm:$0xff]
          %v1887 = vld [vmem:[#allocation2 + $0x260] sm:$0xff]
          %v1888 = vld [vmem:[#allocation2 + $0x268] sm:$0xff]
          %v1889 = vld [vmem:[#allocation2 + $0x270] sm:$0xff]
          %v1890 = vld [vmem:[#allocation2 + $0x278] sm:$0xff]
          %v1891 = vld [vmem:[#allocation2 + $0x280] sm:$0xff]
          %v1892 = vld [vmem:[#allocation2 + $0x288] sm:$0xff]
          %v1893 = vld [vmem:[#allocation2 + $0x290] sm:$0xff]
          %v1894 = vld [vmem:[#allocation2 + $0x298] sm:$0xff]
          %v1895 = vld [vmem:[#allocation2 + $0x2a0] sm:$0xff]
          %v1896 = vld [vmem:[#allocation2 + $0x2a8] sm:$0xff]
          %v1897 = vld [vmem:[#allocation2 + $0x2b0] sm:$0xff]
          %v1898 = vld [vmem:[#allocation2 + $0x2b8] sm:$0xff]
          %v1899 = vld [vmem:[#allocation2 + $0x2c0] sm:$0xff]
          %v1900 = vld [vmem:[#allocation2 + $0x2c8] sm:$0xff]
          %v1901 = vld [vmem:[#allocation2 + $0x2d0] sm:$0xff]
          %v1902 = vld [vmem:[#allocation2 + $0x2d8] sm:$0xff]
          %v1903 = vld [vmem:[#allocation2 + $0x2e0] sm:$0xff]
          %v1904 = vld [vmem:[#allocation2 + $0x2e8] sm:$0xff]
          %v1905 = vld [vmem:[#allocation2 + $0x2f0] sm:$0xff]
          %v1906 = vld [vmem:[#allocation2 + $0x2f8] sm:$0xff]
          %v1907 = vld [vmem:[#allocation2 + $0x300] sm:$0xff]
          %v1908 = vld [vmem:[#allocation2 + $0x308] sm:$0xff]
          %v1909 = vld [vmem:[#allocation2 + $0x310] sm:$0xff]
          %v1910 = vld [vmem:[#allocation2 + $0x318] sm:$0xff]
          %v1911 = vld [vmem:[#allocation2 + $0x320] sm:$0xff]
          %v1912 = vld [vmem:[#allocation2 + $0x328] sm:$0xff]
          %v1913 = vld [vmem:[#allocation2 + $0x330] sm:$0xff]
          %v1914 = vld [vmem:[#allocation2 + $0x338] sm:$0xff]
          %v1915 = vld [vmem:[#allocation2 + $0x340] sm:$0xff]
          %v1916 = vld [vmem:[#allocation2 + $0x348] sm:$0xff]
          %v1917 = vld [vmem:[#allocation2 + $0x350] sm:$0xff]
          %v1918 = vld [vmem:[#allocation2 + $0x358] sm:$0xff]
          %v1919 = vld [vmem:[#allocation2 + $0x360] sm:$0xff]
          %v1920 = vld [vmem:[#allocation2 + $0x368] sm:$0xff]
          %v1921 = vld [vmem:[#allocation2 + $0x370] sm:$0xff]
          %v1922 = vld [vmem:[#allocation2 + $0x378] sm:$0xff]
          %v1923 = vld [vmem:[#allocation2 + $0x380] sm:$0xff]
          %v1924 = vld [vmem:[#allocation2 + $0x388] sm:$0xff]
          %v1925 = vld [vmem:[#allocation2 + $0x390] sm:$0xff]
          %v1926 = vld [vmem:[#allocation2 + $0x398] sm:$0xff]
          %v1927 = vld [vmem:[#allocation2 + $0x3a0] sm:$0xff]
          %v1928 = vld [vmem:[#allocation2 + $0x3a8] sm:$0xff]
          %v1929 = vld [vmem:[#allocation2 + $0x3b0] sm:$0xff]
          %v1930 = vld [vmem:[#allocation2 + $0x3b8] sm:$0xff]
          %v1931 = vld [vmem:[#allocation2 + $0x3c0] sm:$0xff]
          %v1932 = vld [vmem:[#allocation2 + $0x3c8] sm:$0xff]
          %v1933 = vld [vmem:[#allocation2 + $0x3d0] sm:$0xff]
          %v1934 = vld [vmem:[#allocation2 + $0x3d8] sm:$0xff]
          %v1935 = vld [vmem:[#allocation2 + $0x3e0] sm:$0xff]
          %v1936 = vld [vmem:[#allocation2 + $0x3e8] sm:$0xff]
          %v1937 = vld [vmem:[#allocation2 + $0x3f0] sm:$0xff]
          %v1938 = vld [vmem:[#allocation2 + $0x3f8] sm:$0xff]
          %v1939 = vld [vmem:[#allocation2 + $0x400] sm:$0xff]
          %v1940 = vld [vmem:[#allocation2 + $0x408] sm:$0xff]
          %v1941 = vld [vmem:[#allocation2 + $0x410] sm:$0xff]
          %v1942 = vld [vmem:[#allocation2 + $0x418] sm:$0xff]
          %v1943 = vld [vmem:[#allocation2 + $0x420] sm:$0xff]
          %v1944 = vld [vmem:[#allocation2 + $0x428] sm:$0xff]
          %v1945 = vld [vmem:[#allocation2 + $0x430] sm:$0xff]
          %v1946 = vld [vmem:[#allocation2 + $0x438] sm:$0xff]
          %v1947 = vld [vmem:[#allocation2 + $0x440] sm:$0xff]
          %v1948 = vld [vmem:[#allocation2 + $0x448] sm:$0xff]
          %v1949 = vld [vmem:[#allocation2 + $0x450] sm:$0xff]
          %v1950 = vld [vmem:[#allocation2 + $0x458] sm:$0xff]
          %v1951 = vld [vmem:[#allocation2 + $0x460] sm:$0xff]
          %v1952 = vld [vmem:[#allocation2 + $0x468] sm:$0xff]
          %v1953 = vld [vmem:[#allocation2 + $0x470] sm:$0xff]
          %v1954 = vld [vmem:[#allocation2 + $0x478] sm:$0xff]
          %v1955 = vld [vmem:[#allocation2 + $0x480] sm:$0xff]
          %v1956 = vld [vmem:[#allocation2 + $0x488] sm:$0xff]
          %v1957 = vld [vmem:[#allocation2 + $0x490] sm:$0xff]
          %v1958 = vld [vmem:[#allocation2 + $0x498] sm:$0xff]
          %v1959 = vld [vmem:[#allocation2 + $0x4a0] sm:$0xff]
          %v1960 = vld [vmem:[#allocation2 + $0x4a8] sm:$0xff]
          %v1961 = vld [vmem:[#allocation2 + $0x4b0] sm:$0xff]
          %v1962 = vld [vmem:[#allocation2 + $0x4b8] sm:$0xff]
          %v1963 = vld [vmem:[#allocation2 + $0x4c0] sm:$0xff]
          %v1964 = vld [vmem:[#allocation2 + $0x4c8] sm:$0xff]
          %v1965 = vld [vmem:[#allocation2 + $0x4d0] sm:$0xff]
          %v1966 = vld [vmem:[#allocation2 + $0x4d8] sm:$0xff]
          %v1967 = vld [vmem:[#allocation2 + $0x4e0] sm:$0xff]
          %v1968 = vld [vmem:[#allocation2 + $0x4e8] sm:$0xff]
          %v1969 = vld [vmem:[#allocation2 + $0x4f0] sm:$0xff]
          %v1970 = vld [vmem:[#allocation2 + $0x4f8] sm:$0xff]
          %v1971 = vld [vmem:[#allocation2 + $0x500] sm:$0xff]
          %v1972 = vld [vmem:[#allocation2 + $0x508] sm:$0xff]
          %v1973 = vld [vmem:[#allocation2 + $0x510] sm:$0xff]
          %v1974 = vld [vmem:[#allocation2 + $0x518] sm:$0xff]
          %v1975 = vld [vmem:[#allocation2 + $0x520] sm:$0xff]
          %v1976 = vld [vmem:[#allocation2 + $0x528] sm:$0xff]
          %v1977 = vld [vmem:[#allocation2 + $0x530] sm:$0xff]
          %v1978 = vld [vmem:[#allocation2 + $0x538] sm:$0xff]
          %v1979 = vld [vmem:[#allocation2 + $0x540] sm:$0xff]
          %v1980 = vld [vmem:[#allocation2 + $0x548] sm:$0xff]
          %v1981 = vld [vmem:[#allocation2 + $0x550] sm:$0xff]
          %v1982 = vld [vmem:[#allocation2 + $0x558] sm:$0xff]
          %v1983 = vld [vmem:[#allocation2 + $0x560] sm:$0xff]
          %v1984 = vld [vmem:[#allocation2 + $0x568] sm:$0xff]
          %v1985 = vld [vmem:[#allocation2 + $0x570] sm:$0xff]
          %v1986 = vld [vmem:[#allocation2 + $0x578] sm:$0xff]
          %v1987 = vld [vmem:[#allocation2 + $0x580] sm:$0xff]
          %v1988 = vld [vmem:[#allocation2 + $0x588] sm:$0xff]
          %v1989 = vld [vmem:[#allocation2 + $0x590] sm:$0xff]
          %v1990 = vld [vmem:[#allocation2 + $0x598] sm:$0xff]
          %v1991 = vld [vmem:[#allocation2 + $0x5a0] sm:$0xff]
          %v1992 = vld [vmem:[#allocation2 + $0x5a8] sm:$0xff]
          %v1993 = vld [vmem:[#allocation2 + $0x5b0] sm:$0xff]
          %v1994 = vld [vmem:[#allocation2 + $0x5b8] sm:$0xff]
          %v1995 = vld [vmem:[#allocation2 + $0x5c0] sm:$0xff]
          %v1996 = vld [vmem:[#allocation2 + $0x5c8] sm:$0xff]
          %v1997 = vld [vmem:[#allocation2 + $0x5d0] sm:$0xff]
          %v1998 = vld [vmem:[#allocation2 + $0x5d8] sm:$0xff]
          %v1999 = vld [vmem:[#allocation2 + $0x5e0] sm:$0xff]
          %v2000 = vld [vmem:[#allocation2 + $0x5e8] sm:$0xff]
          %v2001 = vld [vmem:[#allocation2 + $0x5f0] sm:$0xff]
          %v2002 = vld [vmem:[#allocation2 + $0x5f8] sm:$0xff]
          %v2003 = vld [vmem:[#allocation2 + $0x600] sm:$0xff]
          %v2004 = vld [vmem:[#allocation2 + $0x608] sm:$0xff]
          %v2005 = vld [vmem:[#allocation2 + $0x610] sm:$0xff]
          %v2006 = vld [vmem:[#allocation2 + $0x618] sm:$0xff]
          %v2007 = vld [vmem:[#allocation2 + $0x620] sm:$0xff]
          %v2008 = vld [vmem:[#allocation2 + $0x628] sm:$0xff]
          %v2009 = vld [vmem:[#allocation2 + $0x630] sm:$0xff]
          %v2010 = vld [vmem:[#allocation2 + $0x638] sm:$0xff]
          %v2011 = vld [vmem:[#allocation2 + $0x640] sm:$0xff]
          %v2012 = vld [vmem:[#allocation2 + $0x648] sm:$0xff]
          %v2013 = vld [vmem:[#allocation2 + $0x650] sm:$0xff]
          %v2014 = vld [vmem:[#allocation2 + $0x658] sm:$0xff]
          %v2015 = vld [vmem:[#allocation2 + $0x660] sm:$0xff]
          %v2016 = vld [vmem:[#allocation2 + $0x668] sm:$0xff]
          %v2017 = vld [vmem:[#allocation2 + $0x670] sm:$0xff]
          %v2018 = vld [vmem:[#allocation2 + $0x678] sm:$0xff]
          %v2019 = vld [vmem:[#allocation2 + $0x680] sm:$0xff]
          %v2020 = vld [vmem:[#allocation2 + $0x688] sm:$0xff]
          %v2021 = vld [vmem:[#allocation2 + $0x690] sm:$0xff]
          %v2022 = vld [vmem:[#allocation2 + $0x698] sm:$0xff]
          %v2023 = vld [vmem:[#allocation2 + $0x6a0] sm:$0xff]
          %v2024 = vld [vmem:[#allocation2 + $0x6a8] sm:$0xff]
          %v2025 = vld [vmem:[#allocation2 + $0x6b0] sm:$0xff]
          %v2026 = vld [vmem:[#allocation2 + $0x6b8] sm:$0xff]
          %v2027 = vld [vmem:[#allocation2 + $0x6c0] sm:$0xff]
          %v2028 = vld [vmem:[#allocation2 + $0x6c8] sm:$0xff]
          %v2029 = vld [vmem:[#allocation2 + $0x6d0] sm:$0xff]
          %v2030 = vld [vmem:[#allocation2 + $0x6d8] sm:$0xff]
          %v2031 = vld [vmem:[#allocation2 + $0x6e0] sm:$0xff]
          %v2032 = vld [vmem:[#allocation2 + $0x6e8] sm:$0xff]
          %v2033 = vld [vmem:[#allocation2 + $0x6f0] sm:$0xff]
          %v2034 = vld [vmem:[#allocation2 + $0x6f8] sm:$0xff]
          %v2035 = vld [vmem:[#allocation2 + $0x700] sm:$0xff]
          %v2036 = vld [vmem:[#allocation2 + $0x708] sm:$0xff]
          %v2037 = vld [vmem:[#allocation2 + $0x710] sm:$0xff]
          %v2038 = vld [vmem:[#allocation2 + $0x718] sm:$0xff]
          %v2039 = vld [vmem:[#allocation2 + $0x720] sm:$0xff]
          %v2040 = vld [vmem:[#allocation2 + $0x728] sm:$0xff]
          %v2041 = vld [vmem:[#allocation2 + $0x730] sm:$0xff]
          %v2042 = vld [vmem:[#allocation2 + $0x738] sm:$0xff]
          %v2043 = vld [vmem:[#allocation2 + $0x740] sm:$0xff]
          %v2044 = vld [vmem:[#allocation2 + $0x748] sm:$0xff]
          %v2045 = vld [vmem:[#allocation2 + $0x750] sm:$0xff]
          %v2046 = vld [vmem:[#allocation2 + $0x758] sm:$0xff]
          %v2047 = vld [vmem:[#allocation2 + $0x760] sm:$0xff]
          %v2048 = vld [vmem:[#allocation2 + $0x768] sm:$0xff]
          %v2049 = vld [vmem:[#allocation2 + $0x770] sm:$0xff]
          %v2050 = vld [vmem:[#allocation2 + $0x778] sm:$0xff]
          %v2051 = vld [vmem:[#allocation2 + $0x780] sm:$0xff]
          %v2052 = vld [vmem:[#allocation2 + $0x788] sm:$0xff]
          %v2053 = vld [vmem:[#allocation2 + $0x790] sm:$0xff]
          %v2054 = vld [vmem:[#allocation2 + $0x798] sm:$0xff]
          %v2055 = vld [vmem:[#allocation2 + $0x7a0] sm:$0xff]
          %v2056 = vld [vmem:[#allocation2 + $0x7a8] sm:$0xff]
          %v2057 = vld [vmem:[#allocation2 + $0x7b0] sm:$0xff]
          %v2058 = vld [vmem:[#allocation2 + $0x7b8] sm:$0xff]
          %v2059 = vld [vmem:[#allocation2 + $0x7c0] sm:$0xff]
          %v2060 = vld [vmem:[#allocation2 + $0x7c8] sm:$0xff]
          %v2061 = vld [vmem:[#allocation2 + $0x7d0] sm:$0xff]
          %v2062 = vld [vmem:[#allocation2 + $0x7d8] sm:$0xff]
          %v2063 = vld [vmem:[#allocation2 + $0x7e0] sm:$0xff]
          %v2064 = vld [vmem:[#allocation2 + $0x7e8] sm:$0xff]
          %v2065 = vld [vmem:[#allocation2 + $0x7f0] sm:$0xff]
          %v2066 = vld [vmem:[#allocation2 + $0x7f8] sm:$0xff]
          %v2067 = vadd.f32 %v1811, %v909
          %v2068 = vadd.f32 %v1812, %v911
          %v2069 = vadd.f32 %v1813, %v913
          %v2070 = vadd.f32 %v1814, %v915
          %v2071 = vadd.f32 %v1815, %v919
          %v2072 = vadd.f32 %v1816, %v921
          %v2073 = vadd.f32 %v1817, %v923
          %v2074 = vadd.f32 %v1818, %v925
          %v2075 = vadd.f32 %v1819, %v929
          %v2076 = vadd.f32 %v1820, %v931
          %v2077 = vadd.f32 %v1821, %v933
          %v2078 = vadd.f32 %v1822, %v935
          %v2079 = vadd.f32 %v1823, %v939
          %v2080 = vadd.f32 %v1824, %v941
          %v2081 = vadd.f32 %v1825, %v943
          %v2082 = vadd.f32 %v1826, %v945
          %v2083 = vadd.f32 %v1827, %v949
          %v2084 = vadd.f32 %v1828, %v951
          %v2085 = vadd.f32 %v1829, %v953
          %v2086 = vadd.f32 %v1830, %v955
          %v2087 = vadd.f32 %v1831, %v959
          %v2088 = vadd.f32 %v1832, %v961
          %v2089 = vadd.f32 %v1833, %v963
          %v2090 = vadd.f32 %v1834, %v965
          %v2091 = vadd.f32 %v1835, %v969
          %v2092 = vadd.f32 %v1836, %v971
          %v2093 = vadd.f32 %v1837, %v973
          %v2094 = vadd.f32 %v1838, %v975
          %v2095 = vadd.f32 %v1839, %v979
          %v2096 = vadd.f32 %v1840, %v981
          %v2097 = vadd.f32 %v1841, %v983
          %v2098 = vadd.f32 %v1842, %v985
          %v2099 = vadd.f32 %v1843, %v989
          %v2100 = vadd.f32 %v1844, %v991
          %v2101 = vadd.f32 %v1845, %v993
          %v2102 = vadd.f32 %v1846, %v995
          %v2103 = vadd.f32 %v1847, %v999
          %v2104 = vadd.f32 %v1848, %v1001
          %v2105 = vadd.f32 %v1849, %v1003
          %v2106 = vadd.f32 %v1850, %v1005
          %v2107 = vadd.f32 %v1851, %v1009
          %v2108 = vadd.f32 %v1852, %v1011
          %v2109 = vadd.f32 %v1853, %v1013
          %v2110 = vadd.f32 %v1854, %v1015
          %v2111 = vadd.f32 %v1855, %v1019
          %v2112 = vadd.f32 %v1856, %v1021
          %v2113 = vadd.f32 %v1857, %v1023
          %v2114 = vadd.f32 %v1858, %v1025
          %v2115 = vadd.f32 %v1859, %v1029
          %v2116 = vadd.f32 %v1860, %v1031
          %v2117 = vadd.f32 %v1861, %v1033
          %v2118 = vadd.f32 %v1862, %v1035
          %v2119 = vadd.f32 %v1863, %v1039
          %v2120 = vadd.f32 %v1864, %v1041
          %v2121 = vadd.f32 %v1865, %v1043
          %v2122 = vadd.f32 %v1866, %v1045
          %v2123 = vadd.f32 %v1867, %v1049
          %v2124 = vadd.f32 %v1868, %v1051
          %v2125 = vadd.f32 %v1869, %v1053
          %v2126 = vadd.f32 %v1870, %v1055
          %v2127 = vadd.f32 %v1871, %v1059
          %v2128 = vadd.f32 %v1872, %v1061
          %v2129 = vadd.f32 %v1873, %v1063
          %v2130 = vadd.f32 %v1874, %v1065
          %v2131 = vadd.f32 %v1875, %v1069
          %v2132 = vadd.f32 %v1876, %v1071
          %v2133 = vadd.f32 %v1877, %v1073
          %v2134 = vadd.f32 %v1878, %v1075
          %v2135 = vadd.f32 %v1879, %v1079
          %v2136 = vadd.f32 %v1880, %v1081
          %v2137 = vadd.f32 %v1881, %v1083
          %v2138 = vadd.f32 %v1882, %v1085
          %v2139 = vadd.f32 %v1883, %v1089
          %v2140 = vadd.f32 %v1884, %v1091
          %v2141 = vadd.f32 %v1885, %v1093
          %v2142 = vadd.f32 %v1886, %v1095
          %v2143 = vadd.f32 %v1887, %v1099
          %v2144 = vadd.f32 %v1888, %v1101
          %v2145 = vadd.f32 %v1889, %v1103
          %v2146 = vadd.f32 %v1890, %v1105
          %v2147 = vadd.f32 %v1891, %v1109
          %v2148 = vadd.f32 %v1892, %v1111
          %v2149 = vadd.f32 %v1893, %v1113
          %v2150 = vadd.f32 %v1894, %v1115
          %v2151 = vadd.f32 %v1895, %v1119
          %v2152 = vadd.f32 %v1896, %v1121
          %v2153 = vadd.f32 %v1897, %v1123
          %v2154 = vadd.f32 %v1898, %v1125
          %v2155 = vadd.f32 %v1899, %v1129
          %v2156 = vadd.f32 %v1900, %v1131
          %v2157 = vadd.f32 %v1901, %v1133
          %v2158 = vadd.f32 %v1902, %v1135
          %v2159 = vadd.f32 %v1903, %v1139
          %v2160 = vadd.f32 %v1904, %v1141
          %v2161 = vadd.f32 %v1905, %v1143
          %v2162 = vadd.f32 %v1906, %v1145
          %v2163 = vadd.f32 %v1907, %v1149
          %v2164 = vadd.f32 %v1908, %v1151
          %v2165 = vadd.f32 %v1909, %v1153
          %v2166 = vadd.f32 %v1910, %v1155
          %v2167 = vadd.f32 %v1911, %v1159
          %v2168 = vadd.f32 %v1912, %v1161
          %v2169 = vadd.f32 %v1913, %v1163
          %v2170 = vadd.f32 %v1914, %v1165
          %v2171 = vadd.f32 %v1915, %v1169
          %v2172 = vadd.f32 %v1916, %v1171
          %v2173 = vadd.f32 %v1917, %v1173
          %v2174 = vadd.f32 %v1918, %v1175
          %v2175 = vadd.f32 %v1919, %v1179
          %v2176 = vadd.f32 %v1920, %v1181
          %v2177 = vadd.f32 %v1921, %v1183
          %v2178 = vadd.f32 %v1922, %v1185
          %v2179 = vadd.f32 %v1923, %v1189
          %v2180 = vadd.f32 %v1924, %v1191
          %v2181 = vadd.f32 %v1925, %v1193
          %v2182 = vadd.f32 %v1926, %v1195
          %v2183 = vadd.f32 %v1927, %v1199
          %v2184 = vadd.f32 %v1928, %v1201
          %v2185 = vadd.f32 %v1929, %v1203
          %v2186 = vadd.f32 %v1930, %v1205
          %v2187 = vadd.f32 %v1931, %v1209
          %v2188 = vadd.f32 %v1932, %v1211
          %v2189 = vadd.f32 %v1933, %v1213
          %v2190 = vadd.f32 %v1934, %v1215
          %v2191 = vadd.f32 %v1935, %v1219
          %v2192 = vadd.f32 %v1936, %v1221
          %v2193 = vadd.f32 %v1937, %v1223
          %v2194 = vadd.f32 %v1938, %v1225
          %v2195 = vadd.f32 %v1939, %v1229
          %v2196 = vadd.f32 %v1940, %v1231
          %v2197 = vadd.f32 %v1941, %v1233
          %v2198 = vadd.f32 %v1942, %v1235
          %v2199 = vadd.f32 %v1943, %v1239
          %v2200 = vadd.f32 %v1944, %v1241
          %v2201 = vadd.f32 %v1945, %v1243
          %v2202 = vadd.f32 %v1946, %v1245
          %v2203 = vadd.f32 %v1947, %v1249
          %v2204 = vadd.f32 %v1948, %v1251
          %v2205 = vadd.f32 %v1949, %v1253
          %v2206 = vadd.f32 %v1950, %v1255
          %v2207 = vadd.f32 %v1951, %v1259
          %v2208 = vadd.f32 %v1952, %v1261
          %v2209 = vadd.f32 %v1953, %v1263
          %v2210 = vadd.f32 %v1954, %v1265
          %v2211 = vadd.f32 %v1955, %v1269
          %v2212 = vadd.f32 %v1956, %v1271
          %v2213 = vadd.f32 %v1957, %v1273
          %v2214 = vadd.f32 %v1958, %v1275
          %v2215 = vadd.f32 %v1959, %v1279
          %v2216 = vadd.f32 %v1960, %v1281
          %v2217 = vadd.f32 %v1961, %v1283
          %v2218 = vadd.f32 %v1962, %v1285
          %v2219 = vadd.f32 %v1963, %v1289
          %v2220 = vadd.f32 %v1964, %v1291
          %v2221 = vadd.f32 %v1965, %v1293
          %v2222 = vadd.f32 %v1966, %v1295
          %v2223 = vadd.f32 %v1967, %v1299
          %v2224 = vadd.f32 %v1968, %v1301
          %v2225 = vadd.f32 %v1969, %v1303
          %v2226 = vadd.f32 %v1970, %v1305
          %v2227 = vadd.f32 %v1971, %v1309
          %v2228 = vadd.f32 %v1972, %v1311
          %v2229 = vadd.f32 %v1973, %v1313
          %v2230 = vadd.f32 %v1974, %v1315
          %v2231 = vadd.f32 %v1975, %v1319
          %v2232 = vadd.f32 %v1976, %v1321
          %v2233 = vadd.f32 %v1977, %v1323
          %v2234 = vadd.f32 %v1978, %v1325
          %v2235 = vadd.f32 %v1979, %v1329
          %v2236 = vadd.f32 %v1980, %v1331
          %v2237 = vadd.f32 %v1981, %v1333
          %v2238 = vadd.f32 %v1982, %v1335
          %v2239 = vadd.f32 %v1983, %v1339
          %v2240 = vadd.f32 %v1984, %v1341
          %v2241 = vadd.f32 %v1985, %v1343
          %v2242 = vadd.f32 %v1986, %v1345
          %v2243 = vadd.f32 %v1987, %v1349
          %v2244 = vadd.f32 %v1988, %v1351
          %v2245 = vadd.f32 %v1989, %v1353
          %v2246 = vadd.f32 %v1990, %v1355
          %v2247 = vadd.f32 %v1991, %v1359
          %v2248 = vadd.f32 %v1992, %v1361
          %v2249 = vadd.f32 %v1993, %v1363
          %v2250 = vadd.f32 %v1994, %v1365
          %v2251 = vadd.f32 %v1995, %v1369
          %v2252 = vadd.f32 %v1996, %v1371
          %v2253 = vadd.f32 %v1997, %v1373
          %v2254 = vadd.f32 %v1998, %v1375
          %v2255 = vadd.f32 %v1999, %v1379
          %v2256 = vadd.f32 %v2000, %v1381
          %v2257 = vadd.f32 %v2001, %v1383
          %v2258 = vadd.f32 %v2002, %v1385
          %v2259 = vadd.f32 %v2003, %v1389
          %v2260 = vadd.f32 %v2004, %v1391
          %v2261 = vadd.f32 %v2005, %v1393
          %v2262 = vadd.f32 %v2006, %v1395
          %v2263 = vadd.f32 %v2007, %v1399
          %v2264 = vadd.f32 %v2008, %v1401
          %v2265 = vadd.f32 %v2009, %v1403
          %v2266 = vadd.f32 %v2010, %v1405
          %v2267 = vadd.f32 %v2011, %v1409
          %v2268 = vadd.f32 %v2012, %v1411
          %v2269 = vadd.f32 %v2013, %v1413
          %v2270 = vadd.f32 %v2014, %v1415
          %v2271 = vadd.f32 %v2015, %v1419
          %v2272 = vadd.f32 %v2016, %v1421
          %v2273 = vadd.f32 %v2017, %v1423
          %v2274 = vadd.f32 %v2018, %v1425
          %v2275 = vadd.f32 %v2019, %v1429
          %v2276 = vadd.f32 %v2020, %v1431
          %v2277 = vadd.f32 %v2021, %v1433
          %v2278 = vadd.f32 %v2022, %v1435
          %v2279 = vadd.f32 %v2023, %v1439
          %v2280 = vadd.f32 %v2024, %v1441
          %v2281 = vadd.f32 %v2025, %v1443
          %v2282 = vadd.f32 %v2026, %v1445
          %v2283 = vadd.f32 %v2027, %v1449
          %v2284 = vadd.f32 %v2028, %v1451
          %v2285 = vadd.f32 %v2029, %v1453
          %v2286 = vadd.f32 %v2030, %v1455
          %v2287 = vadd.f32 %v2031, %v1459
          %v2288 = vadd.f32 %v2032, %v1461
          %v2289 = vadd.f32 %v2033, %v1463
          %v2290 = vadd.f32 %v2034, %v1465
          %v2291 = vadd.f32 %v2035, %v1469
          %v2292 = vadd.f32 %v2036, %v1471
          %v2293 = vadd.f32 %v2037, %v1473
          %v2294 = vadd.f32 %v2038, %v1475
          %v2295 = vadd.f32 %v2039, %v1479
          %v2296 = vadd.f32 %v2040, %v1481
          %v2297 = vadd.f32 %v2041, %v1483
          %v2298 = vadd.f32 %v2042, %v1485
          %v2299 = vadd.f32 %v2043, %v1489
          %v2300 = vadd.f32 %v2044, %v1491
          %v2301 = vadd.f32 %v2045, %v1493
          %v2302 = vadd.f32 %v2046, %v1495
          %v2303 = vadd.f32 %v2047, %v1499
          %v2304 = vadd.f32 %v2048, %v1501
          %v2305 = vadd.f32 %v2049, %v1503
          %v2306 = vadd.f32 %v2050, %v1505
          %v2307 = vadd.f32 %v2051, %v1509
          %v2308 = vadd.f32 %v2052, %v1511
          %v2309 = vadd.f32 %v2053, %v1513
          %v2310 = vadd.f32 %v2054, %v1515
          %v2311 = vadd.f32 %v2055, %v1519
          %v2312 = vadd.f32 %v2056, %v1521
          %v2313 = vadd.f32 %v2057, %v1523
          %v2314 = vadd.f32 %v2058, %v1525
          %v2315 = vadd.f32 %v2059, %v1529
          %v2316 = vadd.f32 %v2060, %v1531
          %v2317 = vadd.f32 %v2061, %v1533
          %v2318 = vadd.f32 %v2062, %v1535
          %v2319 = vadd.f32 %v2063, %v1539
          %v2320 = vadd.f32 %v2064, %v1541
          %v2321 = vadd.f32 %v2065, %v1543
          %v2322 = vadd.f32 %v2066, %v1545
          %2323 = vst [vmem:[#allocation2] sm:$0xff] %v2067
          %2324 = vst [vmem:[#allocation2 + $0x8] sm:$0xff] %v2068
          %2325 = vst [vmem:[#allocation2 + $0x10] sm:$0xff] %v2069
          %2326 = vst [vmem:[#allocation2 + $0x18] sm:$0xff] %v2070
          %2327 = vst [vmem:[#allocation2 + $0x20] sm:$0xff] %v2071
          %2328 = vst [vmem:[#allocation2 + $0x28] sm:$0xff] %v2072
          %2329 = vst [vmem:[#allocation2 + $0x30] sm:$0xff] %v2073
          %2330 = vst [vmem:[#allocation2 + $0x38] sm:$0xff] %v2074
          %2331 = vst [vmem:[#allocation2 + $0x40] sm:$0xff] %v2075
          %2332 = vst [vmem:[#allocation2 + $0x48] sm:$0xff] %v2076
          %2333 = vst [vmem:[#allocation2 + $0x50] sm:$0xff] %v2077
          %2334 = vst [vmem:[#allocation2 + $0x58] sm:$0xff] %v2078
          %2335 = vst [vmem:[#allocation2 + $0x60] sm:$0xff] %v2079
          %2336 = vst [vmem:[#allocation2 + $0x68] sm:$0xff] %v2080
          %2337 = vst [vmem:[#allocation2 + $0x70] sm:$0xff] %v2081
          %2338 = vst [vmem:[#allocation2 + $0x78] sm:$0xff] %v2082
          %2339 = vst [vmem:[#allocation2 + $0x80] sm:$0xff] %v2083
          %2340 = vst [vmem:[#allocation2 + $0x88] sm:$0xff] %v2084
          %2341 = vst [vmem:[#allocation2 + $0x90] sm:$0xff] %v2085
          %2342 = vst [vmem:[#allocation2 + $0x98] sm:$0xff] %v2086
          %2343 = vst [vmem:[#allocation2 + $0xa0] sm:$0xff] %v2087
          %2344 = vst [vmem:[#allocation2 + $0xa8] sm:$0xff] %v2088
          %2345 = vst [vmem:[#allocation2 + $0xb0] sm:$0xff] %v2089
          %2346 = vst [vmem:[#allocation2 + $0xb8] sm:$0xff] %v2090
          %2347 = vst [vmem:[#allocation2 + $0xc0] sm:$0xff] %v2091
          %2348 = vst [vmem:[#allocation2 + $0xc8] sm:$0xff] %v2092
          %2349 = vst [vmem:[#allocation2 + $0xd0] sm:$0xff] %v2093
          %2350 = vst [vmem:[#allocation2 + $0xd8] sm:$0xff] %v2094
          %2351 = vst [vmem:[#allocation2 + $0xe0] sm:$0xff] %v2095
          %2352 = vst [vmem:[#allocation2 + $0xe8] sm:$0xff] %v2096
          %2353 = vst [vmem:[#allocation2 + $0xf0] sm:$0xff] %v2097
          %2354 = vst [vmem:[#allocation2 + $0xf8] sm:$0xff] %v2098
          %2355 = vst [vmem:[#allocation2 + $0x100] sm:$0xff] %v2099
          %2356 = vst [vmem:[#allocation2 + $0x108] sm:$0xff] %v2100
          %2357 = vst [vmem:[#allocation2 + $0x110] sm:$0xff] %v2101
          %2358 = vst [vmem:[#allocation2 + $0x118] sm:$0xff] %v2102
          %2359 = vst [vmem:[#allocation2 + $0x120] sm:$0xff] %v2103
          %2360 = vst [vmem:[#allocation2 + $0x128] sm:$0xff] %v2104
          %2361 = vst [vmem:[#allocation2 + $0x130] sm:$0xff] %v2105
          %2362 = vst [vmem:[#allocation2 + $0x138] sm:$0xff] %v2106
          %2363 = vst [vmem:[#allocation2 + $0x140] sm:$0xff] %v2107
          %2364 = vst [vmem:[#allocation2 + $0x148] sm:$0xff] %v2108
          %2365 = vst [vmem:[#allocation2 + $0x150] sm:$0xff] %v2109
          %2366 = vst [vmem:[#allocation2 + $0x158] sm:$0xff] %v2110
          %2367 = vst [vmem:[#allocation2 + $0x160] sm:$0xff] %v2111
          %2368 = vst [vmem:[#allocation2 + $0x168] sm:$0xff] %v2112
          %2369 = vst [vmem:[#allocation2 + $0x170] sm:$0xff] %v2113
          %2370 = vst [vmem:[#allocation2 + $0x178] sm:$0xff] %v2114
          %2371 = vst [vmem:[#allocation2 + $0x180] sm:$0xff] %v2115
          %2372 = vst [vmem:[#allocation2 + $0x188] sm:$0xff] %v2116
          %2373 = vst [vmem:[#allocation2 + $0x190] sm:$0xff] %v2117
          %2374 = vst [vmem:[#allocation2 + $0x198] sm:$0xff] %v2118
          %2375 = vst [vmem:[#allocation2 + $0x1a0] sm:$0xff] %v2119
          %2376 = vst [vmem:[#allocation2 + $0x1a8] sm:$0xff] %v2120
          %2377 = vst [vmem:[#allocation2 + $0x1b0] sm:$0xff] %v2121
          %2378 = vst [vmem:[#allocation2 + $0x1b8] sm:$0xff] %v2122
          %2379 = vst [vmem:[#allocation2 + $0x1c0] sm:$0xff] %v2123
          %2380 = vst [vmem:[#allocation2 + $0x1c8] sm:$0xff] %v2124
          %2381 = vst [vmem:[#allocation2 + $0x1d0] sm:$0xff] %v2125
          %2382 = vst [vmem:[#allocation2 + $0x1d8] sm:$0xff] %v2126
          %2383 = vst [vmem:[#allocation2 + $0x1e0] sm:$0xff] %v2127
          %2384 = vst [vmem:[#allocation2 + $0x1e8] sm:$0xff] %v2128
          %2385 = vst [vmem:[#allocation2 + $0x1f0] sm:$0xff] %v2129
          %2386 = vst [vmem:[#allocation2 + $0x1f8] sm:$0xff] %v2130
          %2387 = vst [vmem:[#allocation2 + $0x200] sm:$0xff] %v2131
          %2388 = vst [vmem:[#allocation2 + $0x208] sm:$0xff] %v2132
          %2389 = vst [vmem:[#allocation2 + $0x210] sm:$0xff] %v2133
          %2390 = vst [vmem:[#allocation2 + $0x218] sm:$0xff] %v2134
          %2391 = vst [vmem:[#allocation2 + $0x220] sm:$0xff] %v2135
          %2392 = vst [vmem:[#allocation2 + $0x228] sm:$0xff] %v2136
          %2393 = vst [vmem:[#allocation2 + $0x230] sm:$0xff] %v2137
          %2394 = vst [vmem:[#allocation2 + $0x238] sm:$0xff] %v2138
          %2395 = vst [vmem:[#allocation2 + $0x240] sm:$0xff] %v2139
          %2396 = vst [vmem:[#allocation2 + $0x248] sm:$0xff] %v2140
          %2397 = vst [vmem:[#allocation2 + $0x250] sm:$0xff] %v2141
          %2398 = vst [vmem:[#allocation2 + $0x258] sm:$0xff] %v2142
          %2399 = vst [vmem:[#allocation2 + $0x260] sm:$0xff] %v2143
          %2400 = vst [vmem:[#allocation2 + $0x268] sm:$0xff] %v2144
          %2401 = vst [vmem:[#allocation2 + $0x270] sm:$0xff] %v2145
          %2402 = vst [vmem:[#allocation2 + $0x278] sm:$0xff] %v2146
          %2403 = vst [vmem:[#allocation2 + $0x280] sm:$0xff] %v2147
          %2404 = vst [vmem:[#allocation2 + $0x288] sm:$0xff] %v2148
          %2405 = vst [vmem:[#allocation2 + $0x290] sm:$0xff] %v2149
          %2406 = vst [vmem:[#allocation2 + $0x298] sm:$0xff] %v2150
          %2407 = vst [vmem:[#allocation2 + $0x2a0] sm:$0xff] %v2151
          %2408 = vst [vmem:[#allocation2 + $0x2a8] sm:$0xff] %v2152
          %2409 = vst [vmem:[#allocation2 + $0x2b0] sm:$0xff] %v2153
          %2410 = vst [vmem:[#allocation2 + $0x2b8] sm:$0xff] %v2154
          %2411 = vst [vmem:[#allocation2 + $0x2c0] sm:$0xff] %v2155
          %2412 = vst [vmem:[#allocation2 + $0x2c8] sm:$0xff] %v2156
          %2413 = vst [vmem:[#allocation2 + $0x2d0] sm:$0xff] %v2157
          %2414 = vst [vmem:[#allocation2 + $0x2d8] sm:$0xff] %v2158
          %2415 = vst [vmem:[#allocation2 + $0x2e0] sm:$0xff] %v2159
          %2416 = vst [vmem:[#allocation2 + $0x2e8] sm:$0xff] %v2160
          %2417 = vst [vmem:[#allocation2 + $0x2f0] sm:$0xff] %v2161
          %2418 = vst [vmem:[#allocation2 + $0x2f8] sm:$0xff] %v2162
          %2419 = vst [vmem:[#allocation2 + $0x300] sm:$0xff] %v2163
          %2420 = vst [vmem:[#allocation2 + $0x308] sm:$0xff] %v2164
          %2421 = vst [vmem:[#allocation2 + $0x310] sm:$0xff] %v2165
          %2422 = vst [vmem:[#allocation2 + $0x318] sm:$0xff] %v2166
          %2423 = vst [vmem:[#allocation2 + $0x320] sm:$0xff] %v2167
          %2424 = vst [vmem:[#allocation2 + $0x328] sm:$0xff] %v2168
          %2425 = vst [vmem:[#allocation2 + $0x330] sm:$0xff] %v2169
          %2426 = vst [vmem:[#allocation2 + $0x338] sm:$0xff] %v2170
          %2427 = vst [vmem:[#allocation2 + $0x340] sm:$0xff] %v2171
          %2428 = vst [vmem:[#allocation2 + $0x348] sm:$0xff] %v2172
          %2429 = vst [vmem:[#allocation2 + $0x350] sm:$0xff] %v2173
          %2430 = vst [vmem:[#allocation2 + $0x358] sm:$0xff] %v2174
          %2431 = vst [vmem:[#allocation2 + $0x360] sm:$0xff] %v2175
          %2432 = vst [vmem:[#allocation2 + $0x368] sm:$0xff] %v2176
          %2433 = vst [vmem:[#allocation2 + $0x370] sm:$0xff] %v2177
          %2434 = vst [vmem:[#allocation2 + $0x378] sm:$0xff] %v2178
          %2435 = vst [vmem:[#allocation2 + $0x380] sm:$0xff] %v2179
          %2436 = vst [vmem:[#allocation2 + $0x388] sm:$0xff] %v2180
          %2437 = vst [vmem:[#allocation2 + $0x390] sm:$0xff] %v2181
          %2438 = vst [vmem:[#allocation2 + $0x398] sm:$0xff] %v2182
          %2439 = vst [vmem:[#allocation2 + $0x3a0] sm:$0xff] %v2183
          %2440 = vst [vmem:[#allocation2 + $0x3a8] sm:$0xff] %v2184
          %2441 = vst [vmem:[#allocation2 + $0x3b0] sm:$0xff] %v2185
          %2442 = vst [vmem:[#allocation2 + $0x3b8] sm:$0xff] %v2186
          %2443 = vst [vmem:[#allocation2 + $0x3c0] sm:$0xff] %v2187
          %2444 = vst [vmem:[#allocation2 + $0x3c8] sm:$0xff] %v2188
          %2445 = vst [vmem:[#allocation2 + $0x3d0] sm:$0xff] %v2189
          %2446 = vst [vmem:[#allocation2 + $0x3d8] sm:$0xff] %v2190
          %2447 = vst [vmem:[#allocation2 + $0x3e0] sm:$0xff] %v2191
          %2448 = vst [vmem:[#allocation2 + $0x3e8] sm:$0xff] %v2192
          %2449 = vst [vmem:[#allocation2 + $0x3f0] sm:$0xff] %v2193
          %2450 = vst [vmem:[#allocation2 + $0x3f8] sm:$0xff] %v2194
          %2451 = vst [vmem:[#allocation2 + $0x400] sm:$0xff] %v2195
          %2452 = vst [vmem:[#allocation2 + $0x408] sm:$0xff] %v2196
          %2453 = vst [vmem:[#allocation2 + $0x410] sm:$0xff] %v2197
          %2454 = vst [vmem:[#allocation2 + $0x418] sm:$0xff] %v2198
          %2455 = vst [vmem:[#allocation2 + $0x420] sm:$0xff] %v2199
          %2456 = vst [vmem:[#allocation2 + $0x428] sm:$0xff] %v2200
          %2457 = vst [vmem:[#allocation2 + $0x430] sm:$0xff] %v2201
          %2458 = vst [vmem:[#allocation2 + $0x438] sm:$0xff] %v2202
          %2459 = vst [vmem:[#allocation2 + $0x440] sm:$0xff] %v2203
          %2460 = vst [vmem:[#allocation2 + $0x448] sm:$0xff] %v2204
          %2461 = vst [vmem:[#allocation2 + $0x450] sm:$0xff] %v2205
          %2462 = vst [vmem:[#allocation2 + $0x458] sm:$0xff] %v2206
          %2463 = vst [vmem:[#allocation2 + $0x460] sm:$0xff] %v2207
          %2464 = vst [vmem:[#allocation2 + $0x468] sm:$0xff] %v2208
          %2465 = vst [vmem:[#allocation2 + $0x470] sm:$0xff] %v2209
          %2466 = vst [vmem:[#allocation2 + $0x478] sm:$0xff] %v2210
          %2467 = vst [vmem:[#allocation2 + $0x480] sm:$0xff] %v2211
          %2468 = vst [vmem:[#allocation2 + $0x488] sm:$0xff] %v2212
          %2469 = vst [vmem:[#allocation2 + $0x490] sm:$0xff] %v2213
          %2470 = vst [vmem:[#allocation2 + $0x498] sm:$0xff] %v2214
          %2471 = vst [vmem:[#allocation2 + $0x4a0] sm:$0xff] %v2215
          %2472 = vst [vmem:[#allocation2 + $0x4a8] sm:$0xff] %v2216
          %2473 = vst [vmem:[#allocation2 + $0x4b0] sm:$0xff] %v2217
          %2474 = vst [vmem:[#allocation2 + $0x4b8] sm:$0xff] %v2218
          %2475 = vst [vmem:[#allocation2 + $0x4c0] sm:$0xff] %v2219
          %2476 = vst [vmem:[#allocation2 + $0x4c8] sm:$0xff] %v2220
          %2477 = vst [vmem:[#allocation2 + $0x4d0] sm:$0xff] %v2221
          %2478 = vst [vmem:[#allocation2 + $0x4d8] sm:$0xff] %v2222
          %2479 = vst [vmem:[#allocation2 + $0x4e0] sm:$0xff] %v2223
          %2480 = vst [vmem:[#allocation2 + $0x4e8] sm:$0xff] %v2224
          %2481 = vst [vmem:[#allocation2 + $0x4f0] sm:$0xff] %v2225
          %2482 = vst [vmem:[#allocation2 + $0x4f8] sm:$0xff] %v2226
          %2483 = vst [vmem:[#allocation2 + $0x500] sm:$0xff] %v2227
          %2484 = vst [vmem:[#allocation2 + $0x508] sm:$0xff] %v2228
          %2485 = vst [vmem:[#allocation2 + $0x510] sm:$0xff] %v2229
          %2486 = vst [vmem:[#allocation2 + $0x518] sm:$0xff] %v2230
          %2487 = vst [vmem:[#allocation2 + $0x520] sm:$0xff] %v2231
          %2488 = vst [vmem:[#allocation2 + $0x528] sm:$0xff] %v2232
          %2489 = vst [vmem:[#allocation2 + $0x530] sm:$0xff] %v2233
          %2490 = vst [vmem:[#allocation2 + $0x538] sm:$0xff] %v2234
          %2491 = vst [vmem:[#allocation2 + $0x540] sm:$0xff] %v2235
          %2492 = vst [vmem:[#allocation2 + $0x548] sm:$0xff] %v2236
          %2493 = vst [vmem:[#allocation2 + $0x550] sm:$0xff] %v2237
          %2494 = vst [vmem:[#allocation2 + $0x558] sm:$0xff] %v2238
          %2495 = vst [vmem:[#allocation2 + $0x560] sm:$0xff] %v2239
          %2496 = vst [vmem:[#allocation2 + $0x568] sm:$0xff] %v2240
          %2497 = vst [vmem:[#allocation2 + $0x570] sm:$0xff] %v2241
          %2498 = vst [vmem:[#allocation2 + $0x578] sm:$0xff] %v2242
          %2499 = vst [vmem:[#allocation2 + $0x580] sm:$0xff] %v2243
          %2500 = vst [vmem:[#allocation2 + $0x588] sm:$0xff] %v2244
          %2501 = vst [vmem:[#allocation2 + $0x590] sm:$0xff] %v2245
          %2502 = vst [vmem:[#allocation2 + $0x598] sm:$0xff] %v2246
          %2503 = vst [vmem:[#allocation2 + $0x5a0] sm:$0xff] %v2247
          %2504 = vst [vmem:[#allocation2 + $0x5a8] sm:$0xff] %v2248
          %2505 = vst [vmem:[#allocation2 + $0x5b0] sm:$0xff] %v2249
          %2506 = vst [vmem:[#allocation2 + $0x5b8] sm:$0xff] %v2250
          %2507 = vst [vmem:[#allocation2 + $0x5c0] sm:$0xff] %v2251
          %2508 = vst [vmem:[#allocation2 + $0x5c8] sm:$0xff] %v2252
          %2509 = vst [vmem:[#allocation2 + $0x5d0] sm:$0xff] %v2253
          %2510 = vst [vmem:[#allocation2 + $0x5d8] sm:$0xff] %v2254
          %2511 = vst [vmem:[#allocation2 + $0x5e0] sm:$0xff] %v2255
          %2512 = vst [vmem:[#allocation2 + $0x5e8] sm:$0xff] %v2256
          %2513 = vst [vmem:[#allocation2 + $0x5f0] sm:$0xff] %v2257
          %2514 = vst [vmem:[#allocation2 + $0x5f8] sm:$0xff] %v2258
          %2515 = vst [vmem:[#allocation2 + $0x600] sm:$0xff] %v2259
          %2516 = vst [vmem:[#allocation2 + $0x608] sm:$0xff] %v2260
          %2517 = vst [vmem:[#allocation2 + $0x610] sm:$0xff] %v2261
          %2518 = vst [vmem:[#allocation2 + $0x618] sm:$0xff] %v2262
          %2519 = vst [vmem:[#allocation2 + $0x620] sm:$0xff] %v2263
          %2520 = vst [vmem:[#allocation2 + $0x628] sm:$0xff] %v2264
          %2521 = vst [vmem:[#allocation2 + $0x630] sm:$0xff] %v2265
          %2522 = vst [vmem:[#allocation2 + $0x638] sm:$0xff] %v2266
          %2523 = vst [vmem:[#allocation2 + $0x640] sm:$0xff] %v2267
          %2524 = vst [vmem:[#allocation2 + $0x648] sm:$0xff] %v2268
          %2525 = vst [vmem:[#allocation2 + $0x650] sm:$0xff] %v2269
          %2526 = vst [vmem:[#allocation2 + $0x658] sm:$0xff] %v2270
          %2527 = vst [vmem:[#allocation2 + $0x660] sm:$0xff] %v2271
          %2528 = vst [vmem:[#allocation2 + $0x668] sm:$0xff] %v2272
          %2529 = vst [vmem:[#allocation2 + $0x670] sm:$0xff] %v2273
          %2530 = vst [vmem:[#allocation2 + $0x678] sm:$0xff] %v2274
          %2531 = vst [vmem:[#allocation2 + $0x680] sm:$0xff] %v2275
          %2532 = vst [vmem:[#allocation2 + $0x688] sm:$0xff] %v2276
          %2533 = vst [vmem:[#allocation2 + $0x690] sm:$0xff] %v2277
          %2534 = vst [vmem:[#allocation2 + $0x698] sm:$0xff] %v2278
          %2535 = vst [vmem:[#allocation2 + $0x6a0] sm:$0xff] %v2279
          %2536 = vst [vmem:[#allocation2 + $0x6a8] sm:$0xff] %v2280
          %2537 = vst [vmem:[#allocation2 + $0x6b0] sm:$0xff] %v2281
          %2538 = vst [vmem:[#allocation2 + $0x6b8] sm:$0xff] %v2282
          %2539 = vst [vmem:[#allocation2 + $0x6c0] sm:$0xff] %v2283
          %2540 = vst [vmem:[#allocation2 + $0x6c8] sm:$0xff] %v2284
          %2541 = vst [vmem:[#allocation2 + $0x6d0] sm:$0xff] %v2285
          %2542 = vst [vmem:[#allocation2 + $0x6d8] sm:$0xff] %v2286
          %2543 = vst [vmem:[#allocation2 + $0x6e0] sm:$0xff] %v2287
          %2544 = vst [vmem:[#allocation2 + $0x6e8] sm:$0xff] %v2288
          %2545 = vst [vmem:[#allocation2 + $0x6f0] sm:$0xff] %v2289
          %2546 = vst [vmem:[#allocation2 + $0x6f8] sm:$0xff] %v2290
          %2547 = vst [vmem:[#allocation2 + $0x700] sm:$0xff] %v2291
          %2548 = vst [vmem:[#allocation2 + $0x708] sm:$0xff] %v2292
          %2549 = vst [vmem:[#allocation2 + $0x710] sm:$0xff] %v2293
          %2550 = vst [vmem:[#allocation2 + $0x718] sm:$0xff] %v2294
          %2551 = vst [vmem:[#allocation2 + $0x720] sm:$0xff] %v2295
          %2552 = vst [vmem:[#allocation2 + $0x728] sm:$0xff] %v2296
          %2553 = vst [vmem:[#allocation2 + $0x730] sm:$0xff] %v2297
          %2554 = vst [vmem:[#allocation2 + $0x738] sm:$0xff] %v2298
          %2555 = vst [vmem:[#allocation2 + $0x740] sm:$0xff] %v2299
          %2556 = vst [vmem:[#allocation2 + $0x748] sm:$0xff] %v2300
          %2557 = vst [vmem:[#allocation2 + $0x750] sm:$0xff] %v2301
          %2558 = vst [vmem:[#allocation2 + $0x758] sm:$0xff] %v2302
          %2559 = vst [vmem:[#allocation2 + $0x760] sm:$0xff] %v2303
          %2560 = vst [vmem:[#allocation2 + $0x768] sm:$0xff] %v2304
          %2561 = vst [vmem:[#allocation2 + $0x770] sm:$0xff] %v2305
          %2562 = vst [vmem:[#allocation2 + $0x778] sm:$0xff] %v2306
          %2563 = vst [vmem:[#allocation2 + $0x780] sm:$0xff] %v2307
          %2564 = vst [vmem:[#allocation2 + $0x788] sm:$0xff] %v2308
          %2565 = vst [vmem:[#allocation2 + $0x790] sm:$0xff] %v2309
          %2566 = vst [vmem:[#allocation2 + $0x798] sm:$0xff] %v2310
          %2567 = vst [vmem:[#allocation2 + $0x7a0] sm:$0xff] %v2311
          %2568 = vst [vmem:[#allocation2 + $0x7a8] sm:$0xff] %v2312
          %2569 = vst [vmem:[#allocation2 + $0x7b0] sm:$0xff] %v2313
          %2570 = vst [vmem:[#allocation2 + $0x7b8] sm:$0xff] %v2314
          %2571 = vst [vmem:[#allocation2 + $0x7c0] sm:$0xff] %v2315
          %2572 = vst [vmem:[#allocation2 + $0x7c8] sm:$0xff] %v2316
          %2573 = vst [vmem:[#allocation2 + $0x7d0] sm:$0xff] %v2317
          %2574 = vst [vmem:[#allocation2 + $0x7d8] sm:$0xff] %v2318
          %2575 = vst [vmem:[#allocation2 + $0x7e0] sm:$0xff] %v2319
          %2576 = vst [vmem:[#allocation2 + $0x7e8] sm:$0xff] %v2320
          %2577 = vst [vmem:[#allocation2 + $0x7f0] sm:$0xff] %v2321
          %2578 = vst [vmem:[#allocation2 + $0x7f8] sm:$0xff] %v2322
        $region48: #{tpu_custom_call.1} parent=31 // pred_fallthru
          _
        // Predicated region
        $region49: #{tpu_custom_call.1} parent=31 // pred_check
          %p2579 = pneg %p1547
        $region50: #{tpu_custom_call.1} parent=31 // pred_check_branch
          %2581 = sbr.rel (%p2579) target = $region52
        $region51: #{tpu_custom_call.1} parent=31 // pred_region
          %v2582 = vld [vmem:[#allocation2] sm:$0xff]
          %v2583 = vld [vmem:[#allocation2 + $0x8] sm:$0xff]
          %v2584 = vld [vmem:[#allocation2 + $0x10] sm:$0xff]
          %v2585 = vld [vmem:[#allocation2 + $0x18] sm:$0xff]
          %v2586 = vld [vmem:[#allocation2 + $0x20] sm:$0xff]
          %v2587 = vld [vmem:[#allocation2 + $0x28] sm:$0xff]
          %v2588 = vld [vmem:[#allocation2 + $0x30] sm:$0xff]
          %v2589 = vld [vmem:[#allocation2 + $0x38] sm:$0xff]
          %v2590 = vld [vmem:[#allocation2 + $0x40] sm:$0xff]
          %v2591 = vld [vmem:[#allocation2 + $0x48] sm:$0xff]
          %v2592 = vld [vmem:[#allocation2 + $0x50] sm:$0xff]
          %v2593 = vld [vmem:[#allocation2 + $0x58] sm:$0xff]
          %v2594 = vld [vmem:[#allocation2 + $0x60] sm:$0xff]
          %v2595 = vld [vmem:[#allocation2 + $0x68] sm:$0xff]
          %v2596 = vld [vmem:[#allocation2 + $0x70] sm:$0xff]
          %v2597 = vld [vmem:[#allocation2 + $0x78] sm:$0xff]
          %v2598 = vld [vmem:[#allocation2 + $0x80] sm:$0xff]
          %v2599 = vld [vmem:[#allocation2 + $0x88] sm:$0xff]
          %v2600 = vld [vmem:[#allocation2 + $0x90] sm:$0xff]
          %v2601 = vld [vmem:[#allocation2 + $0x98] sm:$0xff]
          %v2602 = vld [vmem:[#allocation2 + $0xa0] sm:$0xff]
          %v2603 = vld [vmem:[#allocation2 + $0xa8] sm:$0xff]
          %v2604 = vld [vmem:[#allocation2 + $0xb0] sm:$0xff]
          %v2605 = vld [vmem:[#allocation2 + $0xb8] sm:$0xff]
          %v2606 = vld [vmem:[#allocation2 + $0xc0] sm:$0xff]
          %v2607 = vld [vmem:[#allocation2 + $0xc8] sm:$0xff]
          %v2608 = vld [vmem:[#allocation2 + $0xd0] sm:$0xff]
          %v2609 = vld [vmem:[#allocation2 + $0xd8] sm:$0xff]
          %v2610 = vld [vmem:[#allocation2 + $0xe0] sm:$0xff]
          %v2611 = vld [vmem:[#allocation2 + $0xe8] sm:$0xff]
          %v2612 = vld [vmem:[#allocation2 + $0xf0] sm:$0xff]
          %v2613 = vld [vmem:[#allocation2 + $0xf8] sm:$0xff]
          %v2614 = vld [vmem:[#allocation2 + $0x100] sm:$0xff]
          %v2615 = vld [vmem:[#allocation2 + $0x108] sm:$0xff]
          %v2616 = vld [vmem:[#allocation2 + $0x110] sm:$0xff]
          %v2617 = vld [vmem:[#allocation2 + $0x118] sm:$0xff]
          %v2618 = vld [vmem:[#allocation2 + $0x120] sm:$0xff]
          %v2619 = vld [vmem:[#allocation2 + $0x128] sm:$0xff]
          %v2620 = vld [vmem:[#allocation2 + $0x130] sm:$0xff]
          %v2621 = vld [vmem:[#allocation2 + $0x138] sm:$0xff]
          %v2622 = vld [vmem:[#allocation2 + $0x140] sm:$0xff]
          %v2623 = vld [vmem:[#allocation2 + $0x148] sm:$0xff]
          %v2624 = vld [vmem:[#allocation2 + $0x150] sm:$0xff]
          %v2625 = vld [vmem:[#allocation2 + $0x158] sm:$0xff]
          %v2626 = vld [vmem:[#allocation2 + $0x160] sm:$0xff]
          %v2627 = vld [vmem:[#allocation2 + $0x168] sm:$0xff]
          %v2628 = vld [vmem:[#allocation2 + $0x170] sm:$0xff]
          %v2629 = vld [vmem:[#allocation2 + $0x178] sm:$0xff]
          %v2630 = vld [vmem:[#allocation2 + $0x180] sm:$0xff]
          %v2631 = vld [vmem:[#allocation2 + $0x188] sm:$0xff]
          %v2632 = vld [vmem:[#allocation2 + $0x190] sm:$0xff]
          %v2633 = vld [vmem:[#allocation2 + $0x198] sm:$0xff]
          %v2634 = vld [vmem:[#allocation2 + $0x1a0] sm:$0xff]
          %v2635 = vld [vmem:[#allocation2 + $0x1a8] sm:$0xff]
          %v2636 = vld [vmem:[#allocation2 + $0x1b0] sm:$0xff]
          %v2637 = vld [vmem:[#allocation2 + $0x1b8] sm:$0xff]
          %v2638 = vld [vmem:[#allocation2 + $0x1c0] sm:$0xff]
          %v2639 = vld [vmem:[#allocation2 + $0x1c8] sm:$0xff]
          %v2640 = vld [vmem:[#allocation2 + $0x1d0] sm:$0xff]
          %v2641 = vld [vmem:[#allocation2 + $0x1d8] sm:$0xff]
          %v2642 = vld [vmem:[#allocation2 + $0x1e0] sm:$0xff]
          %v2643 = vld [vmem:[#allocation2 + $0x1e8] sm:$0xff]
          %v2644 = vld [vmem:[#allocation2 + $0x1f0] sm:$0xff]
          %v2645 = vld [vmem:[#allocation2 + $0x1f8] sm:$0xff]
          %v2646 = vld [vmem:[#allocation2 + $0x200] sm:$0xff]
          %v2647 = vld [vmem:[#allocation2 + $0x208] sm:$0xff]
          %v2648 = vld [vmem:[#allocation2 + $0x210] sm:$0xff]
          %v2649 = vld [vmem:[#allocation2 + $0x218] sm:$0xff]
          %v2650 = vld [vmem:[#allocation2 + $0x220] sm:$0xff]
          %v2651 = vld [vmem:[#allocation2 + $0x228] sm:$0xff]
          %v2652 = vld [vmem:[#allocation2 + $0x230] sm:$0xff]
          %v2653 = vld [vmem:[#allocation2 + $0x238] sm:$0xff]
          %v2654 = vld [vmem:[#allocation2 + $0x240] sm:$0xff]
          %v2655 = vld [vmem:[#allocation2 + $0x248] sm:$0xff]
          %v2656 = vld [vmem:[#allocation2 + $0x250] sm:$0xff]
          %v2657 = vld [vmem:[#allocation2 + $0x258] sm:$0xff]
          %v2658 = vld [vmem:[#allocation2 + $0x260] sm:$0xff]
          %v2659 = vld [vmem:[#allocation2 + $0x268] sm:$0xff]
          %v2660 = vld [vmem:[#allocation2 + $0x270] sm:$0xff]
          %v2661 = vld [vmem:[#allocation2 + $0x278] sm:$0xff]
          %v2662 = vld [vmem:[#allocation2 + $0x280] sm:$0xff]
          %v2663 = vld [vmem:[#allocation2 + $0x288] sm:$0xff]
          %v2664 = vld [vmem:[#allocation2 + $0x290] sm:$0xff]
          %v2665 = vld [vmem:[#allocation2 + $0x298] sm:$0xff]
          %v2666 = vld [vmem:[#allocation2 + $0x2a0] sm:$0xff]
          %v2667 = vld [vmem:[#allocation2 + $0x2a8] sm:$0xff]
          %v2668 = vld [vmem:[#allocation2 + $0x2b0] sm:$0xff]
          %v2669 = vld [vmem:[#allocation2 + $0x2b8] sm:$0xff]
          %v2670 = vld [vmem:[#allocation2 + $0x2c0] sm:$0xff]
          %v2671 = vld [vmem:[#allocation2 + $0x2c8] sm:$0xff]
          %v2672 = vld [vmem:[#allocation2 + $0x2d0] sm:$0xff]
          %v2673 = vld [vmem:[#allocation2 + $0x2d8] sm:$0xff]
          %v2674 = vld [vmem:[#allocation2 + $0x2e0] sm:$0xff]
          %v2675 = vld [vmem:[#allocation2 + $0x2e8] sm:$0xff]
          %v2676 = vld [vmem:[#allocation2 + $0x2f0] sm:$0xff]
          %v2677 = vld [vmem:[#allocation2 + $0x2f8] sm:$0xff]
          %v2678 = vld [vmem:[#allocation2 + $0x300] sm:$0xff]
          %v2679 = vld [vmem:[#allocation2 + $0x308] sm:$0xff]
          %v2680 = vld [vmem:[#allocation2 + $0x310] sm:$0xff]
          %v2681 = vld [vmem:[#allocation2 + $0x318] sm:$0xff]
          %v2682 = vld [vmem:[#allocation2 + $0x320] sm:$0xff]
          %v2683 = vld [vmem:[#allocation2 + $0x328] sm:$0xff]
          %v2684 = vld [vmem:[#allocation2 + $0x330] sm:$0xff]
          %v2685 = vld [vmem:[#allocation2 + $0x338] sm:$0xff]
          %v2686 = vld [vmem:[#allocation2 + $0x340] sm:$0xff]
          %v2687 = vld [vmem:[#allocation2 + $0x348] sm:$0xff]
          %v2688 = vld [vmem:[#allocation2 + $0x350] sm:$0xff]
          %v2689 = vld [vmem:[#allocation2 + $0x358] sm:$0xff]
          %v2690 = vld [vmem:[#allocation2 + $0x360] sm:$0xff]
          %v2691 = vld [vmem:[#allocation2 + $0x368] sm:$0xff]
          %v2692 = vld [vmem:[#allocation2 + $0x370] sm:$0xff]
          %v2693 = vld [vmem:[#allocation2 + $0x378] sm:$0xff]
          %v2694 = vld [vmem:[#allocation2 + $0x380] sm:$0xff]
          %v2695 = vld [vmem:[#allocation2 + $0x388] sm:$0xff]
          %v2696 = vld [vmem:[#allocation2 + $0x390] sm:$0xff]
          %v2697 = vld [vmem:[#allocation2 + $0x398] sm:$0xff]
          %v2698 = vld [vmem:[#allocation2 + $0x3a0] sm:$0xff]
          %v2699 = vld [vmem:[#allocation2 + $0x3a8] sm:$0xff]
          %v2700 = vld [vmem:[#allocation2 + $0x3b0] sm:$0xff]
          %v2701 = vld [vmem:[#allocation2 + $0x3b8] sm:$0xff]
          %v2702 = vld [vmem:[#allocation2 + $0x3c0] sm:$0xff]
          %v2703 = vld [vmem:[#allocation2 + $0x3c8] sm:$0xff]
          %v2704 = vld [vmem:[#allocation2 + $0x3d0] sm:$0xff]
          %v2705 = vld [vmem:[#allocation2 + $0x3d8] sm:$0xff]
          %v2706 = vld [vmem:[#allocation2 + $0x3e0] sm:$0xff]
          %v2707 = vld [vmem:[#allocation2 + $0x3e8] sm:$0xff]
          %v2708 = vld [vmem:[#allocation2 + $0x3f0] sm:$0xff]
          %v2709 = vld [vmem:[#allocation2 + $0x3f8] sm:$0xff]
          %v2710 = vld [vmem:[#allocation2 + $0x400] sm:$0xff]
          %v2711 = vld [vmem:[#allocation2 + $0x408] sm:$0xff]
          %v2712 = vld [vmem:[#allocation2 + $0x410] sm:$0xff]
          %v2713 = vld [vmem:[#allocation2 + $0x418] sm:$0xff]
          %v2714 = vld [vmem:[#allocation2 + $0x420] sm:$0xff]
          %v2715 = vld [vmem:[#allocation2 + $0x428] sm:$0xff]
          %v2716 = vld [vmem:[#allocation2 + $0x430] sm:$0xff]
          %v2717 = vld [vmem:[#allocation2 + $0x438] sm:$0xff]
          %v2718 = vld [vmem:[#allocation2 + $0x440] sm:$0xff]
          %v2719 = vld [vmem:[#allocation2 + $0x448] sm:$0xff]
          %v2720 = vld [vmem:[#allocation2 + $0x450] sm:$0xff]
          %v2721 = vld [vmem:[#allocation2 + $0x458] sm:$0xff]
          %v2722 = vld [vmem:[#allocation2 + $0x460] sm:$0xff]
          %v2723 = vld [vmem:[#allocation2 + $0x468] sm:$0xff]
          %v2724 = vld [vmem:[#allocation2 + $0x470] sm:$0xff]
          %v2725 = vld [vmem:[#allocation2 + $0x478] sm:$0xff]
          %v2726 = vld [vmem:[#allocation2 + $0x480] sm:$0xff]
          %v2727 = vld [vmem:[#allocation2 + $0x488] sm:$0xff]
          %v2728 = vld [vmem:[#allocation2 + $0x490] sm:$0xff]
          %v2729 = vld [vmem:[#allocation2 + $0x498] sm:$0xff]
          %v2730 = vld [vmem:[#allocation2 + $0x4a0] sm:$0xff]
          %v2731 = vld [vmem:[#allocation2 + $0x4a8] sm:$0xff]
          %v2732 = vld [vmem:[#allocation2 + $0x4b0] sm:$0xff]
          %v2733 = vld [vmem:[#allocation2 + $0x4b8] sm:$0xff]
          %v2734 = vld [vmem:[#allocation2 + $0x4c0] sm:$0xff]
          %v2735 = vld [vmem:[#allocation2 + $0x4c8] sm:$0xff]
          %v2736 = vld [vmem:[#allocation2 + $0x4d0] sm:$0xff]
          %v2737 = vld [vmem:[#allocation2 + $0x4d8] sm:$0xff]
          %v2738 = vld [vmem:[#allocation2 + $0x4e0] sm:$0xff]
          %v2739 = vld [vmem:[#allocation2 + $0x4e8] sm:$0xff]
          %v2740 = vld [vmem:[#allocation2 + $0x4f0] sm:$0xff]
          %v2741 = vld [vmem:[#allocation2 + $0x4f8] sm:$0xff]
          %v2742 = vld [vmem:[#allocation2 + $0x500] sm:$0xff]
          %v2743 = vld [vmem:[#allocation2 + $0x508] sm:$0xff]
          %v2744 = vld [vmem:[#allocation2 + $0x510] sm:$0xff]
          %v2745 = vld [vmem:[#allocation2 + $0x518] sm:$0xff]
          %v2746 = vld [vmem:[#allocation2 + $0x520] sm:$0xff]
          %v2747 = vld [vmem:[#allocation2 + $0x528] sm:$0xff]
          %v2748 = vld [vmem:[#allocation2 + $0x530] sm:$0xff]
          %v2749 = vld [vmem:[#allocation2 + $0x538] sm:$0xff]
          %v2750 = vld [vmem:[#allocation2 + $0x540] sm:$0xff]
          %v2751 = vld [vmem:[#allocation2 + $0x548] sm:$0xff]
          %v2752 = vld [vmem:[#allocation2 + $0x550] sm:$0xff]
          %v2753 = vld [vmem:[#allocation2 + $0x558] sm:$0xff]
          %v2754 = vld [vmem:[#allocation2 + $0x560] sm:$0xff]
          %v2755 = vld [vmem:[#allocation2 + $0x568] sm:$0xff]
          %v2756 = vld [vmem:[#allocation2 + $0x570] sm:$0xff]
          %v2757 = vld [vmem:[#allocation2 + $0x578] sm:$0xff]
          %v2758 = vld [vmem:[#allocation2 + $0x580] sm:$0xff]
          %v2759 = vld [vmem:[#allocation2 + $0x588] sm:$0xff]
          %v2760 = vld [vmem:[#allocation2 + $0x590] sm:$0xff]
          %v2761 = vld [vmem:[#allocation2 + $0x598] sm:$0xff]
          %v2762 = vld [vmem:[#allocation2 + $0x5a0] sm:$0xff]
          %v2763 = vld [vmem:[#allocation2 + $0x5a8] sm:$0xff]
          %v2764 = vld [vmem:[#allocation2 + $0x5b0] sm:$0xff]
          %v2765 = vld [vmem:[#allocation2 + $0x5b8] sm:$0xff]
          %v2766 = vld [vmem:[#allocation2 + $0x5c0] sm:$0xff]
          %v2767 = vld [vmem:[#allocation2 + $0x5c8] sm:$0xff]
          %v2768 = vld [vmem:[#allocation2 + $0x5d0] sm:$0xff]
          %v2769 = vld [vmem:[#allocation2 + $0x5d8] sm:$0xff]
          %v2770 = vld [vmem:[#allocation2 + $0x5e0] sm:$0xff]
          %v2771 = vld [vmem:[#allocation2 + $0x5e8] sm:$0xff]
          %v2772 = vld [vmem:[#allocation2 + $0x5f0] sm:$0xff]
          %v2773 = vld [vmem:[#allocation2 + $0x5f8] sm:$0xff]
          %v2774 = vld [vmem:[#allocation2 + $0x600] sm:$0xff]
          %v2775 = vld [vmem:[#allocation2 + $0x608] sm:$0xff]
          %v2776 = vld [vmem:[#allocation2 + $0x610] sm:$0xff]
          %v2777 = vld [vmem:[#allocation2 + $0x618] sm:$0xff]
          %v2778 = vld [vmem:[#allocation2 + $0x620] sm:$0xff]
          %v2779 = vld [vmem:[#allocation2 + $0x628] sm:$0xff]
          %v2780 = vld [vmem:[#allocation2 + $0x630] sm:$0xff]
          %v2781 = vld [vmem:[#allocation2 + $0x638] sm:$0xff]
          %v2782 = vld [vmem:[#allocation2 + $0x640] sm:$0xff]
          %v2783 = vld [vmem:[#allocation2 + $0x648] sm:$0xff]
          %v2784 = vld [vmem:[#allocation2 + $0x650] sm:$0xff]
          %v2785 = vld [vmem:[#allocation2 + $0x658] sm:$0xff]
          %v2786 = vld [vmem:[#allocation2 + $0x660] sm:$0xff]
          %v2787 = vld [vmem:[#allocation2 + $0x668] sm:$0xff]
          %v2788 = vld [vmem:[#allocation2 + $0x670] sm:$0xff]
          %v2789 = vld [vmem:[#allocation2 + $0x678] sm:$0xff]
          %v2790 = vld [vmem:[#allocation2 + $0x680] sm:$0xff]
          %v2791 = vld [vmem:[#allocation2 + $0x688] sm:$0xff]
          %v2792 = vld [vmem:[#allocation2 + $0x690] sm:$0xff]
          %v2793 = vld [vmem:[#allocation2 + $0x698] sm:$0xff]
          %v2794 = vld [vmem:[#allocation2 + $0x6a0] sm:$0xff]
          %v2795 = vld [vmem:[#allocation2 + $0x6a8] sm:$0xff]
          %v2796 = vld [vmem:[#allocation2 + $0x6b0] sm:$0xff]
          %v2797 = vld [vmem:[#allocation2 + $0x6b8] sm:$0xff]
          %v2798 = vld [vmem:[#allocation2 + $0x6c0] sm:$0xff]
          %v2799 = vld [vmem:[#allocation2 + $0x6c8] sm:$0xff]
          %v2800 = vld [vmem:[#allocation2 + $0x6d0] sm:$0xff]
          %v2801 = vld [vmem:[#allocation2 + $0x6d8] sm:$0xff]
          %v2802 = vld [vmem:[#allocation2 + $0x6e0] sm:$0xff]
          %v2803 = vld [vmem:[#allocation2 + $0x6e8] sm:$0xff]
          %v2804 = vld [vmem:[#allocation2 + $0x6f0] sm:$0xff]
          %v2805 = vld [vmem:[#allocation2 + $0x6f8] sm:$0xff]
          %v2806 = vld [vmem:[#allocation2 + $0x700] sm:$0xff]
          %v2807 = vld [vmem:[#allocation2 + $0x708] sm:$0xff]
          %v2808 = vld [vmem:[#allocation2 + $0x710] sm:$0xff]
          %v2809 = vld [vmem:[#allocation2 + $0x718] sm:$0xff]
          %v2810 = vld [vmem:[#allocation2 + $0x720] sm:$0xff]
          %v2811 = vld [vmem:[#allocation2 + $0x728] sm:$0xff]
          %v2812 = vld [vmem:[#allocation2 + $0x730] sm:$0xff]
          %v2813 = vld [vmem:[#allocation2 + $0x738] sm:$0xff]
          %v2814 = vld [vmem:[#allocation2 + $0x740] sm:$0xff]
          %v2815 = vld [vmem:[#allocation2 + $0x748] sm:$0xff]
          %v2816 = vld [vmem:[#allocation2 + $0x750] sm:$0xff]
          %v2817 = vld [vmem:[#allocation2 + $0x758] sm:$0xff]
          %v2818 = vld [vmem:[#allocation2 + $0x760] sm:$0xff]
          %v2819 = vld [vmem:[#allocation2 + $0x768] sm:$0xff]
          %v2820 = vld [vmem:[#allocation2 + $0x770] sm:$0xff]
          %v2821 = vld [vmem:[#allocation2 + $0x778] sm:$0xff]
          %v2822 = vld [vmem:[#allocation2 + $0x780] sm:$0xff]
          %v2823 = vld [vmem:[#allocation2 + $0x788] sm:$0xff]
          %v2824 = vld [vmem:[#allocation2 + $0x790] sm:$0xff]
          %v2825 = vld [vmem:[#allocation2 + $0x798] sm:$0xff]
          %v2826 = vld [vmem:[#allocation2 + $0x7a0] sm:$0xff]
          %v2827 = vld [vmem:[#allocation2 + $0x7a8] sm:$0xff]
          %v2828 = vld [vmem:[#allocation2 + $0x7b0] sm:$0xff]
          %v2829 = vld [vmem:[#allocation2 + $0x7b8] sm:$0xff]
          %v2830 = vld [vmem:[#allocation2 + $0x7c0] sm:$0xff]
          %v2831 = vld [vmem:[#allocation2 + $0x7c8] sm:$0xff]
          %v2832 = vld [vmem:[#allocation2 + $0x7d0] sm:$0xff]
          %v2833 = vld [vmem:[#allocation2 + $0x7d8] sm:$0xff]
          %v2834 = vld [vmem:[#allocation2 + $0x7e0] sm:$0xff]
          %v2835 = vld [vmem:[#allocation2 + $0x7e8] sm:$0xff]
          %v2836 = vld [vmem:[#allocation2 + $0x7f0] sm:$0xff]
          %v2837 = vld [vmem:[#allocation2 + $0x7f8] sm:$0xff]
          %v2838 = vld [vmem:[%s261] sm:$0x3]
          %v2840 = vlaneseq
          %v2841 = vshrl.u32 %v2840, 7
          %v2842 = vsub.s32 0, %v2841
          %v2843 = vrot.slane %v2838, %v2842
          %v2844 = vlaneseq
          %v2845 = vshrl.u32 %v2844, 7
          %v2846 = vsub.s32 1, %v2845
          %v2847 = vrot.slane %v2838, %v2846
          %v2850 = vadd.f32 %v2582, %v2843
          %v2851 = vadd.f32 %v2583, %v2847
          %v2852 = vadd.f32 %v2584, %v2843
          %v2853 = vadd.f32 %v2585, %v2847
          %v2854 = vadd.f32 %v2586, %v2843
          %v2855 = vadd.f32 %v2587, %v2847
          %v2856 = vadd.f32 %v2588, %v2843
          %v2857 = vadd.f32 %v2589, %v2847
          %v2858 = vadd.f32 %v2590, %v2843
          %v2859 = vadd.f32 %v2591, %v2847
          %v2860 = vadd.f32 %v2592, %v2843
          %v2861 = vadd.f32 %v2593, %v2847
          %v2862 = vadd.f32 %v2594, %v2843
          %v2863 = vadd.f32 %v2595, %v2847
          %v2864 = vadd.f32 %v2596, %v2843
          %v2865 = vadd.f32 %v2597, %v2847
          %v2866 = vadd.f32 %v2598, %v2843
          %v2867 = vadd.f32 %v2599, %v2847
          %v2868 = vadd.f32 %v2600, %v2843
          %v2869 = vadd.f32 %v2601, %v2847
          %v2870 = vadd.f32 %v2602, %v2843
          %v2871 = vadd.f32 %v2603, %v2847
          %v2872 = vadd.f32 %v2604, %v2843
          %v2873 = vadd.f32 %v2605, %v2847
          %v2874 = vadd.f32 %v2606, %v2843
          %v2875 = vadd.f32 %v2607, %v2847
          %v2876 = vadd.f32 %v2608, %v2843
          %v2877 = vadd.f32 %v2609, %v2847
          %v2878 = vadd.f32 %v2610, %v2843
          %v2879 = vadd.f32 %v2611, %v2847
          %v2880 = vadd.f32 %v2612, %v2843
          %v2881 = vadd.f32 %v2613, %v2847
          %v2882 = vadd.f32 %v2614, %v2843
          %v2883 = vadd.f32 %v2615, %v2847
          %v2884 = vadd.f32 %v2616, %v2843
          %v2885 = vadd.f32 %v2617, %v2847
          %v2886 = vadd.f32 %v2618, %v2843
          %v2887 = vadd.f32 %v2619, %v2847
          %v2888 = vadd.f32 %v2620, %v2843
          %v2889 = vadd.f32 %v2621, %v2847
          %v2890 = vadd.f32 %v2622, %v2843
          %v2891 = vadd.f32 %v2623, %v2847
          %v2892 = vadd.f32 %v2624, %v2843
          %v2893 = vadd.f32 %v2625, %v2847
          %v2894 = vadd.f32 %v2626, %v2843
          %v2895 = vadd.f32 %v2627, %v2847
          %v2896 = vadd.f32 %v2628, %v2843
          %v2897 = vadd.f32 %v2629, %v2847
          %v2898 = vadd.f32 %v2630, %v2843
          %v2899 = vadd.f32 %v2631, %v2847
          %v2900 = vadd.f32 %v2632, %v2843
          %v2901 = vadd.f32 %v2633, %v2847
          %v2902 = vadd.f32 %v2634, %v2843
          %v2903 = vadd.f32 %v2635, %v2847
          %v2904 = vadd.f32 %v2636, %v2843
          %v2905 = vadd.f32 %v2637, %v2847
          %v2906 = vadd.f32 %v2638, %v2843
          %v2907 = vadd.f32 %v2639, %v2847
          %v2908 = vadd.f32 %v2640, %v2843
          %v2909 = vadd.f32 %v2641, %v2847
          %v2910 = vadd.f32 %v2642, %v2843
          %v2911 = vadd.f32 %v2643, %v2847
          %v2912 = vadd.f32 %v2644, %v2843
          %v2913 = vadd.f32 %v2645, %v2847
          %v2914 = vadd.f32 %v2646, %v2843
          %v2915 = vadd.f32 %v2647, %v2847
          %v2916 = vadd.f32 %v2648, %v2843
          %v2917 = vadd.f32 %v2649, %v2847
          %v2918 = vadd.f32 %v2650, %v2843
          %v2919 = vadd.f32 %v2651, %v2847
          %v2920 = vadd.f32 %v2652, %v2843
          %v2921 = vadd.f32 %v2653, %v2847
          %v2922 = vadd.f32 %v2654, %v2843
          %v2923 = vadd.f32 %v2655, %v2847
          %v2924 = vadd.f32 %v2656, %v2843
          %v2925 = vadd.f32 %v2657, %v2847
          %v2926 = vadd.f32 %v2658, %v2843
          %v2927 = vadd.f32 %v2659, %v2847
          %v2928 = vadd.f32 %v2660, %v2843
          %v2929 = vadd.f32 %v2661, %v2847
          %v2930 = vadd.f32 %v2662, %v2843
          %v2931 = vadd.f32 %v2663, %v2847
          %v2932 = vadd.f32 %v2664, %v2843
          %v2933 = vadd.f32 %v2665, %v2847
          %v2934 = vadd.f32 %v2666, %v2843
          %v2935 = vadd.f32 %v2667, %v2847
          %v2936 = vadd.f32 %v2668, %v2843
          %v2937 = vadd.f32 %v2669, %v2847
          %v2938 = vadd.f32 %v2670, %v2843
          %v2939 = vadd.f32 %v2671, %v2847
          %v2940 = vadd.f32 %v2672, %v2843
          %v2941 = vadd.f32 %v2673, %v2847
          %v2942 = vadd.f32 %v2674, %v2843
          %v2943 = vadd.f32 %v2675, %v2847
          %v2944 = vadd.f32 %v2676, %v2843
          %v2945 = vadd.f32 %v2677, %v2847
          %v2946 = vadd.f32 %v2678, %v2843
          %v2947 = vadd.f32 %v2679, %v2847
          %v2948 = vadd.f32 %v2680, %v2843
          %v2949 = vadd.f32 %v2681, %v2847
          %v2950 = vadd.f32 %v2682, %v2843
          %v2951 = vadd.f32 %v2683, %v2847
          %v2952 = vadd.f32 %v2684, %v2843
          %v2953 = vadd.f32 %v2685, %v2847
          %v2954 = vadd.f32 %v2686, %v2843
          %v2955 = vadd.f32 %v2687, %v2847
          %v2956 = vadd.f32 %v2688, %v2843
          %v2957 = vadd.f32 %v2689, %v2847
          %v2958 = vadd.f32 %v2690, %v2843
          %v2959 = vadd.f32 %v2691, %v2847
          %v2960 = vadd.f32 %v2692, %v2843
          %v2961 = vadd.f32 %v2693, %v2847
          %v2962 = vadd.f32 %v2694, %v2843
          %v2963 = vadd.f32 %v2695, %v2847
          %v2964 = vadd.f32 %v2696, %v2843
          %v2965 = vadd.f32 %v2697, %v2847
          %v2966 = vadd.f32 %v2698, %v2843
          %v2967 = vadd.f32 %v2699, %v2847
          %v2968 = vadd.f32 %v2700, %v2843
          %v2969 = vadd.f32 %v2701, %v2847
          %v2970 = vadd.f32 %v2702, %v2843
          %v2971 = vadd.f32 %v2703, %v2847
          %v2972 = vadd.f32 %v2704, %v2843
          %v2973 = vadd.f32 %v2705, %v2847
          %v2974 = vadd.f32 %v2706, %v2843
          %v2975 = vadd.f32 %v2707, %v2847
          %v2976 = vadd.f32 %v2708, %v2843
          %v2977 = vadd.f32 %v2709, %v2847
          %v2978 = vadd.f32 %v2710, %v2843
          %v2979 = vadd.f32 %v2711, %v2847
          %v2980 = vadd.f32 %v2712, %v2843
          %v2981 = vadd.f32 %v2713, %v2847
          %v2982 = vadd.f32 %v2714, %v2843
          %v2983 = vadd.f32 %v2715, %v2847
          %v2984 = vadd.f32 %v2716, %v2843
          %v2985 = vadd.f32 %v2717, %v2847
          %v2986 = vadd.f32 %v2718, %v2843
          %v2987 = vadd.f32 %v2719, %v2847
          %v2988 = vadd.f32 %v2720, %v2843
          %v2989 = vadd.f32 %v2721, %v2847
          %v2990 = vadd.f32 %v2722, %v2843
          %v2991 = vadd.f32 %v2723, %v2847
          %v2992 = vadd.f32 %v2724, %v2843
          %v2993 = vadd.f32 %v2725, %v2847
          %v2994 = vadd.f32 %v2726, %v2843
          %v2995 = vadd.f32 %v2727, %v2847
          %v2996 = vadd.f32 %v2728, %v2843
          %v2997 = vadd.f32 %v2729, %v2847
          %v2998 = vadd.f32 %v2730, %v2843
          %v2999 = vadd.f32 %v2731, %v2847
          %v3000 = vadd.f32 %v2732, %v2843
          %v3001 = vadd.f32 %v2733, %v2847
          %v3002 = vadd.f32 %v2734, %v2843
          %v3003 = vadd.f32 %v2735, %v2847
          %v3004 = vadd.f32 %v2736, %v2843
          %v3005 = vadd.f32 %v2737, %v2847
          %v3006 = vadd.f32 %v2738, %v2843
          %v3007 = vadd.f32 %v2739, %v2847
          %v3008 = vadd.f32 %v2740, %v2843
          %v3009 = vadd.f32 %v2741, %v2847
          %v3010 = vadd.f32 %v2742, %v2843
          %v3011 = vadd.f32 %v2743, %v2847
          %v3012 = vadd.f32 %v2744, %v2843
          %v3013 = vadd.f32 %v2745, %v2847
          %v3014 = vadd.f32 %v2746, %v2843
          %v3015 = vadd.f32 %v2747, %v2847
          %v3016 = vadd.f32 %v2748, %v2843
          %v3017 = vadd.f32 %v2749, %v2847
          %v3018 = vadd.f32 %v2750, %v2843
          %v3019 = vadd.f32 %v2751, %v2847
          %v3020 = vadd.f32 %v2752, %v2843
          %v3021 = vadd.f32 %v2753, %v2847
          %v3022 = vadd.f32 %v2754, %v2843
          %v3023 = vadd.f32 %v2755, %v2847
          %v3024 = vadd.f32 %v2756, %v2843
          %v3025 = vadd.f32 %v2757, %v2847
          %v3026 = vadd.f32 %v2758, %v2843
          %v3027 = vadd.f32 %v2759, %v2847
          %v3028 = vadd.f32 %v2760, %v2843
          %v3029 = vadd.f32 %v2761, %v2847
          %v3030 = vadd.f32 %v2762, %v2843
          %v3031 = vadd.f32 %v2763, %v2847
          %v3032 = vadd.f32 %v2764, %v2843
          %v3033 = vadd.f32 %v2765, %v2847
          %v3034 = vadd.f32 %v2766, %v2843
          %v3035 = vadd.f32 %v2767, %v2847
          %v3036 = vadd.f32 %v2768, %v2843
          %v3037 = vadd.f32 %v2769, %v2847
          %v3038 = vadd.f32 %v2770, %v2843
          %v3039 = vadd.f32 %v2771, %v2847
          %v3040 = vadd.f32 %v2772, %v2843
          %v3041 = vadd.f32 %v2773, %v2847
          %v3042 = vadd.f32 %v2774, %v2843
          %v3043 = vadd.f32 %v2775, %v2847
          %v3044 = vadd.f32 %v2776, %v2843
          %v3045 = vadd.f32 %v2777, %v2847
          %v3046 = vadd.f32 %v2778, %v2843
          %v3047 = vadd.f32 %v2779, %v2847
          %v3048 = vadd.f32 %v2780, %v2843
          %v3049 = vadd.f32 %v2781, %v2847
          %v3050 = vadd.f32 %v2782, %v2843
          %v3051 = vadd.f32 %v2783, %v2847
          %v3052 = vadd.f32 %v2784, %v2843
          %v3053 = vadd.f32 %v2785, %v2847
          %v3054 = vadd.f32 %v2786, %v2843
          %v3055 = vadd.f32 %v2787, %v2847
          %v3056 = vadd.f32 %v2788, %v2843
          %v3057 = vadd.f32 %v2789, %v2847
          %v3058 = vadd.f32 %v2790, %v2843
          %v3059 = vadd.f32 %v2791, %v2847
          %v3060 = vadd.f32 %v2792, %v2843
          %v3061 = vadd.f32 %v2793, %v2847
          %v3062 = vadd.f32 %v2794, %v2843
          %v3063 = vadd.f32 %v2795, %v2847
          %v3064 = vadd.f32 %v2796, %v2843
          %v3065 = vadd.f32 %v2797, %v2847
          %v3066 = vadd.f32 %v2798, %v2843
          %v3067 = vadd.f32 %v2799, %v2847
          %v3068 = vadd.f32 %v2800, %v2843
          %v3069 = vadd.f32 %v2801, %v2847
          %v3070 = vadd.f32 %v2802, %v2843
          %v3071 = vadd.f32 %v2803, %v2847
          %v3072 = vadd.f32 %v2804, %v2843
          %v3073 = vadd.f32 %v2805, %v2847
          %v3074 = vadd.f32 %v2806, %v2843
          %v3075 = vadd.f32 %v2807, %v2847
          %v3076 = vadd.f32 %v2808, %v2843
          %v3077 = vadd.f32 %v2809, %v2847
          %v3078 = vadd.f32 %v2810, %v2843
          %v3079 = vadd.f32 %v2811, %v2847
          %v3080 = vadd.f32 %v2812, %v2843
          %v3081 = vadd.f32 %v2813, %v2847
          %v3082 = vadd.f32 %v2814, %v2843
          %v3083 = vadd.f32 %v2815, %v2847
          %v3084 = vadd.f32 %v2816, %v2843
          %v3085 = vadd.f32 %v2817, %v2847
          %v3086 = vadd.f32 %v2818, %v2843
          %v3087 = vadd.f32 %v2819, %v2847
          %v3088 = vadd.f32 %v2820, %v2843
          %v3089 = vadd.f32 %v2821, %v2847
          %v3090 = vadd.f32 %v2822, %v2843
          %v3091 = vadd.f32 %v2823, %v2847
          %v3092 = vadd.f32 %v2824, %v2843
          %v3093 = vadd.f32 %v2825, %v2847
          %v3094 = vadd.f32 %v2826, %v2843
          %v3095 = vadd.f32 %v2827, %v2847
          %v3096 = vadd.f32 %v2828, %v2843
          %v3097 = vadd.f32 %v2829, %v2847
          %v3098 = vadd.f32 %v2830, %v2843
          %v3099 = vadd.f32 %v2831, %v2847
          %v3100 = vadd.f32 %v2832, %v2843
          %v3101 = vadd.f32 %v2833, %v2847
          %v3102 = vadd.f32 %v2834, %v2843
          %v3103 = vadd.f32 %v2835, %v2847
          %v3104 = vadd.f32 %v2836, %v2843
          %v3105 = vadd.f32 %v2837, %v2847
          %vm3106 = vcmp.ge.f32.partialorder %v2850, 0.0
          %vm3107 = vcmp.ge.f32.partialorder %v2851, 0.0
          %vm3108 = vcmp.ge.f32.partialorder %v2852, 0.0
          %vm3109 = vcmp.ge.f32.partialorder %v2853, 0.0
          %vm3110 = vcmp.ge.f32.partialorder %v2854, 0.0
          %vm3111 = vcmp.ge.f32.partialorder %v2855, 0.0
          %vm3112 = vcmp.ge.f32.partialorder %v2856, 0.0
          %vm3113 = vcmp.ge.f32.partialorder %v2857, 0.0
          %vm3114 = vcmp.ge.f32.partialorder %v2858, 0.0
          %vm3115 = vcmp.ge.f32.partialorder %v2859, 0.0
          %vm3116 = vcmp.ge.f32.partialorder %v2860, 0.0
          %vm3117 = vcmp.ge.f32.partialorder %v2861, 0.0
          %vm3118 = vcmp.ge.f32.partialorder %v2862, 0.0
          %vm3119 = vcmp.ge.f32.partialorder %v2863, 0.0
          %vm3120 = vcmp.ge.f32.partialorder %v2864, 0.0
          %vm3121 = vcmp.ge.f32.partialorder %v2865, 0.0
          %vm3122 = vcmp.ge.f32.partialorder %v2866, 0.0
          %vm3123 = vcmp.ge.f32.partialorder %v2867, 0.0
          %vm3124 = vcmp.ge.f32.partialorder %v2868, 0.0
          %vm3125 = vcmp.ge.f32.partialorder %v2869, 0.0
          %vm3126 = vcmp.ge.f32.partialorder %v2870, 0.0
          %vm3127 = vcmp.ge.f32.partialorder %v2871, 0.0
          %vm3128 = vcmp.ge.f32.partialorder %v2872, 0.0
          %vm3129 = vcmp.ge.f32.partialorder %v2873, 0.0
          %vm3130 = vcmp.ge.f32.partialorder %v2874, 0.0
          %vm3131 = vcmp.ge.f32.partialorder %v2875, 0.0
          %vm3132 = vcmp.ge.f32.partialorder %v2876, 0.0
          %vm3133 = vcmp.ge.f32.partialorder %v2877, 0.0
          %vm3134 = vcmp.ge.f32.partialorder %v2878, 0.0
          %vm3135 = vcmp.ge.f32.partialorder %v2879, 0.0
          %vm3136 = vcmp.ge.f32.partialorder %v2880, 0.0
          %vm3137 = vcmp.ge.f32.partialorder %v2881, 0.0
          %vm3138 = vcmp.ge.f32.partialorder %v2882, 0.0
          %vm3139 = vcmp.ge.f32.partialorder %v2883, 0.0
          %vm3140 = vcmp.ge.f32.partialorder %v2884, 0.0
          %vm3141 = vcmp.ge.f32.partialorder %v2885, 0.0
          %vm3142 = vcmp.ge.f32.partialorder %v2886, 0.0
          %vm3143 = vcmp.ge.f32.partialorder %v2887, 0.0
          %vm3144 = vcmp.ge.f32.partialorder %v2888, 0.0
          %vm3145 = vcmp.ge.f32.partialorder %v2889, 0.0
          %vm3146 = vcmp.ge.f32.partialorder %v2890, 0.0
          %vm3147 = vcmp.ge.f32.partialorder %v2891, 0.0
          %vm3148 = vcmp.ge.f32.partialorder %v2892, 0.0
          %vm3149 = vcmp.ge.f32.partialorder %v2893, 0.0
          %vm3150 = vcmp.ge.f32.partialorder %v2894, 0.0
          %vm3151 = vcmp.ge.f32.partialorder %v2895, 0.0
          %vm3152 = vcmp.ge.f32.partialorder %v2896, 0.0
          %vm3153 = vcmp.ge.f32.partialorder %v2897, 0.0
          %vm3154 = vcmp.ge.f32.partialorder %v2898, 0.0
          %vm3155 = vcmp.ge.f32.partialorder %v2899, 0.0
          %vm3156 = vcmp.ge.f32.partialorder %v2900, 0.0
          %vm3157 = vcmp.ge.f32.partialorder %v2901, 0.0
          %vm3158 = vcmp.ge.f32.partialorder %v2902, 0.0
          %vm3159 = vcmp.ge.f32.partialorder %v2903, 0.0
          %vm3160 = vcmp.ge.f32.partialorder %v2904, 0.0
          %vm3161 = vcmp.ge.f32.partialorder %v2905, 0.0
          %vm3162 = vcmp.ge.f32.partialorder %v2906, 0.0
          %vm3163 = vcmp.ge.f32.partialorder %v2907, 0.0
          %vm3164 = vcmp.ge.f32.partialorder %v2908, 0.0
          %vm3165 = vcmp.ge.f32.partialorder %v2909, 0.0
          %vm3166 = vcmp.ge.f32.partialorder %v2910, 0.0
          %vm3167 = vcmp.ge.f32.partialorder %v2911, 0.0
          %vm3168 = vcmp.ge.f32.partialorder %v2912, 0.0
          %vm3169 = vcmp.ge.f32.partialorder %v2913, 0.0
          %vm3170 = vcmp.ge.f32.partialorder %v2914, 0.0
          %vm3171 = vcmp.ge.f32.partialorder %v2915, 0.0
          %vm3172 = vcmp.ge.f32.partialorder %v2916, 0.0
          %vm3173 = vcmp.ge.f32.partialorder %v2917, 0.0
          %vm3174 = vcmp.ge.f32.partialorder %v2918, 0.0
          %vm3175 = vcmp.ge.f32.partialorder %v2919, 0.0
          %vm3176 = vcmp.ge.f32.partialorder %v2920, 0.0
          %vm3177 = vcmp.ge.f32.partialorder %v2921, 0.0
          %vm3178 = vcmp.ge.f32.partialorder %v2922, 0.0
          %vm3179 = vcmp.ge.f32.partialorder %v2923, 0.0
          %vm3180 = vcmp.ge.f32.partialorder %v2924, 0.0
          %vm3181 = vcmp.ge.f32.partialorder %v2925, 0.0
          %vm3182 = vcmp.ge.f32.partialorder %v2926, 0.0
          %vm3183 = vcmp.ge.f32.partialorder %v2927, 0.0
          %vm3184 = vcmp.ge.f32.partialorder %v2928, 0.0
          %vm3185 = vcmp.ge.f32.partialorder %v2929, 0.0
          %vm3186 = vcmp.ge.f32.partialorder %v2930, 0.0
          %vm3187 = vcmp.ge.f32.partialorder %v2931, 0.0
          %vm3188 = vcmp.ge.f32.partialorder %v2932, 0.0
          %vm3189 = vcmp.ge.f32.partialorder %v2933, 0.0
          %vm3190 = vcmp.ge.f32.partialorder %v2934, 0.0
          %vm3191 = vcmp.ge.f32.partialorder %v2935, 0.0
          %vm3192 = vcmp.ge.f32.partialorder %v2936, 0.0
          %vm3193 = vcmp.ge.f32.partialorder %v2937, 0.0
          %vm3194 = vcmp.ge.f32.partialorder %v2938, 0.0
          %vm3195 = vcmp.ge.f32.partialorder %v2939, 0.0
          %vm3196 = vcmp.ge.f32.partialorder %v2940, 0.0
          %vm3197 = vcmp.ge.f32.partialorder %v2941, 0.0
          %vm3198 = vcmp.ge.f32.partialorder %v2942, 0.0
          %vm3199 = vcmp.ge.f32.partialorder %v2943, 0.0
          %vm3200 = vcmp.ge.f32.partialorder %v2944, 0.0
          %vm3201 = vcmp.ge.f32.partialorder %v2945, 0.0
          %vm3202 = vcmp.ge.f32.partialorder %v2946, 0.0
          %vm3203 = vcmp.ge.f32.partialorder %v2947, 0.0
          %vm3204 = vcmp.ge.f32.partialorder %v2948, 0.0
          %vm3205 = vcmp.ge.f32.partialorder %v2949, 0.0
          %vm3206 = vcmp.ge.f32.partialorder %v2950, 0.0
          %vm3207 = vcmp.ge.f32.partialorder %v2951, 0.0
          %vm3208 = vcmp.ge.f32.partialorder %v2952, 0.0
          %vm3209 = vcmp.ge.f32.partialorder %v2953, 0.0
          %vm3210 = vcmp.ge.f32.partialorder %v2954, 0.0
          %vm3211 = vcmp.ge.f32.partialorder %v2955, 0.0
          %vm3212 = vcmp.ge.f32.partialorder %v2956, 0.0
          %vm3213 = vcmp.ge.f32.partialorder %v2957, 0.0
          %vm3214 = vcmp.ge.f32.partialorder %v2958, 0.0
          %vm3215 = vcmp.ge.f32.partialorder %v2959, 0.0
          %vm3216 = vcmp.ge.f32.partialorder %v2960, 0.0
          %vm3217 = vcmp.ge.f32.partialorder %v2961, 0.0
          %vm3218 = vcmp.ge.f32.partialorder %v2962, 0.0
          %vm3219 = vcmp.ge.f32.partialorder %v2963, 0.0
          %vm3220 = vcmp.ge.f32.partialorder %v2964, 0.0
          %vm3221 = vcmp.ge.f32.partialorder %v2965, 0.0
          %vm3222 = vcmp.ge.f32.partialorder %v2966, 0.0
          %vm3223 = vcmp.ge.f32.partialorder %v2967, 0.0
          %vm3224 = vcmp.ge.f32.partialorder %v2968, 0.0
          %vm3225 = vcmp.ge.f32.partialorder %v2969, 0.0
          %vm3226 = vcmp.ge.f32.partialorder %v2970, 0.0
          %vm3227 = vcmp.ge.f32.partialorder %v2971, 0.0
          %vm3228 = vcmp.ge.f32.partialorder %v2972, 0.0
          %vm3229 = vcmp.ge.f32.partialorder %v2973, 0.0
          %vm3230 = vcmp.ge.f32.partialorder %v2974, 0.0
          %vm3231 = vcmp.ge.f32.partialorder %v2975, 0.0
          %vm3232 = vcmp.ge.f32.partialorder %v2976, 0.0
          %vm3233 = vcmp.ge.f32.partialorder %v2977, 0.0
          %vm3234 = vcmp.ge.f32.partialorder %v2978, 0.0
          %vm3235 = vcmp.ge.f32.partialorder %v2979, 0.0
          %vm3236 = vcmp.ge.f32.partialorder %v2980, 0.0
          %vm3237 = vcmp.ge.f32.partialorder %v2981, 0.0
          %vm3238 = vcmp.ge.f32.partialorder %v2982, 0.0
          %vm3239 = vcmp.ge.f32.partialorder %v2983, 0.0
          %vm3240 = vcmp.ge.f32.partialorder %v2984, 0.0
          %vm3241 = vcmp.ge.f32.partialorder %v2985, 0.0
          %vm3242 = vcmp.ge.f32.partialorder %v2986, 0.0
          %vm3243 = vcmp.ge.f32.partialorder %v2987, 0.0
          %vm3244 = vcmp.ge.f32.partialorder %v2988, 0.0
          %vm3245 = vcmp.ge.f32.partialorder %v2989, 0.0
          %vm3246 = vcmp.ge.f32.partialorder %v2990, 0.0
          %vm3247 = vcmp.ge.f32.partialorder %v2991, 0.0
          %vm3248 = vcmp.ge.f32.partialorder %v2992, 0.0
          %vm3249 = vcmp.ge.f32.partialorder %v2993, 0.0
          %vm3250 = vcmp.ge.f32.partialorder %v2994, 0.0
          %vm3251 = vcmp.ge.f32.partialorder %v2995, 0.0
          %vm3252 = vcmp.ge.f32.partialorder %v2996, 0.0
          %vm3253 = vcmp.ge.f32.partialorder %v2997, 0.0
          %vm3254 = vcmp.ge.f32.partialorder %v2998, 0.0
          %vm3255 = vcmp.ge.f32.partialorder %v2999, 0.0
          %vm3256 = vcmp.ge.f32.partialorder %v3000, 0.0
          %vm3257 = vcmp.ge.f32.partialorder %v3001, 0.0
          %vm3258 = vcmp.ge.f32.partialorder %v3002, 0.0
          %vm3259 = vcmp.ge.f32.partialorder %v3003, 0.0
          %vm3260 = vcmp.ge.f32.partialorder %v3004, 0.0
          %vm3261 = vcmp.ge.f32.partialorder %v3005, 0.0
          %vm3262 = vcmp.ge.f32.partialorder %v3006, 0.0
          %vm3263 = vcmp.ge.f32.partialorder %v3007, 0.0
          %vm3264 = vcmp.ge.f32.partialorder %v3008, 0.0
          %vm3265 = vcmp.ge.f32.partialorder %v3009, 0.0
          %vm3266 = vcmp.ge.f32.partialorder %v3010, 0.0
          %vm3267 = vcmp.ge.f32.partialorder %v3011, 0.0
          %vm3268 = vcmp.ge.f32.partialorder %v3012, 0.0
          %vm3269 = vcmp.ge.f32.partialorder %v3013, 0.0
          %vm3270 = vcmp.ge.f32.partialorder %v3014, 0.0
          %vm3271 = vcmp.ge.f32.partialorder %v3015, 0.0
          %vm3272 = vcmp.ge.f32.partialorder %v3016, 0.0
          %vm3273 = vcmp.ge.f32.partialorder %v3017, 0.0
          %vm3274 = vcmp.ge.f32.partialorder %v3018, 0.0
          %vm3275 = vcmp.ge.f32.partialorder %v3019, 0.0
          %vm3276 = vcmp.ge.f32.partialorder %v3020, 0.0
          %vm3277 = vcmp.ge.f32.partialorder %v3021, 0.0
          %vm3278 = vcmp.ge.f32.partialorder %v3022, 0.0
          %vm3279 = vcmp.ge.f32.partialorder %v3023, 0.0
          %vm3280 = vcmp.ge.f32.partialorder %v3024, 0.0
          %vm3281 = vcmp.ge.f32.partialorder %v3025, 0.0
          %vm3282 = vcmp.ge.f32.partialorder %v3026, 0.0
          %vm3283 = vcmp.ge.f32.partialorder %v3027, 0.0
          %vm3284 = vcmp.ge.f32.partialorder %v3028, 0.0
          %vm3285 = vcmp.ge.f32.partialorder %v3029, 0.0
          %vm3286 = vcmp.ge.f32.partialorder %v3030, 0.0
          %vm3287 = vcmp.ge.f32.partialorder %v3031, 0.0
          %vm3288 = vcmp.ge.f32.partialorder %v3032, 0.0
          %vm3289 = vcmp.ge.f32.partialorder %v3033, 0.0
          %vm3290 = vcmp.ge.f32.partialorder %v3034, 0.0
          %vm3291 = vcmp.ge.f32.partialorder %v3035, 0.0
          %vm3292 = vcmp.ge.f32.partialorder %v3036, 0.0
          %vm3293 = vcmp.ge.f32.partialorder %v3037, 0.0
          %vm3294 = vcmp.ge.f32.partialorder %v3038, 0.0
          %vm3295 = vcmp.ge.f32.partialorder %v3039, 0.0
          %vm3296 = vcmp.ge.f32.partialorder %v3040, 0.0
          %vm3297 = vcmp.ge.f32.partialorder %v3041, 0.0
          %vm3298 = vcmp.ge.f32.partialorder %v3042, 0.0
          %vm3299 = vcmp.ge.f32.partialorder %v3043, 0.0
          %vm3300 = vcmp.ge.f32.partialorder %v3044, 0.0
          %vm3301 = vcmp.ge.f32.partialorder %v3045, 0.0
          %vm3302 = vcmp.ge.f32.partialorder %v3046, 0.0
          %vm3303 = vcmp.ge.f32.partialorder %v3047, 0.0
          %vm3304 = vcmp.ge.f32.partialorder %v3048, 0.0
          %vm3305 = vcmp.ge.f32.partialorder %v3049, 0.0
          %vm3306 = vcmp.ge.f32.partialorder %v3050, 0.0
          %vm3307 = vcmp.ge.f32.partialorder %v3051, 0.0
          %vm3308 = vcmp.ge.f32.partialorder %v3052, 0.0
          %vm3309 = vcmp.ge.f32.partialorder %v3053, 0.0
          %vm3310 = vcmp.ge.f32.partialorder %v3054, 0.0
          %vm3311 = vcmp.ge.f32.partialorder %v3055, 0.0
          %vm3312 = vcmp.ge.f32.partialorder %v3056, 0.0
          %vm3313 = vcmp.ge.f32.partialorder %v3057, 0.0
          %vm3314 = vcmp.ge.f32.partialorder %v3058, 0.0
          %vm3315 = vcmp.ge.f32.partialorder %v3059, 0.0
          %vm3316 = vcmp.ge.f32.partialorder %v3060, 0.0
          %vm3317 = vcmp.ge.f32.partialorder %v3061, 0.0
          %vm3318 = vcmp.ge.f32.partialorder %v3062, 0.0
          %vm3319 = vcmp.ge.f32.partialorder %v3063, 0.0
          %vm3320 = vcmp.ge.f32.partialorder %v3064, 0.0
          %vm3321 = vcmp.ge.f32.partialorder %v3065, 0.0
          %vm3322 = vcmp.ge.f32.partialorder %v3066, 0.0
          %vm3323 = vcmp.ge.f32.partialorder %v3067, 0.0
          %vm3324 = vcmp.ge.f32.partialorder %v3068, 0.0
          %vm3325 = vcmp.ge.f32.partialorder %v3069, 0.0
          %vm3326 = vcmp.ge.f32.partialorder %v3070, 0.0
          %vm3327 = vcmp.ge.f32.partialorder %v3071, 0.0
          %vm3328 = vcmp.ge.f32.partialorder %v3072, 0.0
          %vm3329 = vcmp.ge.f32.partialorder %v3073, 0.0
          %vm3330 = vcmp.ge.f32.partialorder %v3074, 0.0
          %vm3331 = vcmp.ge.f32.partialorder %v3075, 0.0
          %vm3332 = vcmp.ge.f32.partialorder %v3076, 0.0
          %vm3333 = vcmp.ge.f32.partialorder %v3077, 0.0
          %vm3334 = vcmp.ge.f32.partialorder %v3078, 0.0
          %vm3335 = vcmp.ge.f32.partialorder %v3079, 0.0
          %vm3336 = vcmp.ge.f32.partialorder %v3080, 0.0
          %vm3337 = vcmp.ge.f32.partialorder %v3081, 0.0
          %vm3338 = vcmp.ge.f32.partialorder %v3082, 0.0
          %vm3339 = vcmp.ge.f32.partialorder %v3083, 0.0
          %vm3340 = vcmp.ge.f32.partialorder %v3084, 0.0
          %vm3341 = vcmp.ge.f32.partialorder %v3085, 0.0
          %vm3342 = vcmp.ge.f32.partialorder %v3086, 0.0
          %vm3343 = vcmp.ge.f32.partialorder %v3087, 0.0
          %vm3344 = vcmp.ge.f32.partialorder %v3088, 0.0
          %vm3345 = vcmp.ge.f32.partialorder %v3089, 0.0
          %vm3346 = vcmp.ge.f32.partialorder %v3090, 0.0
          %vm3347 = vcmp.ge.f32.partialorder %v3091, 0.0
          %vm3348 = vcmp.ge.f32.partialorder %v3092, 0.0
          %vm3349 = vcmp.ge.f32.partialorder %v3093, 0.0
          %vm3350 = vcmp.ge.f32.partialorder %v3094, 0.0
          %vm3351 = vcmp.ge.f32.partialorder %v3095, 0.0
          %vm3352 = vcmp.ge.f32.partialorder %v3096, 0.0
          %vm3353 = vcmp.ge.f32.partialorder %v3097, 0.0
          %vm3354 = vcmp.ge.f32.partialorder %v3098, 0.0
          %vm3355 = vcmp.ge.f32.partialorder %v3099, 0.0
          %vm3356 = vcmp.ge.f32.partialorder %v3100, 0.0
          %vm3357 = vcmp.ge.f32.partialorder %v3101, 0.0
          %vm3358 = vcmp.ge.f32.partialorder %v3102, 0.0
          %vm3359 = vcmp.ge.f32.partialorder %v3103, 0.0
          %vm3360 = vcmp.ge.f32.partialorder %v3104, 0.0
          %vm3361 = vcmp.ge.f32.partialorder %v3105, 0.0
          %v3362 = vmul.f32 %v2850, 0.2
          %v3363 = vmul.f32 %v2851, 0.2
          %v3364 = vmul.f32 %v2852, 0.2
          %v3365 = vmul.f32 %v2853, 0.2
          %v3366 = vmul.f32 %v2854, 0.2
          %v3367 = vmul.f32 %v2855, 0.2
          %v3368 = vmul.f32 %v2856, 0.2
          %v3369 = vmul.f32 %v2857, 0.2
          %v3370 = vmul.f32 %v2858, 0.2
          %v3371 = vmul.f32 %v2859, 0.2
          %v3372 = vmul.f32 %v2860, 0.2
          %v3373 = vmul.f32 %v2861, 0.2
          %v3374 = vmul.f32 %v2862, 0.2
          %v3375 = vmul.f32 %v2863, 0.2
          %v3376 = vmul.f32 %v2864, 0.2
          %v3377 = vmul.f32 %v2865, 0.2
          %v3378 = vmul.f32 %v2866, 0.2
          %v3379 = vmul.f32 %v2867, 0.2
          %v3380 = vmul.f32 %v2868, 0.2
          %v3381 = vmul.f32 %v2869, 0.2
          %v3382 = vmul.f32 %v2870, 0.2
          %v3383 = vmul.f32 %v2871, 0.2
          %v3384 = vmul.f32 %v2872, 0.2
          %v3385 = vmul.f32 %v2873, 0.2
          %v3386 = vmul.f32 %v2874, 0.2
          %v3387 = vmul.f32 %v2875, 0.2
          %v3388 = vmul.f32 %v2876, 0.2
          %v3389 = vmul.f32 %v2877, 0.2
          %v3390 = vmul.f32 %v2878, 0.2
          %v3391 = vmul.f32 %v2879, 0.2
          %v3392 = vmul.f32 %v2880, 0.2
          %v3393 = vmul.f32 %v2881, 0.2
          %v3394 = vmul.f32 %v2882, 0.2
          %v3395 = vmul.f32 %v2883, 0.2
          %v3396 = vmul.f32 %v2884, 0.2
          %v3397 = vmul.f32 %v2885, 0.2
          %v3398 = vmul.f32 %v2886, 0.2
          %v3399 = vmul.f32 %v2887, 0.2
          %v3400 = vmul.f32 %v2888, 0.2
          %v3401 = vmul.f32 %v2889, 0.2
          %v3402 = vmul.f32 %v2890, 0.2
          %v3403 = vmul.f32 %v2891, 0.2
          %v3404 = vmul.f32 %v2892, 0.2
          %v3405 = vmul.f32 %v2893, 0.2
          %v3406 = vmul.f32 %v2894, 0.2
          %v3407 = vmul.f32 %v2895, 0.2
          %v3408 = vmul.f32 %v2896, 0.2
          %v3409 = vmul.f32 %v2897, 0.2
          %v3410 = vmul.f32 %v2898, 0.2
          %v3411 = vmul.f32 %v2899, 0.2
          %v3412 = vmul.f32 %v2900, 0.2
          %v3413 = vmul.f32 %v2901, 0.2
          %v3414 = vmul.f32 %v2902, 0.2
          %v3415 = vmul.f32 %v2903, 0.2
          %v3416 = vmul.f32 %v2904, 0.2
          %v3417 = vmul.f32 %v2905, 0.2
          %v3418 = vmul.f32 %v2906, 0.2
          %v3419 = vmul.f32 %v2907, 0.2
          %v3420 = vmul.f32 %v2908, 0.2
          %v3421 = vmul.f32 %v2909, 0.2
          %v3422 = vmul.f32 %v2910, 0.2
          %v3423 = vmul.f32 %v2911, 0.2
          %v3424 = vmul.f32 %v2912, 0.2
          %v3425 = vmul.f32 %v2913, 0.2
          %v3426 = vmul.f32 %v2914, 0.2
          %v3427 = vmul.f32 %v2915, 0.2
          %v3428 = vmul.f32 %v2916, 0.2
          %v3429 = vmul.f32 %v2917, 0.2
          %v3430 = vmul.f32 %v2918, 0.2
          %v3431 = vmul.f32 %v2919, 0.2
          %v3432 = vmul.f32 %v2920, 0.2
          %v3433 = vmul.f32 %v2921, 0.2
          %v3434 = vmul.f32 %v2922, 0.2
          %v3435 = vmul.f32 %v2923, 0.2
          %v3436 = vmul.f32 %v2924, 0.2
          %v3437 = vmul.f32 %v2925, 0.2
          %v3438 = vmul.f32 %v2926, 0.2
          %v3439 = vmul.f32 %v2927, 0.2
          %v3440 = vmul.f32 %v2928, 0.2
          %v3441 = vmul.f32 %v2929, 0.2
          %v3442 = vmul.f32 %v2930, 0.2
          %v3443 = vmul.f32 %v2931, 0.2
          %v3444 = vmul.f32 %v2932, 0.2
          %v3445 = vmul.f32 %v2933, 0.2
          %v3446 = vmul.f32 %v2934, 0.2
          %v3447 = vmul.f32 %v2935, 0.2
          %v3448 = vmul.f32 %v2936, 0.2
          %v3449 = vmul.f32 %v2937, 0.2
          %v3450 = vmul.f32 %v2938, 0.2
          %v3451 = vmul.f32 %v2939, 0.2
          %v3452 = vmul.f32 %v2940, 0.2
          %v3453 = vmul.f32 %v2941, 0.2
          %v3454 = vmul.f32 %v2942, 0.2
          %v3455 = vmul.f32 %v2943, 0.2
          %v3456 = vmul.f32 %v2944, 0.2
          %v3457 = vmul.f32 %v2945, 0.2
          %v3458 = vmul.f32 %v2946, 0.2
          %v3459 = vmul.f32 %v2947, 0.2
          %v3460 = vmul.f32 %v2948, 0.2
          %v3461 = vmul.f32 %v2949, 0.2
          %v3462 = vmul.f32 %v2950, 0.2
          %v3463 = vmul.f32 %v2951, 0.2
          %v3464 = vmul.f32 %v2952, 0.2
          %v3465 = vmul.f32 %v2953, 0.2
          %v3466 = vmul.f32 %v2954, 0.2
          %v3467 = vmul.f32 %v2955, 0.2
          %v3468 = vmul.f32 %v2956, 0.2
          %v3469 = vmul.f32 %v2957, 0.2
          %v3470 = vmul.f32 %v2958, 0.2
          %v3471 = vmul.f32 %v2959, 0.2
          %v3472 = vmul.f32 %v2960, 0.2
          %v3473 = vmul.f32 %v2961, 0.2
          %v3474 = vmul.f32 %v2962, 0.2
          %v3475 = vmul.f32 %v2963, 0.2
          %v3476 = vmul.f32 %v2964, 0.2
          %v3477 = vmul.f32 %v2965, 0.2
          %v3478 = vmul.f32 %v2966, 0.2
          %v3479 = vmul.f32 %v2967, 0.2
          %v3480 = vmul.f32 %v2968, 0.2
          %v3481 = vmul.f32 %v2969, 0.2
          %v3482 = vmul.f32 %v2970, 0.2
          %v3483 = vmul.f32 %v2971, 0.2
          %v3484 = vmul.f32 %v2972, 0.2
          %v3485 = vmul.f32 %v2973, 0.2
          %v3486 = vmul.f32 %v2974, 0.2
          %v3487 = vmul.f32 %v2975, 0.2
          %v3488 = vmul.f32 %v2976, 0.2
          %v3489 = vmul.f32 %v2977, 0.2
          %v3490 = vmul.f32 %v2978, 0.2
          %v3491 = vmul.f32 %v2979, 0.2
          %v3492 = vmul.f32 %v2980, 0.2
          %v3493 = vmul.f32 %v2981, 0.2
          %v3494 = vmul.f32 %v2982, 0.2
          %v3495 = vmul.f32 %v2983, 0.2
          %v3496 = vmul.f32 %v2984, 0.2
          %v3497 = vmul.f32 %v2985, 0.2
          %v3498 = vmul.f32 %v2986, 0.2
          %v3499 = vmul.f32 %v2987, 0.2
          %v3500 = vmul.f32 %v2988, 0.2
          %v3501 = vmul.f32 %v2989, 0.2
          %v3502 = vmul.f32 %v2990, 0.2
          %v3503 = vmul.f32 %v2991, 0.2
          %v3504 = vmul.f32 %v2992, 0.2
          %v3505 = vmul.f32 %v2993, 0.2
          %v3506 = vmul.f32 %v2994, 0.2
          %v3507 = vmul.f32 %v2995, 0.2
          %v3508 = vmul.f32 %v2996, 0.2
          %v3509 = vmul.f32 %v2997, 0.2
          %v3510 = vmul.f32 %v2998, 0.2
          %v3511 = vmul.f32 %v2999, 0.2
          %v3512 = vmul.f32 %v3000, 0.2
          %v3513 = vmul.f32 %v3001, 0.2
          %v3514 = vmul.f32 %v3002, 0.2
          %v3515 = vmul.f32 %v3003, 0.2
          %v3516 = vmul.f32 %v3004, 0.2
          %v3517 = vmul.f32 %v3005, 0.2
          %v3518 = vmul.f32 %v3006, 0.2
          %v3519 = vmul.f32 %v3007, 0.2
          %v3520 = vmul.f32 %v3008, 0.2
          %v3521 = vmul.f32 %v3009, 0.2
          %v3522 = vmul.f32 %v3010, 0.2
          %v3523 = vmul.f32 %v3011, 0.2
          %v3524 = vmul.f32 %v3012, 0.2
          %v3525 = vmul.f32 %v3013, 0.2
          %v3526 = vmul.f32 %v3014, 0.2
          %v3527 = vmul.f32 %v3015, 0.2
          %v3528 = vmul.f32 %v3016, 0.2
          %v3529 = vmul.f32 %v3017, 0.2
          %v3530 = vmul.f32 %v3018, 0.2
          %v3531 = vmul.f32 %v3019, 0.2
          %v3532 = vmul.f32 %v3020, 0.2
          %v3533 = vmul.f32 %v3021, 0.2
          %v3534 = vmul.f32 %v3022, 0.2
          %v3535 = vmul.f32 %v3023, 0.2
          %v3536 = vmul.f32 %v3024, 0.2
          %v3537 = vmul.f32 %v3025, 0.2
          %v3538 = vmul.f32 %v3026, 0.2
          %v3539 = vmul.f32 %v3027, 0.2
          %v3540 = vmul.f32 %v3028, 0.2
          %v3541 = vmul.f32 %v3029, 0.2
          %v3542 = vmul.f32 %v3030, 0.2
          %v3543 = vmul.f32 %v3031, 0.2
          %v3544 = vmul.f32 %v3032, 0.2
          %v3545 = vmul.f32 %v3033, 0.2
          %v3546 = vmul.f32 %v3034, 0.2
          %v3547 = vmul.f32 %v3035, 0.2
          %v3548 = vmul.f32 %v3036, 0.2
          %v3549 = vmul.f32 %v3037, 0.2
          %v3550 = vmul.f32 %v3038, 0.2
          %v3551 = vmul.f32 %v3039, 0.2
          %v3552 = vmul.f32 %v3040, 0.2
          %v3553 = vmul.f32 %v3041, 0.2
          %v3554 = vmul.f32 %v3042, 0.2
          %v3555 = vmul.f32 %v3043, 0.2
          %v3556 = vmul.f32 %v3044, 0.2
          %v3557 = vmul.f32 %v3045, 0.2
          %v3558 = vmul.f32 %v3046, 0.2
          %v3559 = vmul.f32 %v3047, 0.2
          %v3560 = vmul.f32 %v3048, 0.2
          %v3561 = vmul.f32 %v3049, 0.2
          %v3562 = vmul.f32 %v3050, 0.2
          %v3563 = vmul.f32 %v3051, 0.2
          %v3564 = vmul.f32 %v3052, 0.2
          %v3565 = vmul.f32 %v3053, 0.2
          %v3566 = vmul.f32 %v3054, 0.2
          %v3567 = vmul.f32 %v3055, 0.2
          %v3568 = vmul.f32 %v3056, 0.2
          %v3569 = vmul.f32 %v3057, 0.2
          %v3570 = vmul.f32 %v3058, 0.2
          %v3571 = vmul.f32 %v3059, 0.2
          %v3572 = vmul.f32 %v3060, 0.2
          %v3573 = vmul.f32 %v3061, 0.2
          %v3574 = vmul.f32 %v3062, 0.2
          %v3575 = vmul.f32 %v3063, 0.2
          %v3576 = vmul.f32 %v3064, 0.2
          %v3577 = vmul.f32 %v3065, 0.2
          %v3578 = vmul.f32 %v3066, 0.2
          %v3579 = vmul.f32 %v3067, 0.2
          %v3580 = vmul.f32 %v3068, 0.2
          %v3581 = vmul.f32 %v3069, 0.2
          %v3582 = vmul.f32 %v3070, 0.2
          %v3583 = vmul.f32 %v3071, 0.2
          %v3584 = vmul.f32 %v3072, 0.2
          %v3585 = vmul.f32 %v3073, 0.2
          %v3586 = vmul.f32 %v3074, 0.2
          %v3587 = vmul.f32 %v3075, 0.2
          %v3588 = vmul.f32 %v3076, 0.2
          %v3589 = vmul.f32 %v3077, 0.2
          %v3590 = vmul.f32 %v3078, 0.2
          %v3591 = vmul.f32 %v3079, 0.2
          %v3592 = vmul.f32 %v3080, 0.2
          %v3593 = vmul.f32 %v3081, 0.2
          %v3594 = vmul.f32 %v3082, 0.2
          %v3595 = vmul.f32 %v3083, 0.2
          %v3596 = vmul.f32 %v3084, 0.2
          %v3597 = vmul.f32 %v3085, 0.2
          %v3598 = vmul.f32 %v3086, 0.2
          %v3599 = vmul.f32 %v3087, 0.2
          %v3600 = vmul.f32 %v3088, 0.2
          %v3601 = vmul.f32 %v3089, 0.2
          %v3602 = vmul.f32 %v3090, 0.2
          %v3603 = vmul.f32 %v3091, 0.2
          %v3604 = vmul.f32 %v3092, 0.2
          %v3605 = vmul.f32 %v3093, 0.2
          %v3606 = vmul.f32 %v3094, 0.2
          %v3607 = vmul.f32 %v3095, 0.2
          %v3608 = vmul.f32 %v3096, 0.2
          %v3609 = vmul.f32 %v3097, 0.2
          %v3610 = vmul.f32 %v3098, 0.2
          %v3611 = vmul.f32 %v3099, 0.2
          %v3612 = vmul.f32 %v3100, 0.2
          %v3613 = vmul.f32 %v3101, 0.2
          %v3614 = vmul.f32 %v3102, 0.2
          %v3615 = vmul.f32 %v3103, 0.2
          %v3616 = vmul.f32 %v3104, 0.2
          %v3617 = vmul.f32 %v3105, 0.2
          %v3618 = vsel %vm3106, %v2850, %v3362
          %v3619 = vsel %vm3107, %v2851, %v3363
          %v3620 = vsel %vm3108, %v2852, %v3364
          %v3621 = vsel %vm3109, %v2853, %v3365
          %v3622 = vsel %vm3110, %v2854, %v3366
          %v3623 = vsel %vm3111, %v2855, %v3367
          %v3624 = vsel %vm3112, %v2856, %v3368
          %v3625 = vsel %vm3113, %v2857, %v3369
          %v3626 = vsel %vm3114, %v2858, %v3370
          %v3627 = vsel %vm3115, %v2859, %v3371
          %v3628 = vsel %vm3116, %v2860, %v3372
          %v3629 = vsel %vm3117, %v2861, %v3373
          %v3630 = vsel %vm3118, %v2862, %v3374
          %v3631 = vsel %vm3119, %v2863, %v3375
          %v3632 = vsel %vm3120, %v2864, %v3376
          %v3633 = vsel %vm3121, %v2865, %v3377
          %v3634 = vsel %vm3122, %v2866, %v3378
          %v3635 = vsel %vm3123, %v2867, %v3379
          %v3636 = vsel %vm3124, %v2868, %v3380
          %v3637 = vsel %vm3125, %v2869, %v3381
          %v3638 = vsel %vm3126, %v2870, %v3382
          %v3639 = vsel %vm3127, %v2871, %v3383
          %v3640 = vsel %vm3128, %v2872, %v3384
          %v3641 = vsel %vm3129, %v2873, %v3385
          %v3642 = vsel %vm3130, %v2874, %v3386
          %v3643 = vsel %vm3131, %v2875, %v3387
          %v3644 = vsel %vm3132, %v2876, %v3388
          %v3645 = vsel %vm3133, %v2877, %v3389
          %v3646 = vsel %vm3134, %v2878, %v3390
          %v3647 = vsel %vm3135, %v2879, %v3391
          %v3648 = vsel %vm3136, %v2880, %v3392
          %v3649 = vsel %vm3137, %v2881, %v3393
          %v3650 = vsel %vm3138, %v2882, %v3394
          %v3651 = vsel %vm3139, %v2883, %v3395
          %v3652 = vsel %vm3140, %v2884, %v3396
          %v3653 = vsel %vm3141, %v2885, %v3397
          %v3654 = vsel %vm3142, %v2886, %v3398
          %v3655 = vsel %vm3143, %v2887, %v3399
          %v3656 = vsel %vm3144, %v2888, %v3400
          %v3657 = vsel %vm3145, %v2889, %v3401
          %v3658 = vsel %vm3146, %v2890, %v3402
          %v3659 = vsel %vm3147, %v2891, %v3403
          %v3660 = vsel %vm3148, %v2892, %v3404
          %v3661 = vsel %vm3149, %v2893, %v3405
          %v3662 = vsel %vm3150, %v2894, %v3406
          %v3663 = vsel %vm3151, %v2895, %v3407
          %v3664 = vsel %vm3152, %v2896, %v3408
          %v3665 = vsel %vm3153, %v2897, %v3409
          %v3666 = vsel %vm3154, %v2898, %v3410
          %v3667 = vsel %vm3155, %v2899, %v3411
          %v3668 = vsel %vm3156, %v2900, %v3412
          %v3669 = vsel %vm3157, %v2901, %v3413
          %v3670 = vsel %vm3158, %v2902, %v3414
          %v3671 = vsel %vm3159, %v2903, %v3415
          %v3672 = vsel %vm3160, %v2904, %v3416
          %v3673 = vsel %vm3161, %v2905, %v3417
          %v3674 = vsel %vm3162, %v2906, %v3418
          %v3675 = vsel %vm3163, %v2907, %v3419
          %v3676 = vsel %vm3164, %v2908, %v3420
          %v3677 = vsel %vm3165, %v2909, %v3421
          %v3678 = vsel %vm3166, %v2910, %v3422
          %v3679 = vsel %vm3167, %v2911, %v3423
          %v3680 = vsel %vm3168, %v2912, %v3424
          %v3681 = vsel %vm3169, %v2913, %v3425
          %v3682 = vsel %vm3170, %v2914, %v3426
          %v3683 = vsel %vm3171, %v2915, %v3427
          %v3684 = vsel %vm3172, %v2916, %v3428
          %v3685 = vsel %vm3173, %v2917, %v3429
          %v3686 = vsel %vm3174, %v2918, %v3430
          %v3687 = vsel %vm3175, %v2919, %v3431
          %v3688 = vsel %vm3176, %v2920, %v3432
          %v3689 = vsel %vm3177, %v2921, %v3433
          %v3690 = vsel %vm3178, %v2922, %v3434
          %v3691 = vsel %vm3179, %v2923, %v3435
          %v3692 = vsel %vm3180, %v2924, %v3436
          %v3693 = vsel %vm3181, %v2925, %v3437
          %v3694 = vsel %vm3182, %v2926, %v3438
          %v3695 = vsel %vm3183, %v2927, %v3439
          %v3696 = vsel %vm3184, %v2928, %v3440
          %v3697 = vsel %vm3185, %v2929, %v3441
          %v3698 = vsel %vm3186, %v2930, %v3442
          %v3699 = vsel %vm3187, %v2931, %v3443
          %v3700 = vsel %vm3188, %v2932, %v3444
          %v3701 = vsel %vm3189, %v2933, %v3445
          %v3702 = vsel %vm3190, %v2934, %v3446
          %v3703 = vsel %vm3191, %v2935, %v3447
          %v3704 = vsel %vm3192, %v2936, %v3448
          %v3705 = vsel %vm3193, %v2937, %v3449
          %v3706 = vsel %vm3194, %v2938, %v3450
          %v3707 = vsel %vm3195, %v2939, %v3451
          %v3708 = vsel %vm3196, %v2940, %v3452
          %v3709 = vsel %vm3197, %v2941, %v3453
          %v3710 = vsel %vm3198, %v2942, %v3454
          %v3711 = vsel %vm3199, %v2943, %v3455
          %v3712 = vsel %vm3200, %v2944, %v3456
          %v3713 = vsel %vm3201, %v2945, %v3457
          %v3714 = vsel %vm3202, %v2946, %v3458
          %v3715 = vsel %vm3203, %v2947, %v3459
          %v3716 = vsel %vm3204, %v2948, %v3460
          %v3717 = vsel %vm3205, %v2949, %v3461
          %v3718 = vsel %vm3206, %v2950, %v3462
          %v3719 = vsel %vm3207, %v2951, %v3463
          %v3720 = vsel %vm3208, %v2952, %v3464
          %v3721 = vsel %vm3209, %v2953, %v3465
          %v3722 = vsel %vm3210, %v2954, %v3466
          %v3723 = vsel %vm3211, %v2955, %v3467
          %v3724 = vsel %vm3212, %v2956, %v3468
          %v3725 = vsel %vm3213, %v2957, %v3469
          %v3726 = vsel %vm3214, %v2958, %v3470
          %v3727 = vsel %vm3215, %v2959, %v3471
          %v3728 = vsel %vm3216, %v2960, %v3472
          %v3729 = vsel %vm3217, %v2961, %v3473
          %v3730 = vsel %vm3218, %v2962, %v3474
          %v3731 = vsel %vm3219, %v2963, %v3475
          %v3732 = vsel %vm3220, %v2964, %v3476
          %v3733 = vsel %vm3221, %v2965, %v3477
          %v3734 = vsel %vm3222, %v2966, %v3478
          %v3735 = vsel %vm3223, %v2967, %v3479
          %v3736 = vsel %vm3224, %v2968, %v3480
          %v3737 = vsel %vm3225, %v2969, %v3481
          %v3738 = vsel %vm3226, %v2970, %v3482
          %v3739 = vsel %vm3227, %v2971, %v3483
          %v3740 = vsel %vm3228, %v2972, %v3484
          %v3741 = vsel %vm3229, %v2973, %v3485
          %v3742 = vsel %vm3230, %v2974, %v3486
          %v3743 = vsel %vm3231, %v2975, %v3487
          %v3744 = vsel %vm3232, %v2976, %v3488
          %v3745 = vsel %vm3233, %v2977, %v3489
          %v3746 = vsel %vm3234, %v2978, %v3490
          %v3747 = vsel %vm3235, %v2979, %v3491
          %v3748 = vsel %vm3236, %v2980, %v3492
          %v3749 = vsel %vm3237, %v2981, %v3493
          %v3750 = vsel %vm3238, %v2982, %v3494
          %v3751 = vsel %vm3239, %v2983, %v3495
          %v3752 = vsel %vm3240, %v2984, %v3496
          %v3753 = vsel %vm3241, %v2985, %v3497
          %v3754 = vsel %vm3242, %v2986, %v3498
          %v3755 = vsel %vm3243, %v2987, %v3499
          %v3756 = vsel %vm3244, %v2988, %v3500
          %v3757 = vsel %vm3245, %v2989, %v3501
          %v3758 = vsel %vm3246, %v2990, %v3502
          %v3759 = vsel %vm3247, %v2991, %v3503
          %v3760 = vsel %vm3248, %v2992, %v3504
          %v3761 = vsel %vm3249, %v2993, %v3505
          %v3762 = vsel %vm3250, %v2994, %v3506
          %v3763 = vsel %vm3251, %v2995, %v3507
          %v3764 = vsel %vm3252, %v2996, %v3508
          %v3765 = vsel %vm3253, %v2997, %v3509
          %v3766 = vsel %vm3254, %v2998, %v3510
          %v3767 = vsel %vm3255, %v2999, %v3511
          %v3768 = vsel %vm3256, %v3000, %v3512
          %v3769 = vsel %vm3257, %v3001, %v3513
          %v3770 = vsel %vm3258, %v3002, %v3514
          %v3771 = vsel %vm3259, %v3003, %v3515
          %v3772 = vsel %vm3260, %v3004, %v3516
          %v3773 = vsel %vm3261, %v3005, %v3517
          %v3774 = vsel %vm3262, %v3006, %v3518
          %v3775 = vsel %vm3263, %v3007, %v3519
          %v3776 = vsel %vm3264, %v3008, %v3520
          %v3777 = vsel %vm3265, %v3009, %v3521
          %v3778 = vsel %vm3266, %v3010, %v3522
          %v3779 = vsel %vm3267, %v3011, %v3523
          %v3780 = vsel %vm3268, %v3012, %v3524
          %v3781 = vsel %vm3269, %v3013, %v3525
          %v3782 = vsel %vm3270, %v3014, %v3526
          %v3783 = vsel %vm3271, %v3015, %v3527
          %v3784 = vsel %vm3272, %v3016, %v3528
          %v3785 = vsel %vm3273, %v3017, %v3529
          %v3786 = vsel %vm3274, %v3018, %v3530
          %v3787 = vsel %vm3275, %v3019, %v3531
          %v3788 = vsel %vm3276, %v3020, %v3532
          %v3789 = vsel %vm3277, %v3021, %v3533
          %v3790 = vsel %vm3278, %v3022, %v3534
          %v3791 = vsel %vm3279, %v3023, %v3535
          %v3792 = vsel %vm3280, %v3024, %v3536
          %v3793 = vsel %vm3281, %v3025, %v3537
          %v3794 = vsel %vm3282, %v3026, %v3538
          %v3795 = vsel %vm3283, %v3027, %v3539
          %v3796 = vsel %vm3284, %v3028, %v3540
          %v3797 = vsel %vm3285, %v3029, %v3541
          %v3798 = vsel %vm3286, %v3030, %v3542
          %v3799 = vsel %vm3287, %v3031, %v3543
          %v3800 = vsel %vm3288, %v3032, %v3544
          %v3801 = vsel %vm3289, %v3033, %v3545
          %v3802 = vsel %vm3290, %v3034, %v3546
          %v3803 = vsel %vm3291, %v3035, %v3547
          %v3804 = vsel %vm3292, %v3036, %v3548
          %v3805 = vsel %vm3293, %v3037, %v3549
          %v3806 = vsel %vm3294, %v3038, %v3550
          %v3807 = vsel %vm3295, %v3039, %v3551
          %v3808 = vsel %vm3296, %v3040, %v3552
          %v3809 = vsel %vm3297, %v3041, %v3553
          %v3810 = vsel %vm3298, %v3042, %v3554
          %v3811 = vsel %vm3299, %v3043, %v3555
          %v3812 = vsel %vm3300, %v3044, %v3556
          %v3813 = vsel %vm3301, %v3045, %v3557
          %v3814 = vsel %vm3302, %v3046, %v3558
          %v3815 = vsel %vm3303, %v3047, %v3559
          %v3816 = vsel %vm3304, %v3048, %v3560
          %v3817 = vsel %vm3305, %v3049, %v3561
          %v3818 = vsel %vm3306, %v3050, %v3562
          %v3819 = vsel %vm3307, %v3051, %v3563
          %v3820 = vsel %vm3308, %v3052, %v3564
          %v3821 = vsel %vm3309, %v3053, %v3565
          %v3822 = vsel %vm3310, %v3054, %v3566
          %v3823 = vsel %vm3311, %v3055, %v3567
          %v3824 = vsel %vm3312, %v3056, %v3568
          %v3825 = vsel %vm3313, %v3057, %v3569
          %v3826 = vsel %vm3314, %v3058, %v3570
          %v3827 = vsel %vm3315, %v3059, %v3571
          %v3828 = vsel %vm3316, %v3060, %v3572
          %v3829 = vsel %vm3317, %v3061, %v3573
          %v3830 = vsel %vm3318, %v3062, %v3574
          %v3831 = vsel %vm3319, %v3063, %v3575
          %v3832 = vsel %vm3320, %v3064, %v3576
          %v3833 = vsel %vm3321, %v3065, %v3577
          %v3834 = vsel %vm3322, %v3066, %v3578
          %v3835 = vsel %vm3323, %v3067, %v3579
          %v3836 = vsel %vm3324, %v3068, %v3580
          %v3837 = vsel %vm3325, %v3069, %v3581
          %v3838 = vsel %vm3326, %v3070, %v3582
          %v3839 = vsel %vm3327, %v3071, %v3583
          %v3840 = vsel %vm3328, %v3072, %v3584
          %v3841 = vsel %vm3329, %v3073, %v3585
          %v3842 = vsel %vm3330, %v3074, %v3586
          %v3843 = vsel %vm3331, %v3075, %v3587
          %v3844 = vsel %vm3332, %v3076, %v3588
          %v3845 = vsel %vm3333, %v3077, %v3589
          %v3846 = vsel %vm3334, %v3078, %v3590
          %v3847 = vsel %vm3335, %v3079, %v3591
          %v3848 = vsel %vm3336, %v3080, %v3592
          %v3849 = vsel %vm3337, %v3081, %v3593
          %v3850 = vsel %vm3338, %v3082, %v3594
          %v3851 = vsel %vm3339, %v3083, %v3595
          %v3852 = vsel %vm3340, %v3084, %v3596
          %v3853 = vsel %vm3341, %v3085, %v3597
          %v3854 = vsel %vm3342, %v3086, %v3598
          %v3855 = vsel %vm3343, %v3087, %v3599
          %v3856 = vsel %vm3344, %v3088, %v3600
          %v3857 = vsel %vm3345, %v3089, %v3601
          %v3858 = vsel %vm3346, %v3090, %v3602
          %v3859 = vsel %vm3347, %v3091, %v3603
          %v3860 = vsel %vm3348, %v3092, %v3604
          %v3861 = vsel %vm3349, %v3093, %v3605
          %v3862 = vsel %vm3350, %v3094, %v3606
          %v3863 = vsel %vm3351, %v3095, %v3607
          %v3864 = vsel %vm3352, %v3096, %v3608
          %v3865 = vsel %vm3353, %v3097, %v3609
          %v3866 = vsel %vm3354, %v3098, %v3610
          %v3867 = vsel %vm3355, %v3099, %v3611
          %v3868 = vsel %vm3356, %v3100, %v3612
          %v3869 = vsel %vm3357, %v3101, %v3613
          %v3870 = vsel %vm3358, %v3102, %v3614
          %v3871 = vsel %vm3359, %v3103, %v3615
          %v3872 = vsel %vm3360, %v3104, %v3616
          %v3873 = vsel %vm3361, %v3105, %v3617
          %v3874 = vpack.c.bf16 %v3620, %v3618
          %v3875 = vpack.c.bf16 %v3621, %v3619
          %v3876 = vpack.c.bf16 %v3624, %v3622
          %v3877 = vpack.c.bf16 %v3625, %v3623
          %v3878 = vpack.c.bf16 %v3628, %v3626
          %v3879 = vpack.c.bf16 %v3629, %v3627
          %v3880 = vpack.c.bf16 %v3632, %v3630
          %v3881 = vpack.c.bf16 %v3633, %v3631
          %v3882 = vpack.c.bf16 %v3636, %v3634
          %v3883 = vpack.c.bf16 %v3637, %v3635
          %v3884 = vpack.c.bf16 %v3640, %v3638
          %v3885 = vpack.c.bf16 %v3641, %v3639
          %v3886 = vpack.c.bf16 %v3644, %v3642
          %v3887 = vpack.c.bf16 %v3645, %v3643
          %v3888 = vpack.c.bf16 %v3648, %v3646
          %v3889 = vpack.c.bf16 %v3649, %v3647
          %v3890 = vpack.c.bf16 %v3652, %v3650
          %v3891 = vpack.c.bf16 %v3653, %v3651
          %v3892 = vpack.c.bf16 %v3656, %v3654
          %v3893 = vpack.c.bf16 %v3657, %v3655
          %v3894 = vpack.c.bf16 %v3660, %v3658
          %v3895 = vpack.c.bf16 %v3661, %v3659
          %v3896 = vpack.c.bf16 %v3664, %v3662
          %v3897 = vpack.c.bf16 %v3665, %v3663
          %v3898 = vpack.c.bf16 %v3668, %v3666
          %v3899 = vpack.c.bf16 %v3669, %v3667
          %v3900 = vpack.c.bf16 %v3672, %v3670
          %v3901 = vpack.c.bf16 %v3673, %v3671
          %v3902 = vpack.c.bf16 %v3676, %v3674
          %v3903 = vpack.c.bf16 %v3677, %v3675
          %v3904 = vpack.c.bf16 %v3680, %v3678
          %v3905 = vpack.c.bf16 %v3681, %v3679
          %v3906 = vpack.c.bf16 %v3684, %v3682
          %v3907 = vpack.c.bf16 %v3685, %v3683
          %v3908 = vpack.c.bf16 %v3688, %v3686
          %v3909 = vpack.c.bf16 %v3689, %v3687
          %v3910 = vpack.c.bf16 %v3692, %v3690
          %v3911 = vpack.c.bf16 %v3693, %v3691
          %v3912 = vpack.c.bf16 %v3696, %v3694
          %v3913 = vpack.c.bf16 %v3697, %v3695
          %v3914 = vpack.c.bf16 %v3700, %v3698
          %v3915 = vpack.c.bf16 %v3701, %v3699
          %v3916 = vpack.c.bf16 %v3704, %v3702
          %v3917 = vpack.c.bf16 %v3705, %v3703
          %v3918 = vpack.c.bf16 %v3708, %v3706
          %v3919 = vpack.c.bf16 %v3709, %v3707
          %v3920 = vpack.c.bf16 %v3712, %v3710
          %v3921 = vpack.c.bf16 %v3713, %v3711
          %v3922 = vpack.c.bf16 %v3716, %v3714
          %v3923 = vpack.c.bf16 %v3717, %v3715
          %v3924 = vpack.c.bf16 %v3720, %v3718
          %v3925 = vpack.c.bf16 %v3721, %v3719
          %v3926 = vpack.c.bf16 %v3724, %v3722
          %v3927 = vpack.c.bf16 %v3725, %v3723
          %v3928 = vpack.c.bf16 %v3728, %v3726
          %v3929 = vpack.c.bf16 %v3729, %v3727
          %v3930 = vpack.c.bf16 %v3732, %v3730
          %v3931 = vpack.c.bf16 %v3733, %v3731
          %v3932 = vpack.c.bf16 %v3736, %v3734
          %v3933 = vpack.c.bf16 %v3737, %v3735
          %v3934 = vpack.c.bf16 %v3740, %v3738
          %v3935 = vpack.c.bf16 %v3741, %v3739
          %v3936 = vpack.c.bf16 %v3744, %v3742
          %v3937 = vpack.c.bf16 %v3745, %v3743
          %v3938 = vpack.c.bf16 %v3748, %v3746
          %v3939 = vpack.c.bf16 %v3749, %v3747
          %v3940 = vpack.c.bf16 %v3752, %v3750
          %v3941 = vpack.c.bf16 %v3753, %v3751
          %v3942 = vpack.c.bf16 %v3756, %v3754
          %v3943 = vpack.c.bf16 %v3757, %v3755
          %v3944 = vpack.c.bf16 %v3760, %v3758
          %v3945 = vpack.c.bf16 %v3761, %v3759
          %v3946 = vpack.c.bf16 %v3764, %v3762
          %v3947 = vpack.c.bf16 %v3765, %v3763
          %v3948 = vpack.c.bf16 %v3768, %v3766
          %v3949 = vpack.c.bf16 %v3769, %v3767
          %v3950 = vpack.c.bf16 %v3772, %v3770
          %v3951 = vpack.c.bf16 %v3773, %v3771
          %v3952 = vpack.c.bf16 %v3776, %v3774
          %v3953 = vpack.c.bf16 %v3777, %v3775
          %v3954 = vpack.c.bf16 %v3780, %v3778
          %v3955 = vpack.c.bf16 %v3781, %v3779
          %v3956 = vpack.c.bf16 %v3784, %v3782
          %v3957 = vpack.c.bf16 %v3785, %v3783
          %v3958 = vpack.c.bf16 %v3788, %v3786
          %v3959 = vpack.c.bf16 %v3789, %v3787
          %v3960 = vpack.c.bf16 %v3792, %v3790
          %v3961 = vpack.c.bf16 %v3793, %v3791
          %v3962 = vpack.c.bf16 %v3796, %v3794
          %v3963 = vpack.c.bf16 %v3797, %v3795
          %v3964 = vpack.c.bf16 %v3800, %v3798
          %v3965 = vpack.c.bf16 %v3801, %v3799
          %v3966 = vpack.c.bf16 %v3804, %v3802
          %v3967 = vpack.c.bf16 %v3805, %v3803
          %v3968 = vpack.c.bf16 %v3808, %v3806
          %v3969 = vpack.c.bf16 %v3809, %v3807
          %v3970 = vpack.c.bf16 %v3812, %v3810
          %v3971 = vpack.c.bf16 %v3813, %v3811
          %v3972 = vpack.c.bf16 %v3816, %v3814
          %v3973 = vpack.c.bf16 %v3817, %v3815
          %v3974 = vpack.c.bf16 %v3820, %v3818
          %v3975 = vpack.c.bf16 %v3821, %v3819
          %v3976 = vpack.c.bf16 %v3824, %v3822
          %v3977 = vpack.c.bf16 %v3825, %v3823
          %v3978 = vpack.c.bf16 %v3828, %v3826
          %v3979 = vpack.c.bf16 %v3829, %v3827
          %v3980 = vpack.c.bf16 %v3832, %v3830
          %v3981 = vpack.c.bf16 %v3833, %v3831
          %v3982 = vpack.c.bf16 %v3836, %v3834
          %v3983 = vpack.c.bf16 %v3837, %v3835
          %v3984 = vpack.c.bf16 %v3840, %v3838
          %v3985 = vpack.c.bf16 %v3841, %v3839
          %v3986 = vpack.c.bf16 %v3844, %v3842
          %v3987 = vpack.c.bf16 %v3845, %v3843
          %v3988 = vpack.c.bf16 %v3848, %v3846
          %v3989 = vpack.c.bf16 %v3849, %v3847
          %v3990 = vpack.c.bf16 %v3852, %v3850
          %v3991 = vpack.c.bf16 %v3853, %v3851
          %v3992 = vpack.c.bf16 %v3856, %v3854
          %v3993 = vpack.c.bf16 %v3857, %v3855
          %v3994 = vpack.c.bf16 %v3860, %v3858
          %v3995 = vpack.c.bf16 %v3861, %v3859
          %v3996 = vpack.c.bf16 %v3864, %v3862
          %v3997 = vpack.c.bf16 %v3865, %v3863
          %v3998 = vpack.c.bf16 %v3868, %v3866
          %v3999 = vpack.c.bf16 %v3869, %v3867
          %v4000 = vpack.c.bf16 %v3872, %v3870
          %v4001 = vpack.c.bf16 %v3873, %v3871
          %v4130 = vunpack.c.l.b16 %v3874
          %v4131 = vunpack.c.l.b16 %v3875
          %v4132 = vunpack.c.h.b16 %v3874
          %v4133 = vunpack.c.h.b16 %v3875
          %v4134 = vunpack.c.l.b16 %v3876
          %v4135 = vunpack.c.l.b16 %v3877
          %v4136 = vunpack.c.h.b16 %v3876
          %v4137 = vunpack.c.h.b16 %v3877
          %v4138 = vunpack.c.l.b16 %v3878
          %v4139 = vunpack.c.l.b16 %v3879
          %v4140 = vunpack.c.h.b16 %v3878
          %v4141 = vunpack.c.h.b16 %v3879
          %v4142 = vunpack.c.l.b16 %v3880
          %v4143 = vunpack.c.l.b16 %v3881
          %v4144 = vunpack.c.h.b16 %v3880
          %v4145 = vunpack.c.h.b16 %v3881
          %v4146 = vunpack.c.l.b16 %v3882
          %v4147 = vunpack.c.l.b16 %v3883
          %v4148 = vunpack.c.h.b16 %v3882
          %v4149 = vunpack.c.h.b16 %v3883
          %v4150 = vunpack.c.l.b16 %v3884
          %v4151 = vunpack.c.l.b16 %v3885
          %v4152 = vunpack.c.h.b16 %v3884
          %v4153 = vunpack.c.h.b16 %v3885
          %v4154 = vunpack.c.l.b16 %v3886
          %v4155 = vunpack.c.l.b16 %v3887
          %v4156 = vunpack.c.h.b16 %v3886
          %v4157 = vunpack.c.h.b16 %v3887
          %v4158 = vunpack.c.l.b16 %v3888
          %v4159 = vunpack.c.l.b16 %v3889
          %v4160 = vunpack.c.h.b16 %v3888
          %v4161 = vunpack.c.h.b16 %v3889
          %v4162 = vunpack.c.l.b16 %v3890
          %v4163 = vunpack.c.l.b16 %v3891
          %v4164 = vunpack.c.h.b16 %v3890
          %v4165 = vunpack.c.h.b16 %v3891
          %v4166 = vunpack.c.l.b16 %v3892
          %v4167 = vunpack.c.l.b16 %v3893
          %v4168 = vunpack.c.h.b16 %v3892
          %v4169 = vunpack.c.h.b16 %v3893
          %v4170 = vunpack.c.l.b16 %v3894
          %v4171 = vunpack.c.l.b16 %v3895
          %v4172 = vunpack.c.h.b16 %v3894
          %v4173 = vunpack.c.h.b16 %v3895
          %v4174 = vunpack.c.l.b16 %v3896
          %v4175 = vunpack.c.l.b16 %v3897
          %v4176 = vunpack.c.h.b16 %v3896
          %v4177 = vunpack.c.h.b16 %v3897
          %v4178 = vunpack.c.l.b16 %v3898
          %v4179 = vunpack.c.l.b16 %v3899
          %v4180 = vunpack.c.h.b16 %v3898
          %v4181 = vunpack.c.h.b16 %v3899
          %v4182 = vunpack.c.l.b16 %v3900
          %v4183 = vunpack.c.l.b16 %v3901
          %v4184 = vunpack.c.h.b16 %v3900
          %v4185 = vunpack.c.h.b16 %v3901
          %v4186 = vunpack.c.l.b16 %v3902
          %v4187 = vunpack.c.l.b16 %v3903
          %v4188 = vunpack.c.h.b16 %v3902
          %v4189 = vunpack.c.h.b16 %v3903
          %v4190 = vunpack.c.l.b16 %v3904
          %v4191 = vunpack.c.l.b16 %v3905
          %v4192 = vunpack.c.h.b16 %v3904
          %v4193 = vunpack.c.h.b16 %v3905
          %v4194 = vunpack.c.l.b16 %v3906
          %v4195 = vunpack.c.l.b16 %v3907
          %v4196 = vunpack.c.h.b16 %v3906
          %v4197 = vunpack.c.h.b16 %v3907
          %v4198 = vunpack.c.l.b16 %v3908
          %v4199 = vunpack.c.l.b16 %v3909
          %v4200 = vunpack.c.h.b16 %v3908
          %v4201 = vunpack.c.h.b16 %v3909
          %v4202 = vunpack.c.l.b16 %v3910
          %v4203 = vunpack.c.l.b16 %v3911
          %v4204 = vunpack.c.h.b16 %v3910
          %v4205 = vunpack.c.h.b16 %v3911
          %v4206 = vunpack.c.l.b16 %v3912
          %v4207 = vunpack.c.l.b16 %v3913
          %v4208 = vunpack.c.h.b16 %v3912
          %v4209 = vunpack.c.h.b16 %v3913
          %v4210 = vunpack.c.l.b16 %v3914
          %v4211 = vunpack.c.l.b16 %v3915
          %v4212 = vunpack.c.h.b16 %v3914
          %v4213 = vunpack.c.h.b16 %v3915
          %v4214 = vunpack.c.l.b16 %v3916
          %v4215 = vunpack.c.l.b16 %v3917
          %v4216 = vunpack.c.h.b16 %v3916
          %v4217 = vunpack.c.h.b16 %v3917
          %v4218 = vunpack.c.l.b16 %v3918
          %v4219 = vunpack.c.l.b16 %v3919
          %v4220 = vunpack.c.h.b16 %v3918
          %v4221 = vunpack.c.h.b16 %v3919
          %v4222 = vunpack.c.l.b16 %v3920
          %v4223 = vunpack.c.l.b16 %v3921
          %v4224 = vunpack.c.h.b16 %v3920
          %v4225 = vunpack.c.h.b16 %v3921
          %v4226 = vunpack.c.l.b16 %v3922
          %v4227 = vunpack.c.l.b16 %v3923
          %v4228 = vunpack.c.h.b16 %v3922
          %v4229 = vunpack.c.h.b16 %v3923
          %v4230 = vunpack.c.l.b16 %v3924
          %v4231 = vunpack.c.l.b16 %v3925
          %v4232 = vunpack.c.h.b16 %v3924
          %v4233 = vunpack.c.h.b16 %v3925
          %v4234 = vunpack.c.l.b16 %v3926
          %v4235 = vunpack.c.l.b16 %v3927
          %v4236 = vunpack.c.h.b16 %v3926
          %v4237 = vunpack.c.h.b16 %v3927
          %v4238 = vunpack.c.l.b16 %v3928
          %v4239 = vunpack.c.l.b16 %v3929
          %v4240 = vunpack.c.h.b16 %v3928
          %v4241 = vunpack.c.h.b16 %v3929
          %v4242 = vunpack.c.l.b16 %v3930
          %v4243 = vunpack.c.l.b16 %v3931
          %v4244 = vunpack.c.h.b16 %v3930
          %v4245 = vunpack.c.h.b16 %v3931
          %v4246 = vunpack.c.l.b16 %v3932
          %v4247 = vunpack.c.l.b16 %v3933
          %v4248 = vunpack.c.h.b16 %v3932
          %v4249 = vunpack.c.h.b16 %v3933
          %v4250 = vunpack.c.l.b16 %v3934
          %v4251 = vunpack.c.l.b16 %v3935
          %v4252 = vunpack.c.h.b16 %v3934
          %v4253 = vunpack.c.h.b16 %v3935
          %v4254 = vunpack.c.l.b16 %v3936
          %v4255 = vunpack.c.l.b16 %v3937
          %v4256 = vunpack.c.h.b16 %v3936
          %v4257 = vunpack.c.h.b16 %v3937
          %v4258 = vunpack.c.l.b16 %v3938
          %v4259 = vunpack.c.l.b16 %v3939
          %v4260 = vunpack.c.h.b16 %v3938
          %v4261 = vunpack.c.h.b16 %v3939
          %v4262 = vunpack.c.l.b16 %v3940
          %v4263 = vunpack.c.l.b16 %v3941
          %v4264 = vunpack.c.h.b16 %v3940
          %v4265 = vunpack.c.h.b16 %v3941
          %v4266 = vunpack.c.l.b16 %v3942
          %v4267 = vunpack.c.l.b16 %v3943
          %v4268 = vunpack.c.h.b16 %v3942
          %v4269 = vunpack.c.h.b16 %v3943
          %v4270 = vunpack.c.l.b16 %v3944
          %v4271 = vunpack.c.l.b16 %v3945
          %v4272 = vunpack.c.h.b16 %v3944
          %v4273 = vunpack.c.h.b16 %v3945
          %v4274 = vunpack.c.l.b16 %v3946
          %v4275 = vunpack.c.l.b16 %v3947
          %v4276 = vunpack.c.h.b16 %v3946
          %v4277 = vunpack.c.h.b16 %v3947
          %v4278 = vunpack.c.l.b16 %v3948
          %v4279 = vunpack.c.l.b16 %v3949
          %v4280 = vunpack.c.h.b16 %v3948
          %v4281 = vunpack.c.h.b16 %v3949
          %v4282 = vunpack.c.l.b16 %v3950
          %v4283 = vunpack.c.l.b16 %v3951
          %v4284 = vunpack.c.h.b16 %v3950
          %v4285 = vunpack.c.h.b16 %v3951
          %v4286 = vunpack.c.l.b16 %v3952
          %v4287 = vunpack.c.l.b16 %v3953
          %v4288 = vunpack.c.h.b16 %v3952
          %v4289 = vunpack.c.h.b16 %v3953
          %v4290 = vunpack.c.l.b16 %v3954
          %v4291 = vunpack.c.l.b16 %v3955
          %v4292 = vunpack.c.h.b16 %v3954
          %v4293 = vunpack.c.h.b16 %v3955
          %v4294 = vunpack.c.l.b16 %v3956
          %v4295 = vunpack.c.l.b16 %v3957
          %v4296 = vunpack.c.h.b16 %v3956
          %v4297 = vunpack.c.h.b16 %v3957
          %v4298 = vunpack.c.l.b16 %v3958
          %v4299 = vunpack.c.l.b16 %v3959
          %v4300 = vunpack.c.h.b16 %v3958
          %v4301 = vunpack.c.h.b16 %v3959
          %v4302 = vunpack.c.l.b16 %v3960
          %v4303 = vunpack.c.l.b16 %v3961
          %v4304 = vunpack.c.h.b16 %v3960
          %v4305 = vunpack.c.h.b16 %v3961
          %v4306 = vunpack.c.l.b16 %v3962
          %v4307 = vunpack.c.l.b16 %v3963
          %v4308 = vunpack.c.h.b16 %v3962
          %v4309 = vunpack.c.h.b16 %v3963
          %v4310 = vunpack.c.l.b16 %v3964
          %v4311 = vunpack.c.l.b16 %v3965
          %v4312 = vunpack.c.h.b16 %v3964
          %v4313 = vunpack.c.h.b16 %v3965
          %v4314 = vunpack.c.l.b16 %v3966
          %v4315 = vunpack.c.l.b16 %v3967
          %v4316 = vunpack.c.h.b16 %v3966
          %v4317 = vunpack.c.h.b16 %v3967
          %v4318 = vunpack.c.l.b16 %v3968
          %v4319 = vunpack.c.l.b16 %v3969
          %v4320 = vunpack.c.h.b16 %v3968
          %v4321 = vunpack.c.h.b16 %v3969
          %v4322 = vunpack.c.l.b16 %v3970
          %v4323 = vunpack.c.l.b16 %v3971
          %v4324 = vunpack.c.h.b16 %v3970
          %v4325 = vunpack.c.h.b16 %v3971
          %v4326 = vunpack.c.l.b16 %v3972
          %v4327 = vunpack.c.l.b16 %v3973
          %v4328 = vunpack.c.h.b16 %v3972
          %v4329 = vunpack.c.h.b16 %v3973
          %v4330 = vunpack.c.l.b16 %v3974
          %v4331 = vunpack.c.l.b16 %v3975
          %v4332 = vunpack.c.h.b16 %v3974
          %v4333 = vunpack.c.h.b16 %v3975
          %v4334 = vunpack.c.l.b16 %v3976
          %v4335 = vunpack.c.l.b16 %v3977
          %v4336 = vunpack.c.h.b16 %v3976
          %v4337 = vunpack.c.h.b16 %v3977
          %v4338 = vunpack.c.l.b16 %v3978
          %v4339 = vunpack.c.l.b16 %v3979
          %v4340 = vunpack.c.h.b16 %v3978
          %v4341 = vunpack.c.h.b16 %v3979
          %v4342 = vunpack.c.l.b16 %v3980
          %v4343 = vunpack.c.l.b16 %v3981
          %v4344 = vunpack.c.h.b16 %v3980
          %v4345 = vunpack.c.h.b16 %v3981
          %v4346 = vunpack.c.l.b16 %v3982
          %v4347 = vunpack.c.l.b16 %v3983
          %v4348 = vunpack.c.h.b16 %v3982
          %v4349 = vunpack.c.h.b16 %v3983
          %v4350 = vunpack.c.l.b16 %v3984
          %v4351 = vunpack.c.l.b16 %v3985
          %v4352 = vunpack.c.h.b16 %v3984
          %v4353 = vunpack.c.h.b16 %v3985
          %v4354 = vunpack.c.l.b16 %v3986
          %v4355 = vunpack.c.l.b16 %v3987
          %v4356 = vunpack.c.h.b16 %v3986
          %v4357 = vunpack.c.h.b16 %v3987
          %v4358 = vunpack.c.l.b16 %v3988
          %v4359 = vunpack.c.l.b16 %v3989
          %v4360 = vunpack.c.h.b16 %v3988
          %v4361 = vunpack.c.h.b16 %v3989
          %v4362 = vunpack.c.l.b16 %v3990
          %v4363 = vunpack.c.l.b16 %v3991
          %v4364 = vunpack.c.h.b16 %v3990
          %v4365 = vunpack.c.h.b16 %v3991
          %v4366 = vunpack.c.l.b16 %v3992
          %v4367 = vunpack.c.l.b16 %v3993
          %v4368 = vunpack.c.h.b16 %v3992
          %v4369 = vunpack.c.h.b16 %v3993
          %v4370 = vunpack.c.l.b16 %v3994
          %v4371 = vunpack.c.l.b16 %v3995
          %v4372 = vunpack.c.h.b16 %v3994
          %v4373 = vunpack.c.h.b16 %v3995
          %v4374 = vunpack.c.l.b16 %v3996
          %v4375 = vunpack.c.l.b16 %v3997
          %v4376 = vunpack.c.h.b16 %v3996
          %v4377 = vunpack.c.h.b16 %v3997
          %v4378 = vunpack.c.l.b16 %v3998
          %v4379 = vunpack.c.l.b16 %v3999
          %v4380 = vunpack.c.h.b16 %v3998
          %v4381 = vunpack.c.h.b16 %v3999
          %v4382 = vunpack.c.l.b16 %v4000
          %v4383 = vunpack.c.l.b16 %v4001
          %v4384 = vunpack.c.h.b16 %v4000
          %v4385 = vunpack.c.h.b16 %v4001
          %v4386 = vpack.c.b16 %v4131, %v4130
          %v4387 = vpack.c.b16 %v4133, %v4132
          %v4388 = vpack.c.b16 %v4135, %v4134
          %v4389 = vpack.c.b16 %v4137, %v4136
          %v4390 = vpack.c.b16 %v4139, %v4138
          %v4391 = vpack.c.b16 %v4141, %v4140
          %v4392 = vpack.c.b16 %v4143, %v4142
          %v4393 = vpack.c.b16 %v4145, %v4144
          %v4394 = vpack.c.b16 %v4147, %v4146
          %v4395 = vpack.c.b16 %v4149, %v4148
          %v4396 = vpack.c.b16 %v4151, %v4150
          %v4397 = vpack.c.b16 %v4153, %v4152
          %v4398 = vpack.c.b16 %v4155, %v4154
          %v4399 = vpack.c.b16 %v4157, %v4156
          %v4400 = vpack.c.b16 %v4159, %v4158
          %v4401 = vpack.c.b16 %v4161, %v4160
          %v4402 = vpack.c.b16 %v4163, %v4162
          %v4403 = vpack.c.b16 %v4165, %v4164
          %v4404 = vpack.c.b16 %v4167, %v4166
          %v4405 = vpack.c.b16 %v4169, %v4168
          %v4406 = vpack.c.b16 %v4171, %v4170
          %v4407 = vpack.c.b16 %v4173, %v4172
          %v4408 = vpack.c.b16 %v4175, %v4174
          %v4409 = vpack.c.b16 %v4177, %v4176
          %v4410 = vpack.c.b16 %v4179, %v4178
          %v4411 = vpack.c.b16 %v4181, %v4180
          %v4412 = vpack.c.b16 %v4183, %v4182
          %v4413 = vpack.c.b16 %v4185, %v4184
          %v4414 = vpack.c.b16 %v4187, %v4186
          %v4415 = vpack.c.b16 %v4189, %v4188
          %v4416 = vpack.c.b16 %v4191, %v4190
          %v4417 = vpack.c.b16 %v4193, %v4192
          %v4418 = vpack.c.b16 %v4195, %v4194
          %v4419 = vpack.c.b16 %v4197, %v4196
          %v4420 = vpack.c.b16 %v4199, %v4198
          %v4421 = vpack.c.b16 %v4201, %v4200
          %v4422 = vpack.c.b16 %v4203, %v4202
          %v4423 = vpack.c.b16 %v4205, %v4204
          %v4424 = vpack.c.b16 %v4207, %v4206
          %v4425 = vpack.c.b16 %v4209, %v4208
          %v4426 = vpack.c.b16 %v4211, %v4210
          %v4427 = vpack.c.b16 %v4213, %v4212
          %v4428 = vpack.c.b16 %v4215, %v4214
          %v4429 = vpack.c.b16 %v4217, %v4216
          %v4430 = vpack.c.b16 %v4219, %v4218
          %v4431 = vpack.c.b16 %v4221, %v4220
          %v4432 = vpack.c.b16 %v4223, %v4222
          %v4433 = vpack.c.b16 %v4225, %v4224
          %v4434 = vpack.c.b16 %v4227, %v4226
          %v4435 = vpack.c.b16 %v4229, %v4228
          %v4436 = vpack.c.b16 %v4231, %v4230
          %v4437 = vpack.c.b16 %v4233, %v4232
          %v4438 = vpack.c.b16 %v4235, %v4234
          %v4439 = vpack.c.b16 %v4237, %v4236
          %v4440 = vpack.c.b16 %v4239, %v4238
          %v4441 = vpack.c.b16 %v4241, %v4240
          %v4442 = vpack.c.b16 %v4243, %v4242
          %v4443 = vpack.c.b16 %v4245, %v4244
          %v4444 = vpack.c.b16 %v4247, %v4246
          %v4445 = vpack.c.b16 %v4249, %v4248
          %v4446 = vpack.c.b16 %v4251, %v4250
          %v4447 = vpack.c.b16 %v4253, %v4252
          %v4448 = vpack.c.b16 %v4255, %v4254
          %v4449 = vpack.c.b16 %v4257, %v4256
          %v4450 = vpack.c.b16 %v4259, %v4258
          %v4451 = vpack.c.b16 %v4261, %v4260
          %v4452 = vpack.c.b16 %v4263, %v4262
          %v4453 = vpack.c.b16 %v4265, %v4264
          %v4454 = vpack.c.b16 %v4267, %v4266
          %v4455 = vpack.c.b16 %v4269, %v4268
          %v4456 = vpack.c.b16 %v4271, %v4270
          %v4457 = vpack.c.b16 %v4273, %v4272
          %v4458 = vpack.c.b16 %v4275, %v4274
          %v4459 = vpack.c.b16 %v4277, %v4276
          %v4460 = vpack.c.b16 %v4279, %v4278
          %v4461 = vpack.c.b16 %v4281, %v4280
          %v4462 = vpack.c.b16 %v4283, %v4282
          %v4463 = vpack.c.b16 %v4285, %v4284
          %v4464 = vpack.c.b16 %v4287, %v4286
          %v4465 = vpack.c.b16 %v4289, %v4288
          %v4466 = vpack.c.b16 %v4291, %v4290
          %v4467 = vpack.c.b16 %v4293, %v4292
          %v4468 = vpack.c.b16 %v4295, %v4294
          %v4469 = vpack.c.b16 %v4297, %v4296
          %v4470 = vpack.c.b16 %v4299, %v4298
          %v4471 = vpack.c.b16 %v4301, %v4300
          %v4472 = vpack.c.b16 %v4303, %v4302
          %v4473 = vpack.c.b16 %v4305, %v4304
          %v4474 = vpack.c.b16 %v4307, %v4306
          %v4475 = vpack.c.b16 %v4309, %v4308
          %v4476 = vpack.c.b16 %v4311, %v4310
          %v4477 = vpack.c.b16 %v4313, %v4312
          %v4478 = vpack.c.b16 %v4315, %v4314
          %v4479 = vpack.c.b16 %v4317, %v4316
          %v4480 = vpack.c.b16 %v4319, %v4318
          %v4481 = vpack.c.b16 %v4321, %v4320
          %v4482 = vpack.c.b16 %v4323, %v4322
          %v4483 = vpack.c.b16 %v4325, %v4324
          %v4484 = vpack.c.b16 %v4327, %v4326
          %v4485 = vpack.c.b16 %v4329, %v4328
          %v4486 = vpack.c.b16 %v4331, %v4330
          %v4487 = vpack.c.b16 %v4333, %v4332
          %v4488 = vpack.c.b16 %v4335, %v4334
          %v4489 = vpack.c.b16 %v4337, %v4336
          %v4490 = vpack.c.b16 %v4339, %v4338
          %v4491 = vpack.c.b16 %v4341, %v4340
          %v4492 = vpack.c.b16 %v4343, %v4342
          %v4493 = vpack.c.b16 %v4345, %v4344
          %v4494 = vpack.c.b16 %v4347, %v4346
          %v4495 = vpack.c.b16 %v4349, %v4348
          %v4496 = vpack.c.b16 %v4351, %v4350
          %v4497 = vpack.c.b16 %v4353, %v4352
          %v4498 = vpack.c.b16 %v4355, %v4354
          %v4499 = vpack.c.b16 %v4357, %v4356
          %v4500 = vpack.c.b16 %v4359, %v4358
          %v4501 = vpack.c.b16 %v4361, %v4360
          %v4502 = vpack.c.b16 %v4363, %v4362
          %v4503 = vpack.c.b16 %v4365, %v4364
          %v4504 = vpack.c.b16 %v4367, %v4366
          %v4505 = vpack.c.b16 %v4369, %v4368
          %v4506 = vpack.c.b16 %v4371, %v4370
          %v4507 = vpack.c.b16 %v4373, %v4372
          %v4508 = vpack.c.b16 %v4375, %v4374
          %v4509 = vpack.c.b16 %v4377, %v4376
          %v4510 = vpack.c.b16 %v4379, %v4378
          %v4511 = vpack.c.b16 %v4381, %v4380
          %v4512 = vpack.c.b16 %v4383, %v4382
          %v4513 = vpack.c.b16 %v4385, %v4384
          %4642 = vst [vmem:[%s254] sm:$0xff] %v4386
          %4643 = vst [vmem:[%s254 + $0x8] sm:$0xff] %v4387
          %4644 = vst [vmem:[%s254 + $0x10] sm:$0xff] %v4388
          %4645 = vst [vmem:[%s254 + $0x18] sm:$0xff] %v4389
          %4646 = vst [vmem:[%s254 + $0x20] sm:$0xff] %v4390
          %4647 = vst [vmem:[%s254 + $0x28] sm:$0xff] %v4391
          %4648 = vst [vmem:[%s254 + $0x30] sm:$0xff] %v4392
          %4649 = vst [vmem:[%s254 + $0x38] sm:$0xff] %v4393
          %4650 = vst [vmem:[%s254 + $0x40] sm:$0xff] %v4394
          %4651 = vst [vmem:[%s254 + $0x48] sm:$0xff] %v4395
          %4652 = vst [vmem:[%s254 + $0x50] sm:$0xff] %v4396
          %4653 = vst [vmem:[%s254 + $0x58] sm:$0xff] %v4397
          %4654 = vst [vmem:[%s254 + $0x60] sm:$0xff] %v4398
          %4655 = vst [vmem:[%s254 + $0x68] sm:$0xff] %v4399
          %4656 = vst [vmem:[%s254 + $0x70] sm:$0xff] %v4400
          %4657 = vst [vmem:[%s254 + $0x78] sm:$0xff] %v4401
          %4658 = vst [vmem:[%s254 + $0x80] sm:$0xff] %v4402
          %4659 = vst [vmem:[%s254 + $0x88] sm:$0xff] %v4403
          %4660 = vst [vmem:[%s254 + $0x90] sm:$0xff] %v4404
          %4661 = vst [vmem:[%s254 + $0x98] sm:$0xff] %v4405
          %4662 = vst [vmem:[%s254 + $0xa0] sm:$0xff] %v4406
          %4663 = vst [vmem:[%s254 + $0xa8] sm:$0xff] %v4407
          %4664 = vst [vmem:[%s254 + $0xb0] sm:$0xff] %v4408
          %4665 = vst [vmem:[%s254 + $0xb8] sm:$0xff] %v4409
          %4666 = vst [vmem:[%s254 + $0xc0] sm:$0xff] %v4410
          %4667 = vst [vmem:[%s254 + $0xc8] sm:$0xff] %v4411
          %4668 = vst [vmem:[%s254 + $0xd0] sm:$0xff] %v4412
          %4669 = vst [vmem:[%s254 + $0xd8] sm:$0xff] %v4413
          %4670 = vst [vmem:[%s254 + $0xe0] sm:$0xff] %v4414
          %4671 = vst [vmem:[%s254 + $0xe8] sm:$0xff] %v4415
          %4672 = vst [vmem:[%s254 + $0xf0] sm:$0xff] %v4416
          %4673 = vst [vmem:[%s254 + $0xf8] sm:$0xff] %v4417
          %4674 = vst [vmem:[%s254 + $0x100] sm:$0xff] %v4418
          %4675 = vst [vmem:[%s254 + $0x108] sm:$0xff] %v4419
          %4676 = vst [vmem:[%s254 + $0x110] sm:$0xff] %v4420
          %4677 = vst [vmem:[%s254 + $0x118] sm:$0xff] %v4421
          %4678 = vst [vmem:[%s254 + $0x120] sm:$0xff] %v4422
          %4679 = vst [vmem:[%s254 + $0x128] sm:$0xff] %v4423
          %4680 = vst [vmem:[%s254 + $0x130] sm:$0xff] %v4424
          %4681 = vst [vmem:[%s254 + $0x138] sm:$0xff] %v4425
          %4682 = vst [vmem:[%s254 + $0x140] sm:$0xff] %v4426
          %4683 = vst [vmem:[%s254 + $0x148] sm:$0xff] %v4427
          %4684 = vst [vmem:[%s254 + $0x150] sm:$0xff] %v4428
          %4685 = vst [vmem:[%s254 + $0x158] sm:$0xff] %v4429
          %4686 = vst [vmem:[%s254 + $0x160] sm:$0xff] %v4430
          %4687 = vst [vmem:[%s254 + $0x168] sm:$0xff] %v4431
          %4688 = vst [vmem:[%s254 + $0x170] sm:$0xff] %v4432
          %4689 = vst [vmem:[%s254 + $0x178] sm:$0xff] %v4433
          %4690 = vst [vmem:[%s254 + $0x180] sm:$0xff] %v4434
          %4691 = vst [vmem:[%s254 + $0x188] sm:$0xff] %v4435
          %4692 = vst [vmem:[%s254 + $0x190] sm:$0xff] %v4436
          %4693 = vst [vmem:[%s254 + $0x198] sm:$0xff] %v4437
          %4694 = vst [vmem:[%s254 + $0x1a0] sm:$0xff] %v4438
          %4695 = vst [vmem:[%s254 + $0x1a8] sm:$0xff] %v4439
          %4696 = vst [vmem:[%s254 + $0x1b0] sm:$0xff] %v4440
          %4697 = vst [vmem:[%s254 + $0x1b8] sm:$0xff] %v4441
          %4698 = vst [vmem:[%s254 + $0x1c0] sm:$0xff] %v4442
          %4699 = vst [vmem:[%s254 + $0x1c8] sm:$0xff] %v4443
          %4700 = vst [vmem:[%s254 + $0x1d0] sm:$0xff] %v4444
          %4701 = vst [vmem:[%s254 + $0x1d8] sm:$0xff] %v4445
          %4702 = vst [vmem:[%s254 + $0x1e0] sm:$0xff] %v4446
          %4703 = vst [vmem:[%s254 + $0x1e8] sm:$0xff] %v4447
          %4704 = vst [vmem:[%s254 + $0x1f0] sm:$0xff] %v4448
          %4705 = vst [vmem:[%s254 + $0x1f8] sm:$0xff] %v4449
          %4706 = vst [vmem:[%s254 + $0x200] sm:$0xff] %v4450
          %4707 = vst [vmem:[%s254 + $0x208] sm:$0xff] %v4451
          %4708 = vst [vmem:[%s254 + $0x210] sm:$0xff] %v4452
          %4709 = vst [vmem:[%s254 + $0x218] sm:$0xff] %v4453
          %4710 = vst [vmem:[%s254 + $0x220] sm:$0xff] %v4454
          %4711 = vst [vmem:[%s254 + $0x228] sm:$0xff] %v4455
          %4712 = vst [vmem:[%s254 + $0x230] sm:$0xff] %v4456
          %4713 = vst [vmem:[%s254 + $0x238] sm:$0xff] %v4457
          %4714 = vst [vmem:[%s254 + $0x240] sm:$0xff] %v4458
          %4715 = vst [vmem:[%s254 + $0x248] sm:$0xff] %v4459
          %4716 = vst [vmem:[%s254 + $0x250] sm:$0xff] %v4460
          %4717 = vst [vmem:[%s254 + $0x258] sm:$0xff] %v4461
          %4718 = vst [vmem:[%s254 + $0x260] sm:$0xff] %v4462
          %4719 = vst [vmem:[%s254 + $0x268] sm:$0xff] %v4463
          %4720 = vst [vmem:[%s254 + $0x270] sm:$0xff] %v4464
          %4721 = vst [vmem:[%s254 + $0x278] sm:$0xff] %v4465
          %4722 = vst [vmem:[%s254 + $0x280] sm:$0xff] %v4466
          %4723 = vst [vmem:[%s254 + $0x288] sm:$0xff] %v4467
          %4724 = vst [vmem:[%s254 + $0x290] sm:$0xff] %v4468
          %4725 = vst [vmem:[%s254 + $0x298] sm:$0xff] %v4469
          %4726 = vst [vmem:[%s254 + $0x2a0] sm:$0xff] %v4470
          %4727 = vst [vmem:[%s254 + $0x2a8] sm:$0xff] %v4471
          %4728 = vst [vmem:[%s254 + $0x2b0] sm:$0xff] %v4472
          %4729 = vst [vmem:[%s254 + $0x2b8] sm:$0xff] %v4473
          %4730 = vst [vmem:[%s254 + $0x2c0] sm:$0xff] %v4474
          %4731 = vst [vmem:[%s254 + $0x2c8] sm:$0xff] %v4475
          %4732 = vst [vmem:[%s254 + $0x2d0] sm:$0xff] %v4476
          %4733 = vst [vmem:[%s254 + $0x2d8] sm:$0xff] %v4477
          %4734 = vst [vmem:[%s254 + $0x2e0] sm:$0xff] %v4478
          %4735 = vst [vmem:[%s254 + $0x2e8] sm:$0xff] %v4479
          %4736 = vst [vmem:[%s254 + $0x2f0] sm:$0xff] %v4480
          %4737 = vst [vmem:[%s254 + $0x2f8] sm:$0xff] %v4481
          %4738 = vst [vmem:[%s254 + $0x300] sm:$0xff] %v4482
          %4739 = vst [vmem:[%s254 + $0x308] sm:$0xff] %v4483
          %4740 = vst [vmem:[%s254 + $0x310] sm:$0xff] %v4484
          %4741 = vst [vmem:[%s254 + $0x318] sm:$0xff] %v4485
          %4742 = vst [vmem:[%s254 + $0x320] sm:$0xff] %v4486
          %4743 = vst [vmem:[%s254 + $0x328] sm:$0xff] %v4487
          %4744 = vst [vmem:[%s254 + $0x330] sm:$0xff] %v4488
          %4745 = vst [vmem:[%s254 + $0x338] sm:$0xff] %v4489
          %4746 = vst [vmem:[%s254 + $0x340] sm:$0xff] %v4490
          %4747 = vst [vmem:[%s254 + $0x348] sm:$0xff] %v4491
          %4748 = vst [vmem:[%s254 + $0x350] sm:$0xff] %v4492
          %4749 = vst [vmem:[%s254 + $0x358] sm:$0xff] %v4493
          %4750 = vst [vmem:[%s254 + $0x360] sm:$0xff] %v4494
          %4751 = vst [vmem:[%s254 + $0x368] sm:$0xff] %v4495
          %4752 = vst [vmem:[%s254 + $0x370] sm:$0xff] %v4496
          %4753 = vst [vmem:[%s254 + $0x378] sm:$0xff] %v4497
          %4754 = vst [vmem:[%s254 + $0x380] sm:$0xff] %v4498
          %4755 = vst [vmem:[%s254 + $0x388] sm:$0xff] %v4499
          %4756 = vst [vmem:[%s254 + $0x390] sm:$0xff] %v4500
          %4757 = vst [vmem:[%s254 + $0x398] sm:$0xff] %v4501
          %4758 = vst [vmem:[%s254 + $0x3a0] sm:$0xff] %v4502
          %4759 = vst [vmem:[%s254 + $0x3a8] sm:$0xff] %v4503
          %4760 = vst [vmem:[%s254 + $0x3b0] sm:$0xff] %v4504
          %4761 = vst [vmem:[%s254 + $0x3b8] sm:$0xff] %v4505
          %4762 = vst [vmem:[%s254 + $0x3c0] sm:$0xff] %v4506
          %4763 = vst [vmem:[%s254 + $0x3c8] sm:$0xff] %v4507
          %4764 = vst [vmem:[%s254 + $0x3d0] sm:$0xff] %v4508
          %4765 = vst [vmem:[%s254 + $0x3d8] sm:$0xff] %v4509
          %4766 = vst [vmem:[%s254 + $0x3e0] sm:$0xff] %v4510
          %4767 = vst [vmem:[%s254 + $0x3e8] sm:$0xff] %v4511
          %4768 = vst [vmem:[%s254 + $0x3f0] sm:$0xff] %v4512
          %4769 = vst [vmem:[%s254 + $0x3f8] sm:$0xff] %v4513
        $region52: #{tpu_custom_call.1} parent=31 // pred_fallthru
          _
        %s4770 = sand.u32 %s132, 1
        %s4771 = scalar_lea.sflag [#allocation5], %s4770
        %s4772 = sand.u32 %s132, 1
        %s4773 = smul.addr %s4772, 1024
        %s4774 = scalar_lea.vmem [#allocation8], %s4773
        // Predicated region
        $region53: #{tpu_custom_call.1} parent=31 // pred_check
          %p4775 = pneg %p142
        $region54: #{tpu_custom_call.1} parent=31 // pred_check_branch
          %4777 = sbr.rel (%p4775) target = $region56
        $region55: #{tpu_custom_call.1} parent=31 // pred_region
          %s4778 = smul.u32 128, %s26
          %s4779 = smul.u32 2, %s27
          %s4781 = ssub.s32 16384, 16384
          %4782 = vsyncadd %s4771, %s4781
          %s4783 = smul.addr %s4778, 2
          %s4784 = sadd.s32 %s4779, %s4783
          %s4785 = smul.addr %s4784, 64
          %s4786 = scalar_lea.hbm %s3, %s4785
          %s4787 = sshll.u32 %s4774, 4
          %s4788 = int_to_ptr.vmem [resolvable:$true] %s4787
          %4793 = dma.vmem_to_hbm [thread:$0]  %s4788, 16384, %s4786, %s4771, 128, 128, 8
        $region56: #{tpu_custom_call.1} parent=31 // pred_fallthru
          _
      $region32: #{tpu_custom_call.1} parent=5 // pred_fallthru
        _
      %p4794 = scmp.le.s32.totalorder 2, %s16
      // Predicated region
      $region57: #{tpu_custom_call.1} parent=5 // pred_check
        %p4795 = pneg %p4794
      $region58: #{tpu_custom_call.1} parent=5 // pred_check_branch
        %4797 = sbr.rel (%p4795) target = $region60
      $region59: #{tpu_custom_call.1} parent=5 // pred_region
        %s4798 = ssub.s32 %s16, 2
        // Predicated region
        $region61: #{tpu_custom_call.1} parent=59 // pred_check
          %p4799 = pneg %p148
        $region62: #{tpu_custom_call.1} parent=59 // pred_check_branch
          %4801 = sbr.rel (%p4799) target = $region64
        $region63: #{tpu_custom_call.1} parent=59 // pred_region
          %s4802 = sand.u32 %s133, 1
          %s4803 = scalar_lea.sflag [#allocation5], %s4802
          %s4804 = sand.u32 %s133, 1
          %s4805 = smul.addr %s4804, 1024
          %s4806 = scalar_lea.vmem [#allocation8], %s4805
          %4807 = dma.done %s4803, 16384
        $region64: #{tpu_custom_call.1} parent=59 // pred_fallthru
          _
      $region60: #{tpu_custom_call.1} parent=5 // pred_fallthru
        _
    $region6: #{tpu_custom_call.1} parent=1 // loop_footer
      %s20 = sadd.s32 1, %s16
    $region7: #{tpu_custom_call.1} parent=1 // loop_footer_branch
      %15 = sbr.rel target = $region3
    $region8: #{tpu_custom_call.1} parent=1 // loop_exit
      _
    %4808 = vsyncpa [#allocation4], 1
    %s4809 = scalar_lea.sflag [#allocation4], 1
    %4810 = vsyncpa %s4809, 1
    %4811 = vsyncpa [#allocation7], 1
    %4812 = vsyncpa [#allocation5], 1
    %s4813 = scalar_lea.sflag [#allocation5], 1
    %4814 = vsyncpa %s4813, 1

</llo_original>
